<compile_context>
chip_gen: v5e
topology: v5e:2x2
jax: 0.10.0
libtpu: 0.0.40
codegen_flags: <defaults>
</compile_context>

<pallas_src>
import functools

import jax
import jax.numpy as jnp
import numpy as np
from jax import lax
from jax.experimental import pallas as pl
from jax.experimental.pallas import tpu as pltpu

# zero pad strip on each side of the flattened image stack; must be >= W+1
# and keeps all image stores 128-lane aligned.
_IMG_PAD = 128


# ---------------------------------------------------------------------------
# Fused Up-block kernel (Bt batch elements per grid step)
# ---------------------------------------------------------------------------
def _up_fused_kernel(x1_ref, x2_ref, ut_ref, msk_ref, grp_ref,
                     w1_ref, b1_ref, g1_ref, bt1_ref,
                     w2_ref, b2_ref, g2_ref, bt2_ref,
                     o_ref, xpf_ref,
                     *, Bt, H, W, C1, C2, Cout, eps=1e-5, neg_slope=0.2):
    # x1_ref : (Bt, C1, H1*W1) bf16   low-res input images
    # x2_ref : (Bt, C2, H*W)   bf16   skip connection
    # ut_ref : (H1*W1, H*W)    bf16   kron(Mh, Mw)^T bilinear upsample operator
    # msk_ref: (9, Bt*H*W)     bf16   per-tap im2col validity masks (0/1)
    # grp_ref: (Cout, Cout)    f32    group-average matrix (includes 1/(cpg*HW))
    # w*_ref : (9, Cout, Cin)  bf16   conv weights, one (Cout, Cin) slab per tap
    # b/g/bt : (Cout, 1)       f32    conv bias / GN gamma / GN beta
    # o_ref  : (Bt, Cout, H*W) f32    lane-dense output
    # xpf_ref: (Cmax, 2*_IMG_PAD + Bt*H*W) bf16  padded flat image stack
    HW = H * W
    L = Bt * HW
    Cin = C1 + C2
    cmax = max(Cin, Cout)
    f32 = jnp.float32
    bf16 = jnp.bfloat16
    nseg = HW // 128

    # Zero only the two pad strips; the image region is always fully
    # overwritten.  Done every step (2 x Cmax x 128 stores, trivial) so the
    # kernel stays correct even if the "parallel" batch axis is core-sharded.
    zpad = jnp.zeros((cmax, _IMG_PAD), bf16)
    xpf_ref[0:cmax, 0:_IMG_PAD] = zpad
    xpf_ref[0:cmax, _IMG_PAD + L:2 * _IMG_PAD + L] = zpad

    def conv_gn_lrelu(cin, w_ref, b_ref, g_ref, bt_ref, store):
        # 3x3 SAME conv = 9 accumulating (Cout,cin)@(cin,L) bf16 MXU matmuls on
        # shifted views of the padded flat image; no materialized im2col patch.
        base = _IMG_PAD
        acc = jnp.dot(w_ref[4], xpf_ref[0:cin, base:base + L],
                      preferred_element_type=f32) + b_ref[...]
        for t in (0, 1, 2, 3, 5, 6, 7, 8):
            dh, dw = t // 3, t % 3
            s = base + (dh - 1) * W + (dw - 1)
            # mask zeroes every read that falls outside its own image (row and
            # column boundaries, including the boundaries between the Bt
            # images packed along the lane axis).
            tap = xpf_ref[0:cin, s:s + L] * msk_ref[t:t + 1, :]
            acc = acc + jnp.dot(w_ref[t], tap, preferred_element_type=f32)

        # Per-image GroupNorm + LeakyReLU (GN statistics are per sample).
        # Lane-reduce to 128-wide partials first, then the tiny group-average
        # matmul -> ~HW/128x less GN MXU work than a full-width matmul.
        for b in range(Bt):
            a = acc[:, b * HW:(b + 1) * HW]                                  # (Cout, HW)
            part = jnp.sum(a.reshape(Cout, nseg, 128), axis=1)               # (Cout, 128)
            mu = jnp.sum(jnp.dot(grp_ref[...], part, preferred_element_type=f32),
                         axis=1, keepdims=True)                              # (Cout, 1)
            cen = a - mu
            vpart = jnp.sum((cen * cen).reshape(Cout, nseg, 128), axis=1)
            var = jnp.sum(jnp.dot(grp_ref[...], vpart, preferred_element_type=f32),
                          axis=1, keepdims=True)
            scale = lax.rsqrt(var + eps) * g_ref[...]                        # gamma folded
            y = cen * scale + bt_ref[...]
            y = jnp.where(y > 0, y, neg_slope * y)                           # LeakyReLU
            store(b, y)

    # Stage-1 input: concat([x2, bilinear_up(x1)], channel) written straight
    # into the padded flat buffer (upsample = one small MXU matmul per image).
    for b in range(Bt):
        off = _IMG_PAD + b * HW
        xpf_ref[0:C2, off:off + HW] = x2_ref[b]
        up = jnp.dot(x1_ref[b], ut_ref[...], preferred_element_type=f32)
        xpf_ref[C2:C2 + C1, off:off + HW] = up.astype(bf16)

    def store_h(b, y):  # intermediate activation never leaves VMEM
        off = _IMG_PAD + b * HW
        xpf_ref[0:Cout, off:off + HW] = y.astype(bf16)

    conv_gn_lrelu(Cin, w1_ref, b1_ref, g1_ref, bt1_ref, store_h)

    def store_o(b, y):
        o_ref[b] = y.astype(o_ref.dtype)

    conv_gn_lrelu(Cout, w2_ref, b2_ref, g2_ref, bt2_ref, store_o)


# ---------------------------------------------------------------------------
# Host-side constants
# ---------------------------------------------------------------------------
def _interp_matrix_np(n_in, n_out):
    # align_corners=True bilinear interpolation matrix, (n_out, n_in)
    src = np.arange(n_out, dtype=np.float64) * (n_in - 1) / max(n_out - 1, 1)
    i0 = np.clip(np.floor(src).astype(np.int64), 0, max(n_in - 2, 0))
    w1 = src - i0
    M = np.zeros((n_out, n_in), np.float64)
    M[np.arange(n_out), i0] += 1.0 - w1
    M[np.arange(n_out), np.minimum(i0 + 1, n_in - 1)] += w1
    return M


def _tap_masks_np(H, W, Bt):
    # validity of reading pixel (h+dh-1, w+dw-1) for each of the 9 conv taps
    hw = H * W
    hh = np.arange(hw) // W
    ww = np.arange(hw) % W
    m = np.zeros((9, hw), np.float32)
    for t in range(9):
        dh, dw = t // 3, t % 3
        ok = ((hh + dh - 1 >= 0) & (hh + dh - 1 < H) &
              (ww + dw - 1 >= 0) & (ww + dw - 1 < W))
        m[t] = ok.astype(np.float32)
    return np.tile(m, (1, Bt))


# ---------------------------------------------------------------------------
# Wrapper (NCHW API like PyTorch)
# ---------------------------------------------------------------------------
def up_forward(x1_nchw, x2_nchw, params, num_groups):
    """Up.forward: x1 (N,C1,H1,W1) low-res, x2 (N,C2,2H1,2W1) skip. Returns NCHW."""
    N, C1, H1, W1 = x1_nchw.shape
    N2, C2, H2, W2 = x2_nchw.shape
    assert N2 == N and H2 == 2 * H1 and W2 == 2 * W1
    Cin = C1 + C2
    Cout = params['w1'].shape[-1]
    HW, H1W1 = H2 * W2, H1 * W1
    assert HW % 128 == 0 and W2 + 1 <= _IMG_PAD
    assert Cout % num_groups == 0

    # batch elements per grid step: wider lane dim amortizes per-step overhead
    Bt = 1
    for c in range(1, N + 1):
        if N % c == 0 and c * HW <= 2048:
            Bt = c
    L = Bt * HW

    bf16 = jnp.bfloat16
    x1f = x1_nchw.reshape(N, C1, H1W1).astype(bf16)
    x2f = x2_nchw.reshape(N, C2, HW).astype(bf16)

    # TODO(synk): at large UNet resolutions replace the dense kron upsample
    # operator with a separable (rows x cols) form and tile the grid over H
    # row-strips (1-row halo) to respect v7x's 64 MiB VMEM.
    ut = jnp.asarray(
        np.kron(_interp_matrix_np(H1, H2), _interp_matrix_np(W1, W2)).T, bf16)
    masks = jnp.asarray(_tap_masks_np(H2, W2, Bt), bf16)

    cpg = Cout // num_groups
    gi = np.arange(Cout)[:, None] // cpg
    grp = jnp.asarray((gi == gi.T).astype(np.float32) / (cpg * HW), jnp.float32)

    # conv weights (HWIO) -> (9, Cout, Cin): one (Cout, Cin) slab per tap
    w1m = jnp.asarray(params['w1'], jnp.float32).reshape(9, Cin, Cout).transpose(0, 2, 1).astype(bf16)
    w2m = jnp.asarray(params['w2'], jnp.float32).reshape(9, Cout, Cout).transpose(0, 2, 1).astype(bf16)
    col = lambda v: jnp.asarray(v, jnp.float32).reshape(-1, 1)

    cmax = max(Cin, Cout)
    kernel = functools.partial(_up_fused_kernel, Bt=Bt, H=H2, W=W2,
                               C1=C1, C2=C2, Cout=Cout)
    cst2 = lambda shape: pl.BlockSpec(shape, lambda n: (0, 0))
    cst3 = lambda shape: pl.BlockSpec(shape, lambda n: (0, 0, 0))

    # explicit VMEM budget: scratch + double-buffered blocks, with headroom
    est = (cmax * (2 * _IMG_PAD + L) * 2
           + 2 * (Bt * C1 * H1W1 * 2 + Bt * C2 * HW * 2 + Bt * Cout * HW * 4)
           + 2 * (H1W1 * HW * 2 + 9 * L * 2 + Cout * Cout * 4
                  + 9 * Cout * Cin * 2 + 9 * Cout * Cout * 2 + 6 * Cout * 4))
    vmem_limit = int(min(64 * 2 ** 20, max(4 * est, 32 * 2 ** 20)))

    out = pl.pallas_call(
        kernel,
        out_shape=jax.ShapeDtypeStruct((N, Cout, HW), jnp.float32),
        grid_spec=pltpu.PrefetchScalarGridSpec(
            num_scalar_prefetch=0,
            grid=(N // Bt,),
            in_specs=[
                pl.BlockSpec((Bt, C1, H1W1), lambda n: (n, 0, 0)),
                pl.BlockSpec((Bt, C2, HW), lambda n: (n, 0, 0)),
                cst2((H1W1, HW)),
                cst2((9, L)),
                cst2((Cout, Cout)),
                cst3((9, Cout, Cin)), cst2((Cout, 1)), cst2((Cout, 1)), cst2((Cout, 1)),
                cst3((9, Cout, Cout)), cst2((Cout, 1)), cst2((Cout, 1)), cst2((Cout, 1)),
            ],
            out_specs=pl.BlockSpec((Bt, Cout, HW), lambda n: (n, 0, 0)),
            scratch_shapes=[
                pltpu.VMEM((cmax, 2 * _IMG_PAD + L), jnp.bfloat16),  # padded flat images
            ]),
        compiler_params=pltpu.CompilerParams(
            dimension_semantics=("parallel",),
            vmem_limit_bytes=vmem_limit),
    )(x1f, x2f, ut, masks, grp,
      w1m, col(params['b1']), col(params['g1']), col(params['bt1']),
      w2m, col(params['b2']), col(params['g2']), col(params['bt2']))

    return out.reshape(N, Cout, H2, W2)


# ---------------------------------------------------------------------------
# Pure-JAX reference (for correctness check)
# ---------------------------------------------------------------------------
def _bilinear_up_x2_nhwc(x):
    N, H, W, C = x.shape
    Mh = jnp.asarray(_interp_matrix_np(H, 2 * H), jnp.float32)
    Mw = jnp.asarray(_interp_matrix_np(W, 2 * W), jnp.float32)
    y = jnp.einsum('oh,nhwc->nowc', Mh, x)
    y = jnp.einsum('pw,nowc->nopc', Mw, y)
    return y


def _ref_conv_gn_lrelu(x, w, b, gamma, beta, G, eps=1e-5):
    y = lax.conv_general_dilated(
        x, w, (1, 1), 'SAME', dimension_numbers=('NHWC', 'HWIO', 'NHWC'))
    y = y + b
    N, H, W, C = y.shape
    cpg = C // G
    yg = y.reshape(N, H * W, G, cpg)
    mu = jnp.mean(yg, axis=(1, 3), keepdims=True)
    var = jnp.mean((yg - mu) ** 2, axis=(1, 3), keepdims=True)
    yn = ((yg - mu) * lax.rsqrt(var + eps)).reshape(N, H, W, C)
    yn = yn * gamma + beta
    return jnp.where(yn > 0, yn, 0.2 * yn)


def ref_up_forward(x1_nchw, x2_nchw, params, num_groups):
    x1 = jnp.transpose(x1_nchw, (0, 2, 3, 1)).astype(jnp.float32)
    x2 = jnp.transpose(x2_nchw, (0, 2, 3, 1)).astype(jnp.float32)
    x1u = _bilinear_up_x2_nhwc(x1)
    x = jnp.concatenate([x2, x1u], axis=-1)
    h = _ref_conv_gn_lrelu(x, params['w1'], params['b1'],
                           params['g1'], params['bt1'], num_groups)
    y = _ref_conv_gn_lrelu(h, params['w2'], params['b2'],
                           params['g2'], params['bt2'], num_groups)
    return jnp.transpose(y, (0, 3, 1, 2))


# ---------------------------------------------------------------------------
if __name__ == "__main__":
    key = jax.random.PRNGKey(0)
    k = jax.random.split(key, 10)

    # Up(in_channels=8, out_channels=8): x1 is the low-res feature map,
    # x2 is the skip connection at the target resolution.
    N, C1, H1, W1 = 2, 4, 8, 8          # x1: (2,4,8,8)
    C2, H2, W2 = 4, 16, 16              # x2: (2,4,16,16)
    in_channels = C1 + C2               # 8 (after concat)
    out_channels = 8
    num_groups = out_channels // 4      # GroupNorm(C//4, C)

    x1 = jax.random.normal(k[0], (N, C1, H1, W1), jnp.float32)
    x2 = jax.random.normal(k[1], (N, C2, H2, W2), jnp.float32)

    params = dict(
        w1=0.15 * jax.random.normal(k[2], (3, 3, in_channels, out_channels), jnp.float32),
        b1=0.05 * jax.random.normal(k[3], (out_channels,), jnp.float32),
        g1=1.0 + 0.1 * jax.random.normal(k[4], (out_channels,), jnp.float32),
        bt1=0.05 * jax.random.normal(k[5], (out_channels,), jnp.float32),
        w2=0.15 * jax.random.normal(k[6], (3, 3, out_channels, out_channels), jnp.float32),
        b2=0.05 * jax.random.normal(k[7], (out_channels,), jnp.float32),
        g2=1.0 + 0.1 * jax.random.normal(k[8], (out_channels,), jnp.float32),
        bt2=0.05 * jax.random.normal(k[9], (out_channels,), jnp.float32),
    )

    out = jax.jit(functools.partial(up_forward, num_groups=num_groups))(x1, x2, params)
    out = jax.block_until_ready(out)

    ref = jax.block_until_ready(ref_up_forward(x1, x2, params, num_groups))
    # bf16 MXU operands -> looser tolerance than pure f32 (stats/GN stay f32)
    np.testing.assert_allclose(np.asarray(out), np.asarray(ref),
                               rtol=5e-2, atol=5e-2)

    assert out.shape == (N, out_channels, H2, W2)
    print("KERNEL_OK")
</pallas_src>

<mosaic_0001>
module attributes {stable_mosaic.version = 11 : i64} {
  func.func @_up_fused_kernel(%arg0: i32, %arg1: memref<2x4x64xbf16, #tpu.memory_space<vmem>>, %arg2: memref<2x4x256xbf16, #tpu.memory_space<vmem>>, %arg3: memref<64x256xbf16, #tpu.memory_space<vmem>>, %arg4: memref<9x512xbf16, #tpu.memory_space<vmem>>, %arg5: memref<8x8xf32, #tpu.memory_space<vmem>>, %arg6: memref<9x8x8xbf16, #tpu.memory_space<vmem>>, %arg7: memref<8x1xf32, #tpu.memory_space<vmem>>, %arg8: memref<8x1xf32, #tpu.memory_space<vmem>>, %arg9: memref<8x1xf32, #tpu.memory_space<vmem>>, %arg10: memref<9x8x8xbf16, #tpu.memory_space<vmem>>, %arg11: memref<8x1xf32, #tpu.memory_space<vmem>>, %arg12: memref<8x1xf32, #tpu.memory_space<vmem>>, %arg13: memref<8x1xf32, #tpu.memory_space<vmem>>, %arg14: memref<2x8x256xf32, #tpu.memory_space<vmem>>, %arg15: memref<8x768xbf16, #tpu.memory_space<vmem>>) attributes {dimension_semantics = [#tpu.dimension_semantics<parallel>], iteration_bounds = array<i64: 1>, scalar_prefetch = 0 : i64, scratch_operands = 1 : i64, tpu.core_type = #tpu.core_type<tc>, window_params = [{transform_indices = @transform_0, window_bounds = array<i64: 2, 4, 64>}, {transform_indices = @transform_1, window_bounds = array<i64: 2, 4, 256>}, {pipeline_mode = #tpu.pipeline_mode<synchronous>, transform_indices = @transform_2, window_bounds = array<i64: 64, 256>}, {pipeline_mode = #tpu.pipeline_mode<synchronous>, transform_indices = @transform_3, window_bounds = array<i64: 9, 512>}, {pipeline_mode = #tpu.pipeline_mode<synchronous>, transform_indices = @transform_4, window_bounds = array<i64: 8, 8>}, {pipeline_mode = #tpu.pipeline_mode<synchronous>, transform_indices = @transform_5, window_bounds = array<i64: 9, 8, 8>}, {pipeline_mode = #tpu.pipeline_mode<synchronous>, transform_indices = @transform_6, window_bounds = array<i64: 8, 1>}, {pipeline_mode = #tpu.pipeline_mode<synchronous>, transform_indices = @transform_7, window_bounds = array<i64: 8, 1>}, {pipeline_mode = #tpu.pipeline_mode<synchronous>, transform_indices = @transform_8, window_bounds = array<i64: 8, 1>}, {pipeline_mode = #tpu.pipeline_mode<synchronous>, transform_indices = @transform_9, window_bounds = array<i64: 9, 8, 8>}, {pipeline_mode = #tpu.pipeline_mode<synchronous>, transform_indices = @transform_10, window_bounds = array<i64: 8, 1>}, {pipeline_mode = #tpu.pipeline_mode<synchronous>, transform_indices = @transform_11, window_bounds = array<i64: 8, 1>}, {pipeline_mode = #tpu.pipeline_mode<synchronous>, transform_indices = @transform_12, window_bounds = array<i64: 8, 1>}, {transform_indices = @transform_13, window_bounds = array<i64: 2, 8, 256>}]} {
    %cst = arith.constant 0.000000e+00 : bf16
    %0 = vector.broadcast %cst : bf16 to vector<8x128xbf16>
    %c0 = arith.constant 0 : index
    %c0_0 = arith.constant 0 : index
    %1 = vector.load %arg15[%c0, %c0_0] : memref<8x768xbf16, #tpu.memory_space<vmem>>, vector<8x128xbf16>
    tpu.vector_store %arg15[%c0, %c0_0], %0 {strides = array<i32>} : memref<8x768xbf16, #tpu.memory_space<vmem>>, vector<8x128xbf16>,
    %c0_1 = arith.constant 0 : index
    %c640 = arith.constant 640 : index
    %2 = vector.load %arg15[%c0_1, %c640] : memref<8x768xbf16, #tpu.memory_space<vmem>>, vector<8x128xbf16>
    tpu.vector_store %arg15[%c0_1, %c640], %0 {strides = array<i32>} : memref<8x768xbf16, #tpu.memory_space<vmem>>, vector<8x128xbf16>,
    %c0_2 = arith.constant 0 : index
    %c0_3 = arith.constant 0 : index
    %c0_4 = arith.constant 0 : index
    %3 = vector.load %arg2[%c0_2, %c0_3, %c0_4] : memref<2x4x256xbf16, #tpu.memory_space<vmem>>, vector<1x4x256xbf16>
    %4 = vector.shape_cast %3 : vector<1x4x256xbf16> to vector<4x256xbf16>
    %c0_5 = arith.constant 0 : index
    %c128 = arith.constant 128 : index
    %5 = vector.load %arg15[%c0_5, %c128] : memref<8x768xbf16, #tpu.memory_space<vmem>>, vector<4x256xbf16>
    tpu.vector_store %arg15[%c0_5, %c128], %4 {strides = array<i32>} : memref<8x768xbf16, #tpu.memory_space<vmem>>, vector<4x256xbf16>,
    %c0_6 = arith.constant 0 : index
    %c0_7 = arith.constant 0 : index
    %c0_8 = arith.constant 0 : index
    %6 = vector.load %arg1[%c0_6, %c0_7, %c0_8] : memref<2x4x64xbf16, #tpu.memory_space<vmem>>, vector<1x4x64xbf16>
    %7 = vector.shape_cast %6 : vector<1x4x64xbf16> to vector<4x64xbf16>
    %c0_9 = arith.constant 0 : index
    %c0_10 = arith.constant 0 : index
    %8 = vector.load %arg3[%c0_9, %c0_10] : memref<64x256xbf16, #tpu.memory_space<vmem>>, vector<64x256xbf16>
    %cst_11 = arith.constant dense<0.000000e+00> : vector<4x256xf32>
    %9 = tpu.matmul %7, %8, %cst_11 {dimension_numbers = #tpu.dot_dimension_numbers<[1], [0], [0], [1], [0, 0, 1, 1], [], []>} : vector<4x64xbf16>, vector<64x256xbf16>, vector<4x256xf32> -> vector<4x256xf32>
    %10 = arith.truncf %9 : vector<4x256xf32> to vector<4x256xbf16>
    %c4 = arith.constant 4 : index
    %c128_12 = arith.constant 128 : index
    %11 = vector.load %arg15[%c4, %c128_12] : memref<8x768xbf16, #tpu.memory_space<vmem>>, vector<4x256xbf16>
    tpu.vector_store %arg15[%c4, %c128_12], %10 {strides = array<i32>} : memref<8x768xbf16, #tpu.memory_space<vmem>>, vector<4x256xbf16>,
    %c1 = arith.constant 1 : index
    %c0_13 = arith.constant 0 : index
    %c0_14 = arith.constant 0 : index
    %12 = vector.load %arg2[%c1, %c0_13, %c0_14] : memref<2x4x256xbf16, #tpu.memory_space<vmem>>, vector<1x4x256xbf16>
    %13 = vector.shape_cast %12 : vector<1x4x256xbf16> to vector<4x256xbf16>
    %c0_15 = arith.constant 0 : index
    %c384 = arith.constant 384 : index
    %14 = vector.load %arg15[%c0_15, %c384] : memref<8x768xbf16, #tpu.memory_space<vmem>>, vector<4x256xbf16>
    tpu.vector_store %arg15[%c0_15, %c384], %13 {strides = array<i32>} : memref<8x768xbf16, #tpu.memory_space<vmem>>, vector<4x256xbf16>,
    %c1_16 = arith.constant 1 : index
    %c0_17 = arith.constant 0 : index
    %c0_18 = arith.constant 0 : index
    %15 = vector.load %arg1[%c1_16, %c0_17, %c0_18] : memref<2x4x64xbf16, #tpu.memory_space<vmem>>, vector<1x4x64xbf16>
    %16 = vector.shape_cast %15 : vector<1x4x64xbf16> to vector<4x64xbf16>
    %c0_19 = arith.constant 0 : index
    %c0_20 = arith.constant 0 : index
    %17 = vector.load %arg3[%c0_19, %c0_20] : memref<64x256xbf16, #tpu.memory_space<vmem>>, vector<64x256xbf16>
    %cst_21 = arith.constant dense<0.000000e+00> : vector<4x256xf32>
    %18 = tpu.matmul %16, %17, %cst_21 {dimension_numbers = #tpu.dot_dimension_numbers<[1], [0], [0], [1], [0, 0, 1, 1], [], []>} : vector<4x64xbf16>, vector<64x256xbf16>, vector<4x256xf32> -> vector<4x256xf32>
    %19 = arith.truncf %18 : vector<4x256xf32> to vector<4x256xbf16>
    %c4_22 = arith.constant 4 : index
    %c384_23 = arith.constant 384 : index
    %20 = vector.load %arg15[%c4_22, %c384_23] : memref<8x768xbf16, #tpu.memory_space<vmem>>, vector<4x256xbf16>
    tpu.vector_store %arg15[%c4_22, %c384_23], %19 {strides = array<i32>} : memref<8x768xbf16, #tpu.memory_space<vmem>>, vector<4x256xbf16>,
    %c4_24 = arith.constant 4 : index
    %c0_25 = arith.constant 0 : index
    %c0_26 = arith.constant 0 : index
    %21 = vector.load %arg6[%c4_24, %c0_25, %c0_26] : memref<9x8x8xbf16, #tpu.memory_space<vmem>>, vector<1x8x8xbf16>
    %22 = vector.shape_cast %21 : vector<1x8x8xbf16> to vector<8x8xbf16>
    %c0_27 = arith.constant 0 : index
    %c128_28 = arith.constant 128 : index
    %23 = vector.load %arg15[%c0_27, %c128_28] : memref<8x768xbf16, #tpu.memory_space<vmem>>, vector<8x512xbf16>
    %cst_29 = arith.constant dense<0.000000e+00> : vector<8x512xf32>
    %24 = tpu.matmul %22, %23, %cst_29 {dimension_numbers = #tpu.dot_dimension_numbers<[1], [0], [0], [1], [0, 0, 1, 1], [], []>} : vector<8x8xbf16>, vector<8x512xbf16>, vector<8x512xf32> -> vector<8x512xf32>
    %c0_30 = arith.constant 0 : index
    %c0_31 = arith.constant 0 : index
    %25 = vector.load %arg7[%c0_30, %c0_31] : memref<8x1xf32, #tpu.memory_space<vmem>>, vector<8x1xf32>
    %26 = vector.broadcast %25 : vector<8x1xf32> to vector<8x512xf32>
    %27 = arith.addf %24, %26 : vector<8x512xf32>
    %c0_32 = arith.constant 0 : index
    %c111 = arith.constant 111 : index
    %28 = vector.load %arg15[%c0_32, %c111] : memref<8x768xbf16, #tpu.memory_space<vmem>>, vector<8x512xbf16>
    %c0_33 = arith.constant 0 : index
    %c0_34 = arith.constant 0 : index
    %29 = vector.load %arg4[%c0_33, %c0_34] : memref<9x512xbf16, #tpu.memory_space<vmem>>, vector<1x512xbf16>
    %30 = vector.broadcast %29 : vector<1x512xbf16> to vector<8x512xbf16>
    %31 = arith.mulf %28, %30 : vector<8x512xbf16>
    %c0_35 = arith.constant 0 : index
    %c0_36 = arith.constant 0 : index
    %c0_37 = arith.constant 0 : index
    %32 = vector.load %arg6[%c0_35, %c0_36, %c0_37] : memref<9x8x8xbf16, #tpu.memory_space<vmem>>, vector<1x8x8xbf16>
    %33 = vector.shape_cast %32 : vector<1x8x8xbf16> to vector<8x8xbf16>
    %cst_38 = arith.constant dense<0.000000e+00> : vector<8x512xf32>
    %34 = tpu.matmul %33, %31, %cst_38 {dimension_numbers = #tpu.dot_dimension_numbers<[1], [0], [0], [1], [0, 0, 1, 1], [], []>} : vector<8x8xbf16>, vector<8x512xbf16>, vector<8x512xf32> -> vector<8x512xf32>
    %35 = arith.addf %27, %34 : vector<8x512xf32>
    %c0_39 = arith.constant 0 : index
    %c112 = arith.constant 112 : index
    %36 = vector.load %arg15[%c0_39, %c112] : memref<8x768xbf16, #tpu.memory_space<vmem>>, vector<8x512xbf16>
    %c1_40 = arith.constant 1 : index
    %c0_41 = arith.constant 0 : index
    %37 = vector.load %arg4[%c1_40, %c0_41] : memref<9x512xbf16, #tpu.memory_space<vmem>>, vector<1x512xbf16>
    %38 = vector.broadcast %37 : vector<1x512xbf16> to vector<8x512xbf16>
    %39 = arith.mulf %36, %38 : vector<8x512xbf16>
    %c1_42 = arith.constant 1 : index
    %c0_43 = arith.constant 0 : index
    %c0_44 = arith.constant 0 : index
    %40 = vector.load %arg6[%c1_42, %c0_43, %c0_44] : memref<9x8x8xbf16, #tpu.memory_space<vmem>>, vector<1x8x8xbf16>
    %41 = vector.shape_cast %40 : vector<1x8x8xbf16> to vector<8x8xbf16>
    %cst_45 = arith.constant dense<0.000000e+00> : vector<8x512xf32>
    %42 = tpu.matmul %41, %39, %cst_45 {dimension_numbers = #tpu.dot_dimension_numbers<[1], [0], [0], [1], [0, 0, 1, 1], [], []>} : vector<8x8xbf16>, vector<8x512xbf16>, vector<8x512xf32> -> vector<8x512xf32>
    %43 = arith.addf %35, %42 : vector<8x512xf32>
    %c0_46 = arith.constant 0 : index
    %c113 = arith.constant 113 : index
    %44 = vector.load %arg15[%c0_46, %c113] : memref<8x768xbf16, #tpu.memory_space<vmem>>, vector<8x512xbf16>
    %c2 = arith.constant 2 : index
    %c0_47 = arith.constant 0 : index
    %45 = vector.load %arg4[%c2, %c0_47] : memref<9x512xbf16, #tpu.memory_space<vmem>>, vector<1x512xbf16>
    %46 = vector.broadcast %45 : vector<1x512xbf16> to vector<8x512xbf16>
    %47 = arith.mulf %44, %46 : vector<8x512xbf16>
    %c2_48 = arith.constant 2 : index
    %c0_49 = arith.constant 0 : index
    %c0_50 = arith.constant 0 : index
    %48 = vector.load %arg6[%c2_48, %c0_49, %c0_50] : memref<9x8x8xbf16, #tpu.memory_space<vmem>>, vector<1x8x8xbf16>
    %49 = vector.shape_cast %48 : vector<1x8x8xbf16> to vector<8x8xbf16>
    %cst_51 = arith.constant dense<0.000000e+00> : vector<8x512xf32>
    %50 = tpu.matmul %49, %47, %cst_51 {dimension_numbers = #tpu.dot_dimension_numbers<[1], [0], [0], [1], [0, 0, 1, 1], [], []>} : vector<8x8xbf16>, vector<8x512xbf16>, vector<8x512xf32> -> vector<8x512xf32>
    %51 = arith.addf %43, %50 : vector<8x512xf32>
    %c0_52 = arith.constant 0 : index
    %c127 = arith.constant 127 : index
    %52 = vector.load %arg15[%c0_52, %c127] : memref<8x768xbf16, #tpu.memory_space<vmem>>, vector<8x512xbf16>
    %c3 = arith.constant 3 : index
    %c0_53 = arith.constant 0 : index
    %53 = vector.load %arg4[%c3, %c0_53] : memref<9x512xbf16, #tpu.memory_space<vmem>>, vector<1x512xbf16>
    %54 = vector.broadcast %53 : vector<1x512xbf16> to vector<8x512xbf16>
    %55 = arith.mulf %52, %54 : vector<8x512xbf16>
    %c3_54 = arith.constant 3 : index
    %c0_55 = arith.constant 0 : index
    %c0_56 = arith.constant 0 : index
    %56 = vector.load %arg6[%c3_54, %c0_55, %c0_56] : memref<9x8x8xbf16, #tpu.memory_space<vmem>>, vector<1x8x8xbf16>
    %57 = vector.shape_cast %56 : vector<1x8x8xbf16> to vector<8x8xbf16>
    %cst_57 = arith.constant dense<0.000000e+00> : vector<8x512xf32>
    %58 = tpu.matmul %57, %55, %cst_57 {dimension_numbers = #tpu.dot_dimension_numbers<[1], [0], [0], [1], [0, 0, 1, 1], [], []>} : vector<8x8xbf16>, vector<8x512xbf16>, vector<8x512xf32> -> vector<8x512xf32>
    %59 = arith.addf %51, %58 : vector<8x512xf32>
    %c0_58 = arith.constant 0 : index
    %c129 = arith.constant 129 : index
    %60 = vector.load %arg15[%c0_58, %c129] : memref<8x768xbf16, #tpu.memory_space<vmem>>, vector<8x512xbf16>
    %c5 = arith.constant 5 : index
    %c0_59 = arith.constant 0 : index
    %61 = vector.load %arg4[%c5, %c0_59] : memref<9x512xbf16, #tpu.memory_space<vmem>>, vector<1x512xbf16>
    %62 = vector.broadcast %61 : vector<1x512xbf16> to vector<8x512xbf16>
    %63 = arith.mulf %60, %62 : vector<8x512xbf16>
    %c5_60 = arith.constant 5 : index
    %c0_61 = arith.constant 0 : index
    %c0_62 = arith.constant 0 : index
    %64 = vector.load %arg6[%c5_60, %c0_61, %c0_62] : memref<9x8x8xbf16, #tpu.memory_space<vmem>>, vector<1x8x8xbf16>
    %65 = vector.shape_cast %64 : vector<1x8x8xbf16> to vector<8x8xbf16>
    %cst_63 = arith.constant dense<0.000000e+00> : vector<8x512xf32>
    %66 = tpu.matmul %65, %63, %cst_63 {dimension_numbers = #tpu.dot_dimension_numbers<[1], [0], [0], [1], [0, 0, 1, 1], [], []>} : vector<8x8xbf16>, vector<8x512xbf16>, vector<8x512xf32> -> vector<8x512xf32>
    %67 = arith.addf %59, %66 : vector<8x512xf32>
    %c0_64 = arith.constant 0 : index
    %c143 = arith.constant 143 : index
    %68 = vector.load %arg15[%c0_64, %c143] : memref<8x768xbf16, #tpu.memory_space<vmem>>, vector<8x512xbf16>
    %c6 = arith.constant 6 : index
    %c0_65 = arith.constant 0 : index
    %69 = vector.load %arg4[%c6, %c0_65] : memref<9x512xbf16, #tpu.memory_space<vmem>>, vector<1x512xbf16>
    %70 = vector.broadcast %69 : vector<1x512xbf16> to vector<8x512xbf16>
    %71 = arith.mulf %68, %70 : vector<8x512xbf16>
    %c6_66 = arith.constant 6 : index
    %c0_67 = arith.constant 0 : index
    %c0_68 = arith.constant 0 : index
    %72 = vector.load %arg6[%c6_66, %c0_67, %c0_68] : memref<9x8x8xbf16, #tpu.memory_space<vmem>>, vector<1x8x8xbf16>
    %73 = vector.shape_cast %72 : vector<1x8x8xbf16> to vector<8x8xbf16>
    %cst_69 = arith.constant dense<0.000000e+00> : vector<8x512xf32>
    %74 = tpu.matmul %73, %71, %cst_69 {dimension_numbers = #tpu.dot_dimension_numbers<[1], [0], [0], [1], [0, 0, 1, 1], [], []>} : vector<8x8xbf16>, vector<8x512xbf16>, vector<8x512xf32> -> vector<8x512xf32>
    %75 = arith.addf %67, %74 : vector<8x512xf32>
    %c0_70 = arith.constant 0 : index
    %c144 = arith.constant 144 : index
    %76 = vector.load %arg15[%c0_70, %c144] : memref<8x768xbf16, #tpu.memory_space<vmem>>, vector<8x512xbf16>
    %c7 = arith.constant 7 : index
    %c0_71 = arith.constant 0 : index
    %77 = vector.load %arg4[%c7, %c0_71] : memref<9x512xbf16, #tpu.memory_space<vmem>>, vector<1x512xbf16>
    %78 = vector.broadcast %77 : vector<1x512xbf16> to vector<8x512xbf16>
    %79 = arith.mulf %76, %78 : vector<8x512xbf16>
    %c7_72 = arith.constant 7 : index
    %c0_73 = arith.constant 0 : index
    %c0_74 = arith.constant 0 : index
    %80 = vector.load %arg6[%c7_72, %c0_73, %c0_74] : memref<9x8x8xbf16, #tpu.memory_space<vmem>>, vector<1x8x8xbf16>
    %81 = vector.shape_cast %80 : vector<1x8x8xbf16> to vector<8x8xbf16>
    %cst_75 = arith.constant dense<0.000000e+00> : vector<8x512xf32>
    %82 = tpu.matmul %81, %79, %cst_75 {dimension_numbers = #tpu.dot_dimension_numbers<[1], [0], [0], [1], [0, 0, 1, 1], [], []>} : vector<8x8xbf16>, vector<8x512xbf16>, vector<8x512xf32> -> vector<8x512xf32>
    %83 = arith.addf %75, %82 : vector<8x512xf32>
    %c0_76 = arith.constant 0 : index
    %c145 = arith.constant 145 : index
    %84 = vector.load %arg15[%c0_76, %c145] : memref<8x768xbf16, #tpu.memory_space<vmem>>, vector<8x512xbf16>
    %c8 = arith.constant 8 : index
    %c0_77 = arith.constant 0 : index
    %85 = vector.load %arg4[%c8, %c0_77] : memref<9x512xbf16, #tpu.memory_space<vmem>>, vector<1x512xbf16>
    %86 = vector.broadcast %85 : vector<1x512xbf16> to vector<8x512xbf16>
    %87 = arith.mulf %84, %86 : vector<8x512xbf16>
    %c8_78 = arith.constant 8 : index
    %c0_79 = arith.constant 0 : index
    %c0_80 = arith.constant 0 : index
    %88 = vector.load %arg6[%c8_78, %c0_79, %c0_80] : memref<9x8x8xbf16, #tpu.memory_space<vmem>>, vector<1x8x8xbf16>
    %89 = vector.shape_cast %88 : vector<1x8x8xbf16> to vector<8x8xbf16>
    %cst_81 = arith.constant dense<0.000000e+00> : vector<8x512xf32>
    %90 = tpu.matmul %89, %87, %cst_81 {dimension_numbers = #tpu.dot_dimension_numbers<[1], [0], [0], [1], [0, 0, 1, 1], [], []>} : vector<8x8xbf16>, vector<8x512xbf16>, vector<8x512xf32> -> vector<8x512xf32>
    %91 = arith.addf %83, %90 : vector<8x512xf32>
    %92 = vector.extract_strided_slice %91 {offsets = [0, 0], sizes = [8, 256], strides = [1, 1]} : vector<8x512xf32> to vector<8x256xf32>
    %93 = vector.shape_cast %92 : vector<8x256xf32> to vector<8x2x128xf32>
    %cst_82 = arith.constant dense<0.000000e+00> : vector<8x128xf32>
    %94 = vector.multi_reduction <add>, %93, %cst_82 [1] : vector<8x2x128xf32> to vector<8x128xf32>
    %c0_83 = arith.constant 0 : index
    %c0_84 = arith.constant 0 : index
    %95 = vector.load %arg5[%c0_83, %c0_84] : memref<8x8xf32, #tpu.memory_space<vmem>>, vector<8x8xf32>
    %cst_85 = arith.constant dense<0.000000e+00> : vector<8x128xf32>
    %96 = tpu.matmul %95, %94, %cst_85 {dimension_numbers = #tpu.dot_dimension_numbers<[1], [0], [0], [1], [0, 0, 1, 1], [], []>} : vector<8x8xf32>, vector<8x128xf32>, vector<8x128xf32> -> vector<8x128xf32>
    %cst_86 = arith.constant dense<0.000000e+00> : vector<8xf32>
    %97 = vector.multi_reduction <add>, %96, %cst_86 [1] : vector<8x128xf32> to vector<8xf32>
    %98 = vector.shape_cast %97 : vector<8xf32> to vector<8x1xf32>
    %99 = vector.broadcast %98 : vector<8x1xf32> to vector<8x256xf32>
    %100 = arith.subf %92, %99 : vector<8x256xf32>
    %101 = arith.mulf %100, %100 : vector<8x256xf32>
    %102 = vector.shape_cast %101 : vector<8x256xf32> to vector<8x2x128xf32>
    %cst_87 = arith.constant dense<0.000000e+00> : vector<8x128xf32>
    %103 = vector.multi_reduction <add>, %102, %cst_87 [1] : vector<8x2x128xf32> to vector<8x128xf32>
    %c0_88 = arith.constant 0 : index
    %c0_89 = arith.constant 0 : index
    %104 = vector.load %arg5[%c0_88, %c0_89] : memref<8x8xf32, #tpu.memory_space<vmem>>, vector<8x8xf32>
    %cst_90 = arith.constant dense<0.000000e+00> : vector<8x128xf32>
    %105 = tpu.matmul %104, %103, %cst_90 {dimension_numbers = #tpu.dot_dimension_numbers<[1], [0], [0], [1], [0, 0, 1, 1], [], []>} : vector<8x8xf32>, vector<8x128xf32>, vector<8x128xf32> -> vector<8x128xf32>
    %cst_91 = arith.constant dense<0.000000e+00> : vector<8xf32>
    %106 = vector.multi_reduction <add>, %105, %cst_91 [1] : vector<8x128xf32> to vector<8xf32>
    %107 = vector.shape_cast %106 : vector<8xf32> to vector<8x1xf32>
    %cst_92 = arith.constant 9.99999974E-6 : f32
    %108 = vector.broadcast %cst_92 : f32 to vector<8x1xf32>
    %109 = arith.addf %107, %108 : vector<8x1xf32>
    %110 = math.rsqrt %109 : vector<8x1xf32>
    %c0_93 = arith.constant 0 : index
    %c0_94 = arith.constant 0 : index
    %111 = vector.load %arg8[%c0_93, %c0_94] : memref<8x1xf32, #tpu.memory_space<vmem>>, vector<8x1xf32>
    %112 = arith.mulf %110, %111 : vector<8x1xf32>
    %113 = vector.broadcast %112 : vector<8x1xf32> to vector<8x256xf32>
    %114 = arith.mulf %100, %113 : vector<8x256xf32>
    %c0_95 = arith.constant 0 : index
    %c0_96 = arith.constant 0 : index
    %115 = vector.load %arg9[%c0_95, %c0_96] : memref<8x1xf32, #tpu.memory_space<vmem>>, vector<8x1xf32>
    %116 = vector.broadcast %115 : vector<8x1xf32> to vector<8x256xf32>
    %117 = arith.addf %114, %116 : vector<8x256xf32>
    %cst_97 = arith.constant 0.000000e+00 : f32
    %118 = vector.broadcast %cst_97 : f32 to vector<8x256xf32>
    %119 = arith.cmpf ogt, %117, %118 : vector<8x256xf32>
    %cst_98 = arith.constant 2.000000e-01 : f32
    %120 = vector.broadcast %cst_98 : f32 to vector<8x256xf32>
    %121 = arith.mulf %120, %117 : vector<8x256xf32>
    %122 = arith.select %119, %117, %121 : vector<8x256xi1>, vector<8x256xf32>
    %123 = arith.truncf %122 : vector<8x256xf32> to vector<8x256xbf16>
    %c0_99 = arith.constant 0 : index
    %c128_100 = arith.constant 128 : index
    %124 = vector.load %arg15[%c0_99, %c128_100] : memref<8x768xbf16, #tpu.memory_space<vmem>>, vector<8x256xbf16>
    tpu.vector_store %arg15[%c0_99, %c128_100], %123 {strides = array<i32>} : memref<8x768xbf16, #tpu.memory_space<vmem>>, vector<8x256xbf16>,
    %125 = vector.extract_strided_slice %91 {offsets = [0, 256], sizes = [8, 256], strides = [1, 1]} : vector<8x512xf32> to vector<8x256xf32>
    %126 = vector.shape_cast %125 : vector<8x256xf32> to vector<8x2x128xf32>
    %cst_101 = arith.constant dense<0.000000e+00> : vector<8x128xf32>
    %127 = vector.multi_reduction <add>, %126, %cst_101 [1] : vector<8x2x128xf32> to vector<8x128xf32>
    %c0_102 = arith.constant 0 : index
    %c0_103 = arith.constant 0 : index
    %128 = vector.load %arg5[%c0_102, %c0_103] : memref<8x8xf32, #tpu.memory_space<vmem>>, vector<8x8xf32>
    %cst_104 = arith.constant dense<0.000000e+00> : vector<8x128xf32>
    %129 = tpu.matmul %128, %127, %cst_104 {dimension_numbers = #tpu.dot_dimension_numbers<[1], [0], [0], [1], [0, 0, 1, 1], [], []>} : vector<8x8xf32>, vector<8x128xf32>, vector<8x128xf32> -> vector<8x128xf32>
    %cst_105 = arith.constant dense<0.000000e+00> : vector<8xf32>
    %130 = vector.multi_reduction <add>, %129, %cst_105 [1] : vector<8x128xf32> to vector<8xf32>
    %131 = vector.shape_cast %130 : vector<8xf32> to vector<8x1xf32>
    %132 = vector.broadcast %131 : vector<8x1xf32> to vector<8x256xf32>
    %133 = arith.subf %125, %132 : vector<8x256xf32>
    %134 = arith.mulf %133, %133 : vector<8x256xf32>
    %135 = vector.shape_cast %134 : vector<8x256xf32> to vector<8x2x128xf32>
    %cst_106 = arith.constant dense<0.000000e+00> : vector<8x128xf32>
    %136 = vector.multi_reduction <add>, %135, %cst_106 [1] : vector<8x2x128xf32> to vector<8x128xf32>
    %c0_107 = arith.constant 0 : index
    %c0_108 = arith.constant 0 : index
    %137 = vector.load %arg5[%c0_107, %c0_108] : memref<8x8xf32, #tpu.memory_space<vmem>>, vector<8x8xf32>
    %cst_109 = arith.constant dense<0.000000e+00> : vector<8x128xf32>
    %138 = tpu.matmul %137, %136, %cst_109 {dimension_numbers = #tpu.dot_dimension_numbers<[1], [0], [0], [1], [0, 0, 1, 1], [], []>} : vector<8x8xf32>, vector<8x128xf32>, vector<8x128xf32> -> vector<8x128xf32>
    %cst_110 = arith.constant dense<0.000000e+00> : vector<8xf32>
    %139 = vector.multi_reduction <add>, %138, %cst_110 [1] : vector<8x128xf32> to vector<8xf32>
    %140 = vector.shape_cast %139 : vector<8xf32> to vector<8x1xf32>
    %cst_111 = arith.constant 9.99999974E-6 : f32
    %141 = vector.broadcast %cst_111 : f32 to vector<8x1xf32>
    %142 = arith.addf %140, %141 : vector<8x1xf32>
    %143 = math.rsqrt %142 : vector<8x1xf32>
    %c0_112 = arith.constant 0 : index
    %c0_113 = arith.constant 0 : index
    %144 = vector.load %arg8[%c0_112, %c0_113] : memref<8x1xf32, #tpu.memory_space<vmem>>, vector<8x1xf32>
    %145 = arith.mulf %143, %144 : vector<8x1xf32>
    %146 = vector.broadcast %145 : vector<8x1xf32> to vector<8x256xf32>
    %147 = arith.mulf %133, %146 : vector<8x256xf32>
    %c0_114 = arith.constant 0 : index
    %c0_115 = arith.constant 0 : index
    %148 = vector.load %arg9[%c0_114, %c0_115] : memref<8x1xf32, #tpu.memory_space<vmem>>, vector<8x1xf32>
    %149 = vector.broadcast %148 : vector<8x1xf32> to vector<8x256xf32>
    %150 = arith.addf %147, %149 : vector<8x256xf32>
    %cst_116 = arith.constant 0.000000e+00 : f32
    %151 = vector.broadcast %cst_116 : f32 to vector<8x256xf32>
    %152 = arith.cmpf ogt, %150, %151 : vector<8x256xf32>
    %cst_117 = arith.constant 2.000000e-01 : f32
    %153 = vector.broadcast %cst_117 : f32 to vector<8x256xf32>
    %154 = arith.mulf %153, %150 : vector<8x256xf32>
    %155 = arith.select %152, %150, %154 : vector<8x256xi1>, vector<8x256xf32>
    %156 = arith.truncf %155 : vector<8x256xf32> to vector<8x256xbf16>
    %c0_118 = arith.constant 0 : index
    %c384_119 = arith.constant 384 : index
    %157 = vector.load %arg15[%c0_118, %c384_119] : memref<8x768xbf16, #tpu.memory_space<vmem>>, vector<8x256xbf16>
    tpu.vector_store %arg15[%c0_118, %c384_119], %156 {strides = array<i32>} : memref<8x768xbf16, #tpu.memory_space<vmem>>, vector<8x256xbf16>,
    %c4_120 = arith.constant 4 : index
    %c0_121 = arith.constant 0 : index
    %c0_122 = arith.constant 0 : index
    %158 = vector.load %arg10[%c4_120, %c0_121, %c0_122] : memref<9x8x8xbf16, #tpu.memory_space<vmem>>, vector<1x8x8xbf16>
    %159 = vector.shape_cast %158 : vector<1x8x8xbf16> to vector<8x8xbf16>
    %c0_123 = arith.constant 0 : index
    %c128_124 = arith.constant 128 : index
    %160 = vector.load %arg15[%c0_123, %c128_124] : memref<8x768xbf16, #tpu.memory_space<vmem>>, vector<8x512xbf16>
    %cst_125 = arith.constant dense<0.000000e+00> : vector<8x512xf32>
    %161 = tpu.matmul %159, %160, %cst_125 {dimension_numbers = #tpu.dot_dimension_numbers<[1], [0], [0], [1], [0, 0, 1, 1], [], []>} : vector<8x8xbf16>, vector<8x512xbf16>, vector<8x512xf32> -> vector<8x512xf32>
    %c0_126 = arith.constant 0 : index
    %c0_127 = arith.constant 0 : index
    %162 = vector.load %arg11[%c0_126, %c0_127] : memref<8x1xf32, #tpu.memory_space<vmem>>, vector<8x1xf32>
    %163 = vector.broadcast %162 : vector<8x1xf32> to vector<8x512xf32>
    %164 = arith.addf %161, %163 : vector<8x512xf32>
    %c0_128 = arith.constant 0 : index
    %c111_129 = arith.constant 111 : index
    %165 = vector.load %arg15[%c0_128, %c111_129] : memref<8x768xbf16, #tpu.memory_space<vmem>>, vector<8x512xbf16>
    %c0_130 = arith.constant 0 : index
    %c0_131 = arith.constant 0 : index
    %166 = vector.load %arg4[%c0_130, %c0_131] : memref<9x512xbf16, #tpu.memory_space<vmem>>, vector<1x512xbf16>
    %167 = vector.broadcast %166 : vector<1x512xbf16> to vector<8x512xbf16>
    %168 = arith.mulf %165, %167 : vector<8x512xbf16>
    %c0_132 = arith.constant 0 : index
    %c0_133 = arith.constant 0 : index
    %c0_134 = arith.constant 0 : index
    %169 = vector.load %arg10[%c0_132, %c0_133, %c0_134] : memref<9x8x8xbf16, #tpu.memory_space<vmem>>, vector<1x8x8xbf16>
    %170 = vector.shape_cast %169 : vector<1x8x8xbf16> to vector<8x8xbf16>
    %cst_135 = arith.constant dense<0.000000e+00> : vector<8x512xf32>
    %171 = tpu.matmul %170, %168, %cst_135 {dimension_numbers = #tpu.dot_dimension_numbers<[1], [0], [0], [1], [0, 0, 1, 1], [], []>} : vector<8x8xbf16>, vector<8x512xbf16>, vector<8x512xf32> -> vector<8x512xf32>
    %172 = arith.addf %164, %171 : vector<8x512xf32>
    %c0_136 = arith.constant 0 : index
    %c112_137 = arith.constant 112 : index
    %173 = vector.load %arg15[%c0_136, %c112_137] : memref<8x768xbf16, #tpu.memory_space<vmem>>, vector<8x512xbf16>
    %c1_138 = arith.constant 1 : index
    %c0_139 = arith.constant 0 : index
    %174 = vector.load %arg4[%c1_138, %c0_139] : memref<9x512xbf16, #tpu.memory_space<vmem>>, vector<1x512xbf16>
    %175 = vector.broadcast %174 : vector<1x512xbf16> to vector<8x512xbf16>
    %176 = arith.mulf %173, %175 : vector<8x512xbf16>
    %c1_140 = arith.constant 1 : index
    %c0_141 = arith.constant 0 : index
    %c0_142 = arith.constant 0 : index
    %177 = vector.load %arg10[%c1_140, %c0_141, %c0_142] : memref<9x8x8xbf16, #tpu.memory_space<vmem>>, vector<1x8x8xbf16>
    %178 = vector.shape_cast %177 : vector<1x8x8xbf16> to vector<8x8xbf16>
    %cst_143 = arith.constant dense<0.000000e+00> : vector<8x512xf32>
    %179 = tpu.matmul %178, %176, %cst_143 {dimension_numbers = #tpu.dot_dimension_numbers<[1], [0], [0], [1], [0, 0, 1, 1], [], []>} : vector<8x8xbf16>, vector<8x512xbf16>, vector<8x512xf32> -> vector<8x512xf32>
    %180 = arith.addf %172, %179 : vector<8x512xf32>
    %c0_144 = arith.constant 0 : index
    %c113_145 = arith.constant 113 : index
    %181 = vector.load %arg15[%c0_144, %c113_145] : memref<8x768xbf16, #tpu.memory_space<vmem>>, vector<8x512xbf16>
    %c2_146 = arith.constant 2 : index
    %c0_147 = arith.constant 0 : index
    %182 = vector.load %arg4[%c2_146, %c0_147] : memref<9x512xbf16, #tpu.memory_space<vmem>>, vector<1x512xbf16>
    %183 = vector.broadcast %182 : vector<1x512xbf16> to vector<8x512xbf16>
    %184 = arith.mulf %181, %183 : vector<8x512xbf16>
    %c2_148 = arith.constant 2 : index
    %c0_149 = arith.constant 0 : index
    %c0_150 = arith.constant 0 : index
    %185 = vector.load %arg10[%c2_148, %c0_149, %c0_150] : memref<9x8x8xbf16, #tpu.memory_space<vmem>>, vector<1x8x8xbf16>
    %186 = vector.shape_cast %185 : vector<1x8x8xbf16> to vector<8x8xbf16>
    %cst_151 = arith.constant dense<0.000000e+00> : vector<8x512xf32>
    %187 = tpu.matmul %186, %184, %cst_151 {dimension_numbers = #tpu.dot_dimension_numbers<[1], [0], [0], [1], [0, 0, 1, 1], [], []>} : vector<8x8xbf16>, vector<8x512xbf16>, vector<8x512xf32> -> vector<8x512xf32>
    %188 = arith.addf %180, %187 : vector<8x512xf32>
    %c0_152 = arith.constant 0 : index
    %c127_153 = arith.constant 127 : index
    %189 = vector.load %arg15[%c0_152, %c127_153] : memref<8x768xbf16, #tpu.memory_space<vmem>>, vector<8x512xbf16>
    %c3_154 = arith.constant 3 : index
    %c0_155 = arith.constant 0 : index
    %190 = vector.load %arg4[%c3_154, %c0_155] : memref<9x512xbf16, #tpu.memory_space<vmem>>, vector<1x512xbf16>
    %191 = vector.broadcast %190 : vector<1x512xbf16> to vector<8x512xbf16>
    %192 = arith.mulf %189, %191 : vector<8x512xbf16>
    %c3_156 = arith.constant 3 : index
    %c0_157 = arith.constant 0 : index
    %c0_158 = arith.constant 0 : index
    %193 = vector.load %arg10[%c3_156, %c0_157, %c0_158] : memref<9x8x8xbf16, #tpu.memory_space<vmem>>, vector<1x8x8xbf16>
    %194 = vector.shape_cast %193 : vector<1x8x8xbf16> to vector<8x8xbf16>
    %cst_159 = arith.constant dense<0.000000e+00> : vector<8x512xf32>
    %195 = tpu.matmul %194, %192, %cst_159 {dimension_numbers = #tpu.dot_dimension_numbers<[1], [0], [0], [1], [0, 0, 1, 1], [], []>} : vector<8x8xbf16>, vector<8x512xbf16>, vector<8x512xf32> -> vector<8x512xf32>
    %196 = arith.addf %188, %195 : vector<8x512xf32>
    %c0_160 = arith.constant 0 : index
    %c129_161 = arith.constant 129 : index
    %197 = vector.load %arg15[%c0_160, %c129_161] : memref<8x768xbf16, #tpu.memory_space<vmem>>, vector<8x512xbf16>
    %c5_162 = arith.constant 5 : index
    %c0_163 = arith.constant 0 : index
    %198 = vector.load %arg4[%c5_162, %c0_163] : memref<9x512xbf16, #tpu.memory_space<vmem>>, vector<1x512xbf16>
    %199 = vector.broadcast %198 : vector<1x512xbf16> to vector<8x512xbf16>
    %200 = arith.mulf %197, %199 : vector<8x512xbf16>
    %c5_164 = arith.constant 5 : index
    %c0_165 = arith.constant 0 : index
    %c0_166 = arith.constant 0 : index
    %201 = vector.load %arg10[%c5_164, %c0_165, %c0_166] : memref<9x8x8xbf16, #tpu.memory_space<vmem>>, vector<1x8x8xbf16>
    %202 = vector.shape_cast %201 : vector<1x8x8xbf16> to vector<8x8xbf16>
    %cst_167 = arith.constant dense<0.000000e+00> : vector<8x512xf32>
    %203 = tpu.matmul %202, %200, %cst_167 {dimension_numbers = #tpu.dot_dimension_numbers<[1], [0], [0], [1], [0, 0, 1, 1], [], []>} : vector<8x8xbf16>, vector<8x512xbf16>, vector<8x512xf32> -> vector<8x512xf32>
    %204 = arith.addf %196, %203 : vector<8x512xf32>
    %c0_168 = arith.constant 0 : index
    %c143_169 = arith.constant 143 : index
    %205 = vector.load %arg15[%c0_168, %c143_169] : memref<8x768xbf16, #tpu.memory_space<vmem>>, vector<8x512xbf16>
    %c6_170 = arith.constant 6 : index
    %c0_171 = arith.constant 0 : index
    %206 = vector.load %arg4[%c6_170, %c0_171] : memref<9x512xbf16, #tpu.memory_space<vmem>>, vector<1x512xbf16>
    %207 = vector.broadcast %206 : vector<1x512xbf16> to vector<8x512xbf16>
    %208 = arith.mulf %205, %207 : vector<8x512xbf16>
    %c6_172 = arith.constant 6 : index
    %c0_173 = arith.constant 0 : index
    %c0_174 = arith.constant 0 : index
    %209 = vector.load %arg10[%c6_172, %c0_173, %c0_174] : memref<9x8x8xbf16, #tpu.memory_space<vmem>>, vector<1x8x8xbf16>
    %210 = vector.shape_cast %209 : vector<1x8x8xbf16> to vector<8x8xbf16>
    %cst_175 = arith.constant dense<0.000000e+00> : vector<8x512xf32>
    %211 = tpu.matmul %210, %208, %cst_175 {dimension_numbers = #tpu.dot_dimension_numbers<[1], [0], [0], [1], [0, 0, 1, 1], [], []>} : vector<8x8xbf16>, vector<8x512xbf16>, vector<8x512xf32> -> vector<8x512xf32>
    %212 = arith.addf %204, %211 : vector<8x512xf32>
    %c0_176 = arith.constant 0 : index
    %c144_177 = arith.constant 144 : index
    %213 = vector.load %arg15[%c0_176, %c144_177] : memref<8x768xbf16, #tpu.memory_space<vmem>>, vector<8x512xbf16>
    %c7_178 = arith.constant 7 : index
    %c0_179 = arith.constant 0 : index
    %214 = vector.load %arg4[%c7_178, %c0_179] : memref<9x512xbf16, #tpu.memory_space<vmem>>, vector<1x512xbf16>
    %215 = vector.broadcast %214 : vector<1x512xbf16> to vector<8x512xbf16>
    %216 = arith.mulf %213, %215 : vector<8x512xbf16>
    %c7_180 = arith.constant 7 : index
    %c0_181 = arith.constant 0 : index
    %c0_182 = arith.constant 0 : index
    %217 = vector.load %arg10[%c7_180, %c0_181, %c0_182] : memref<9x8x8xbf16, #tpu.memory_space<vmem>>, vector<1x8x8xbf16>
    %218 = vector.shape_cast %217 : vector<1x8x8xbf16> to vector<8x8xbf16>
    %cst_183 = arith.constant dense<0.000000e+00> : vector<8x512xf32>
    %219 = tpu.matmul %218, %216, %cst_183 {dimension_numbers = #tpu.dot_dimension_numbers<[1], [0], [0], [1], [0, 0, 1, 1], [], []>} : vector<8x8xbf16>, vector<8x512xbf16>, vector<8x512xf32> -> vector<8x512xf32>
    %220 = arith.addf %212, %219 : vector<8x512xf32>
    %c0_184 = arith.constant 0 : index
    %c145_185 = arith.constant 145 : index
    %221 = vector.load %arg15[%c0_184, %c145_185] : memref<8x768xbf16, #tpu.memory_space<vmem>>, vector<8x512xbf16>
    %c8_186 = arith.constant 8 : index
    %c0_187 = arith.constant 0 : index
    %222 = vector.load %arg4[%c8_186, %c0_187] : memref<9x512xbf16, #tpu.memory_space<vmem>>, vector<1x512xbf16>
    %223 = vector.broadcast %222 : vector<1x512xbf16> to vector<8x512xbf16>
    %224 = arith.mulf %221, %223 : vector<8x512xbf16>
    %c8_188 = arith.constant 8 : index
    %c0_189 = arith.constant 0 : index
    %c0_190 = arith.constant 0 : index
    %225 = vector.load %arg10[%c8_188, %c0_189, %c0_190] : memref<9x8x8xbf16, #tpu.memory_space<vmem>>, vector<1x8x8xbf16>
    %226 = vector.shape_cast %225 : vector<1x8x8xbf16> to vector<8x8xbf16>
    %cst_191 = arith.constant dense<0.000000e+00> : vector<8x512xf32>
    %227 = tpu.matmul %226, %224, %cst_191 {dimension_numbers = #tpu.dot_dimension_numbers<[1], [0], [0], [1], [0, 0, 1, 1], [], []>} : vector<8x8xbf16>, vector<8x512xbf16>, vector<8x512xf32> -> vector<8x512xf32>
    %228 = arith.addf %220, %227 : vector<8x512xf32>
    %229 = vector.extract_strided_slice %228 {offsets = [0, 0], sizes = [8, 256], strides = [1, 1]} : vector<8x512xf32> to vector<8x256xf32>
    %230 = vector.shape_cast %229 : vector<8x256xf32> to vector<8x2x128xf32>
    %cst_192 = arith.constant dense<0.000000e+00> : vector<8x128xf32>
    %231 = vector.multi_reduction <add>, %230, %cst_192 [1] : vector<8x2x128xf32> to vector<8x128xf32>
    %c0_193 = arith.constant 0 : index
    %c0_194 = arith.constant 0 : index
    %232 = vector.load %arg5[%c0_193, %c0_194] : memref<8x8xf32, #tpu.memory_space<vmem>>, vector<8x8xf32>
    %cst_195 = arith.constant dense<0.000000e+00> : vector<8x128xf32>
    %233 = tpu.matmul %232, %231, %cst_195 {dimension_numbers = #tpu.dot_dimension_numbers<[1], [0], [0], [1], [0, 0, 1, 1], [], []>} : vector<8x8xf32>, vector<8x128xf32>, vector<8x128xf32> -> vector<8x128xf32>
    %cst_196 = arith.constant dense<0.000000e+00> : vector<8xf32>
    %234 = vector.multi_reduction <add>, %233, %cst_196 [1] : vector<8x128xf32> to vector<8xf32>
    %235 = vector.shape_cast %234 : vector<8xf32> to vector<8x1xf32>
    %236 = vector.broadcast %235 : vector<8x1xf32> to vector<8x256xf32>
    %237 = arith.subf %229, %236 : vector<8x256xf32>
    %238 = arith.mulf %237, %237 : vector<8x256xf32>
    %239 = vector.shape_cast %238 : vector<8x256xf32> to vector<8x2x128xf32>
    %cst_197 = arith.constant dense<0.000000e+00> : vector<8x128xf32>
    %240 = vector.multi_reduction <add>, %239, %cst_197 [1] : vector<8x2x128xf32> to vector<8x128xf32>
    %c0_198 = arith.constant 0 : index
    %c0_199 = arith.constant 0 : index
    %241 = vector.load %arg5[%c0_198, %c0_199] : memref<8x8xf32, #tpu.memory_space<vmem>>, vector<8x8xf32>
    %cst_200 = arith.constant dense<0.000000e+00> : vector<8x128xf32>
    %242 = tpu.matmul %241, %240, %cst_200 {dimension_numbers = #tpu.dot_dimension_numbers<[1], [0], [0], [1], [0, 0, 1, 1], [], []>} : vector<8x8xf32>, vector<8x128xf32>, vector<8x128xf32> -> vector<8x128xf32>
    %cst_201 = arith.constant dense<0.000000e+00> : vector<8xf32>
    %243 = vector.multi_reduction <add>, %242, %cst_201 [1] : vector<8x128xf32> to vector<8xf32>
    %244 = vector.shape_cast %243 : vector<8xf32> to vector<8x1xf32>
    %cst_202 = arith.constant 9.99999974E-6 : f32
    %245 = vector.broadcast %cst_202 : f32 to vector<8x1xf32>
    %246 = arith.addf %244, %245 : vector<8x1xf32>
    %247 = math.rsqrt %246 : vector<8x1xf32>
    %c0_203 = arith.constant 0 : index
    %c0_204 = arith.constant 0 : index
    %248 = vector.load %arg12[%c0_203, %c0_204] : memref<8x1xf32, #tpu.memory_space<vmem>>, vector<8x1xf32>
    %249 = arith.mulf %247, %248 : vector<8x1xf32>
    %250 = vector.broadcast %249 : vector<8x1xf32> to vector<8x256xf32>
    %251 = arith.mulf %237, %250 : vector<8x256xf32>
    %c0_205 = arith.constant 0 : index
    %c0_206 = arith.constant 0 : index
    %252 = vector.load %arg13[%c0_205, %c0_206] : memref<8x1xf32, #tpu.memory_space<vmem>>, vector<8x1xf32>
    %253 = vector.broadcast %252 : vector<8x1xf32> to vector<8x256xf32>
    %254 = arith.addf %251, %253 : vector<8x256xf32>
    %cst_207 = arith.constant 0.000000e+00 : f32
    %255 = vector.broadcast %cst_207 : f32 to vector<8x256xf32>
    %256 = arith.cmpf ogt, %254, %255 : vector<8x256xf32>
    %cst_208 = arith.constant 2.000000e-01 : f32
    %257 = vector.broadcast %cst_208 : f32 to vector<8x256xf32>
    %258 = arith.mulf %257, %254 : vector<8x256xf32>
    %259 = arith.select %256, %254, %258 : vector<8x256xi1>, vector<8x256xf32>
    %c0_209 = arith.constant 0 : index
    %c0_210 = arith.constant 0 : index
    %c0_211 = arith.constant 0 : index
    %260 = vector.load %arg14[%c0_209, %c0_210, %c0_211] : memref<2x8x256xf32, #tpu.memory_space<vmem>>, vector<1x8x256xf32>
    %261 = vector.shape_cast %260 : vector<1x8x256xf32> to vector<8x256xf32>
    %262 = vector.shape_cast %259 : vector<8x256xf32> to vector<1x8x256xf32>
    tpu.vector_store %arg14[%c0_209, %c0_210, %c0_211], %262 {strides = array<i32>} : memref<2x8x256xf32, #tpu.memory_space<vmem>>, vector<1x8x256xf32>,
    %263 = vector.extract_strided_slice %228 {offsets = [0, 256], sizes = [8, 256], strides = [1, 1]} : vector<8x512xf32> to vector<8x256xf32>
    %264 = vector.shape_cast %263 : vector<8x256xf32> to vector<8x2x128xf32>
    %cst_212 = arith.constant dense<0.000000e+00> : vector<8x128xf32>
    %265 = vector.multi_reduction <add>, %264, %cst_212 [1] : vector<8x2x128xf32> to vector<8x128xf32>
    %c0_213 = arith.constant 0 : index
    %c0_214 = arith.constant 0 : index
    %266 = vector.load %arg5[%c0_213, %c0_214] : memref<8x8xf32, #tpu.memory_space<vmem>>, vector<8x8xf32>
    %cst_215 = arith.constant dense<0.000000e+00> : vector<8x128xf32>
    %267 = tpu.matmul %266, %265, %cst_215 {dimension_numbers = #tpu.dot_dimension_numbers<[1], [0], [0], [1], [0, 0, 1, 1], [], []>} : vector<8x8xf32>, vector<8x128xf32>, vector<8x128xf32> -> vector<8x128xf32>
    %cst_216 = arith.constant dense<0.000000e+00> : vector<8xf32>
    %268 = vector.multi_reduction <add>, %267, %cst_216 [1] : vector<8x128xf32> to vector<8xf32>
    %269 = vector.shape_cast %268 : vector<8xf32> to vector<8x1xf32>
    %270 = vector.broadcast %269 : vector<8x1xf32> to vector<8x256xf32>
    %271 = arith.subf %263, %270 : vector<8x256xf32>
    %272 = arith.mulf %271, %271 : vector<8x256xf32>
    %273 = vector.shape_cast %272 : vector<8x256xf32> to vector<8x2x128xf32>
    %cst_217 = arith.constant dense<0.000000e+00> : vector<8x128xf32>
    %274 = vector.multi_reduction <add>, %273, %cst_217 [1] : vector<8x2x128xf32> to vector<8x128xf32>
    %c0_218 = arith.constant 0 : index
    %c0_219 = arith.constant 0 : index
    %275 = vector.load %arg5[%c0_218, %c0_219] : memref<8x8xf32, #tpu.memory_space<vmem>>, vector<8x8xf32>
    %cst_220 = arith.constant dense<0.000000e+00> : vector<8x128xf32>
    %276 = tpu.matmul %275, %274, %cst_220 {dimension_numbers = #tpu.dot_dimension_numbers<[1], [0], [0], [1], [0, 0, 1, 1], [], []>} : vector<8x8xf32>, vector<8x128xf32>, vector<8x128xf32> -> vector<8x128xf32>
    %cst_221 = arith.constant dense<0.000000e+00> : vector<8xf32>
    %277 = vector.multi_reduction <add>, %276, %cst_221 [1] : vector<8x128xf32> to vector<8xf32>
    %278 = vector.shape_cast %277 : vector<8xf32> to vector<8x1xf32>
    %cst_222 = arith.constant 9.99999974E-6 : f32
    %279 = vector.broadcast %cst_222 : f32 to vector<8x1xf32>
    %280 = arith.addf %278, %279 : vector<8x1xf32>
    %281 = math.rsqrt %280 : vector<8x1xf32>
    %c0_223 = arith.constant 0 : index
    %c0_224 = arith.constant 0 : index
    %282 = vector.load %arg12[%c0_223, %c0_224] : memref<8x1xf32, #tpu.memory_space<vmem>>, vector<8x1xf32>
    %283 = arith.mulf %281, %282 : vector<8x1xf32>
    %284 = vector.broadcast %283 : vector<8x1xf32> to vector<8x256xf32>
    %285 = arith.mulf %271, %284 : vector<8x256xf32>
    %c0_225 = arith.constant 0 : index
    %c0_226 = arith.constant 0 : index
    %286 = vector.load %arg13[%c0_225, %c0_226] : memref<8x1xf32, #tpu.memory_space<vmem>>, vector<8x1xf32>
    %287 = vector.broadcast %286 : vector<8x1xf32> to vector<8x256xf32>
    %288 = arith.addf %285, %287 : vector<8x256xf32>
    %cst_227 = arith.constant 0.000000e+00 : f32
    %289 = vector.broadcast %cst_227 : f32 to vector<8x256xf32>
    %290 = arith.cmpf ogt, %288, %289 : vector<8x256xf32>
    %cst_228 = arith.constant 2.000000e-01 : f32
    %291 = vector.broadcast %cst_228 : f32 to vector<8x256xf32>
    %292 = arith.mulf %291, %288 : vector<8x256xf32>
    %293 = arith.select %290, %288, %292 : vector<8x256xi1>, vector<8x256xf32>
    %c1_229 = arith.constant 1 : index
    %c0_230 = arith.constant 0 : index
    %c0_231 = arith.constant 0 : index
    %294 = vector.load %arg14[%c1_229, %c0_230, %c0_231] : memref<2x8x256xf32, #tpu.memory_space<vmem>>, vector<1x8x256xf32>
    %295 = vector.shape_cast %294 : vector<1x8x256xf32> to vector<8x256xf32>
    %296 = vector.shape_cast %293 : vector<8x256xf32> to vector<1x8x256xf32>
    tpu.vector_store %arg14[%c1_229, %c0_230, %c0_231], %296 {strides = array<i32>} : memref<2x8x256xf32, #tpu.memory_space<vmem>>, vector<1x8x256xf32>,
    return
  }
  func.func @transform_0(%arg0: i32) -> (i32, i32, i32) {
    %c0_i32 = arith.constant 0 : i32
    %c0_i32_0 = arith.constant 0 : i32
    %c0_i32_1 = arith.constant 0 : i32
    return %arg0, %c0_i32, %c0_i32_0 : i32, i32, i32
  }
  func.func @transform_1(%arg0: i32) -> (i32, i32, i32) {
    %c0_i32 = arith.constant 0 : i32
    %c0_i32_0 = arith.constant 0 : i32
    %c0_i32_1 = arith.constant 0 : i32
    return %arg0, %c0_i32, %c0_i32_0 : i32, i32, i32
  }
  func.func @transform_2(%arg0: i32) -> (i32, i32) {
    %c0_i32 = arith.constant 0 : i32
    %c0_i32_0 = arith.constant 0 : i32
    %c0_i32_1 = arith.constant 0 : i32
    return %c0_i32, %c0_i32_0 : i32, i32
  }
  func.func @transform_3(%arg0: i32) -> (i32, i32) {
    %c0_i32 = arith.constant 0 : i32
    %c0_i32_0 = arith.constant 0 : i32
    %c0_i32_1 = arith.constant 0 : i32
    return %c0_i32, %c0_i32_0 : i32, i32
  }
  func.func @transform_4(%arg0: i32) -> (i32, i32) {
    %c0_i32 = arith.constant 0 : i32
    %c0_i32_0 = arith.constant 0 : i32
    %c0_i32_1 = arith.constant 0 : i32
    return %c0_i32, %c0_i32_0 : i32, i32
  }
  func.func @transform_5(%arg0: i32) -> (i32, i32, i32) {
    %c0_i32 = arith.constant 0 : i32
    %c0_i32_0 = arith.constant 0 : i32
    %c0_i32_1 = arith.constant 0 : i32
    %c0_i32_2 = arith.constant 0 : i32
    return %c0_i32, %c0_i32_0, %c0_i32_1 : i32, i32, i32
  }
  func.func @transform_6(%arg0: i32) -> (i32, i32) {
    %c0_i32 = arith.constant 0 : i32
    %c0_i32_0 = arith.constant 0 : i32
    %c0_i32_1 = arith.constant 0 : i32
    return %c0_i32, %c0_i32_0 : i32, i32
  }
  func.func @transform_7(%arg0: i32) -> (i32, i32) {
    %c0_i32 = arith.constant 0 : i32
    %c0_i32_0 = arith.constant 0 : i32
    %c0_i32_1 = arith.constant 0 : i32
    return %c0_i32, %c0_i32_0 : i32, i32
  }
  func.func @transform_8(%arg0: i32) -> (i32, i32) {
    %c0_i32 = arith.constant 0 : i32
    %c0_i32_0 = arith.constant 0 : i32
    %c0_i32_1 = arith.constant 0 : i32
    return %c0_i32, %c0_i32_0 : i32, i32
  }
  func.func @transform_9(%arg0: i32) -> (i32, i32, i32) {
    %c0_i32 = arith.constant 0 : i32
    %c0_i32_0 = arith.constant 0 : i32
    %c0_i32_1 = arith.constant 0 : i32
    %c0_i32_2 = arith.constant 0 : i32
    return %c0_i32, %c0_i32_0, %c0_i32_1 : i32, i32, i32
  }
  func.func @transform_10(%arg0: i32) -> (i32, i32) {
    %c0_i32 = arith.constant 0 : i32
    %c0_i32_0 = arith.constant 0 : i32
    %c0_i32_1 = arith.constant 0 : i32
    return %c0_i32, %c0_i32_0 : i32, i32
  }
  func.func @transform_11(%arg0: i32) -> (i32, i32) {
    %c0_i32 = arith.constant 0 : i32
    %c0_i32_0 = arith.constant 0 : i32
    %c0_i32_1 = arith.constant 0 : i32
    return %c0_i32, %c0_i32_0 : i32, i32
  }
  func.func @transform_12(%arg0: i32) -> (i32, i32) {
    %c0_i32 = arith.constant 0 : i32
    %c0_i32_0 = arith.constant 0 : i32
    %c0_i32_1 = arith.constant 0 : i32
    return %c0_i32, %c0_i32_0 : i32, i32
  }
  func.func @transform_13(%arg0: i32) -> (i32, i32, i32) {
    %c0_i32 = arith.constant 0 : i32
    %c0_i32_0 = arith.constant 0 : i32
    %c0_i32_1 = arith.constant 0 : i32
    return %arg0, %c0_i32, %c0_i32_0 : i32, i32, i32
  }
}

</mosaic_0001>

<llo_original>
// kernel: up_forward.1
$region0: #{up_forward.1}
  #allocation0 [shape = 'u32[]', space=smem, size = 0x4, offset = 0x4, fixed_abs, tag = 'smem constant byte address 0x4 - core index']
  #allocation1 [shape = 'u32[72,128]{1,0:T(1,128)}', space=vmem, size = 0x9000, scoped, tag = 'internal scratch']
  #allocation2 [shape = 'bf16[8,768]{1,0:T(8,128)(2,1)}', space=vmem, size = 0x3000, scoped, tag = 'scratch operand']
  %s0 = inlined_call_operand.vmem [shape: bf16[2,4,64], index: 0, kind: input, shape index: {}]
  %s1 = inlined_call_operand.vmem [shape: bf16[2,4,256], index: 1, kind: input, shape index: {}]
  %s2 = inlined_call_operand.vmem [shape: bf16[64,256], index: 2, kind: input, shape index: {}]
  %s3 = inlined_call_operand.vmem [shape: bf16[9,512], index: 3, kind: input, shape index: {}]
  %s4 = inlined_call_operand.vmem [shape: f32[8,8], index: 4, kind: input, shape index: {}]
  %s5 = inlined_call_operand.vmem [shape: bf16[9,8,8], index: 5, kind: input, shape index: {}]
  %s6 = inlined_call_operand.vmem [shape: f32[8,1], index: 6, kind: input, shape index: {}]
  %s7 = inlined_call_operand.vmem [shape: f32[8,1], index: 7, kind: input, shape index: {}]
  %s8 = inlined_call_operand.vmem [shape: f32[8,1], index: 8, kind: input, shape index: {}]
  %s9 = inlined_call_operand.vmem [shape: bf16[9,8,8], index: 9, kind: input, shape index: {}]
  %s10 = inlined_call_operand.vmem [shape: f32[8,1], index: 10, kind: input, shape index: {}]
  %s11 = inlined_call_operand.vmem [shape: f32[8,1], index: 11, kind: input, shape index: {}]
  %s12 = inlined_call_operand.vmem [shape: f32[8,1], index: 12, kind: input, shape index: {}]
  %s13 = inlined_call_operand.vmem [shape: f32[2,8,256], index: 13, kind: output, shape index: {}]
  %s14 = sld [smem:[#allocation0]]
  $region62: #{up_forward.1} parent=0
    _
  %s16 = ssub.s32 1, %s14
  %s17 = scalar_select 0, %s16, %s14
  // Predicated region
  $region2: #{up_forward.1} parent=0 // pred_check
    _
  $region3: #{up_forward.1} parent=0 // pred_check_branch
    %19 = sbr.rel (0) target = $region5
  $region4: #{up_forward.1} parent=0 // pred_region
    _
  $region5: #{up_forward.1} parent=0 // pred_fallthru
    _
  // Predicated region
  $region6: #{up_forward.1} parent=0 // pred_check
    _
  $region7: #{up_forward.1} parent=0 // pred_check_branch
    %21 = sbr.rel (0) target = $region9
  $region8: #{up_forward.1} parent=0 // pred_region
    _
  $region9: #{up_forward.1} parent=0 // pred_fallthru
    _
  // Predicated region
  $region10: #{up_forward.1} parent=0 // pred_check
    _
  $region11: #{up_forward.1} parent=0 // pred_check_branch
    %23 = sbr.rel (0) target = $region13
  $region12: #{up_forward.1} parent=0 // pred_region
    _
  $region13: #{up_forward.1} parent=0 // pred_fallthru
    _
  // Predicated region
  $region14: #{up_forward.1} parent=0 // pred_check
    _
  $region15: #{up_forward.1} parent=0 // pred_check_branch
    %25 = sbr.rel (0) target = $region17
  $region16: #{up_forward.1} parent=0 // pred_region
    _
  $region17: #{up_forward.1} parent=0 // pred_fallthru
    _
  // Predicated region
  $region18: #{up_forward.1} parent=0 // pred_check
    _
  $region19: #{up_forward.1} parent=0 // pred_check_branch
    %27 = sbr.rel (0) target = $region21
  $region20: #{up_forward.1} parent=0 // pred_region
    _
  $region21: #{up_forward.1} parent=0 // pred_fallthru
    _
  // Predicated region
  $region22: #{up_forward.1} parent=0 // pred_check
    _
  $region23: #{up_forward.1} parent=0 // pred_check_branch
    %29 = sbr.rel (0) target = $region25
  $region24: #{up_forward.1} parent=0 // pred_region
    _
  $region25: #{up_forward.1} parent=0 // pred_fallthru
    _
  // Predicated region
  $region26: #{up_forward.1} parent=0 // pred_check
    _
  $region27: #{up_forward.1} parent=0 // pred_check_branch
    %31 = sbr.rel (0) target = $region29
  $region28: #{up_forward.1} parent=0 // pred_region
    _
  $region29: #{up_forward.1} parent=0 // pred_fallthru
    _
  // Predicated region
  $region30: #{up_forward.1} parent=0 // pred_check
    _
  $region31: #{up_forward.1} parent=0 // pred_check_branch
    %33 = sbr.rel (0) target = $region33
  $region32: #{up_forward.1} parent=0 // pred_region
    _
  $region33: #{up_forward.1} parent=0 // pred_fallthru
    _
  // Predicated region
  $region34: #{up_forward.1} parent=0 // pred_check
    _
  $region35: #{up_forward.1} parent=0 // pred_check_branch
    %35 = sbr.rel (0) target = $region37
  $region36: #{up_forward.1} parent=0 // pred_region
    _
  $region37: #{up_forward.1} parent=0 // pred_fallthru
    _
  // Predicated region
  $region38: #{up_forward.1} parent=0 // pred_check
    _
  $region39: #{up_forward.1} parent=0 // pred_check_branch
    %37 = sbr.rel (0) target = $region41
  $region40: #{up_forward.1} parent=0 // pred_region
    _
  $region41: #{up_forward.1} parent=0 // pred_fallthru
    _
  // Predicated region
  $region42: #{up_forward.1} parent=0 // pred_check
    _
  $region43: #{up_forward.1} parent=0 // pred_check_branch
    %39 = sbr.rel (0) target = $region45
  $region44: #{up_forward.1} parent=0 // pred_region
    _
  $region45: #{up_forward.1} parent=0 // pred_fallthru
    _
  // Predicated region
  $region46: #{up_forward.1} parent=0 // pred_check
    _
  $region47: #{up_forward.1} parent=0 // pred_check_branch
    %41 = sbr.rel (0) target = $region49
  $region48: #{up_forward.1} parent=0 // pred_region
    _
  $region49: #{up_forward.1} parent=0 // pred_fallthru
    _
  // Predicated region
  $region50: #{up_forward.1} parent=0 // pred_check
    _
  $region51: #{up_forward.1} parent=0 // pred_check_branch
    %43 = sbr.rel (0) target = $region53
  $region52: #{up_forward.1} parent=0 // pred_region
    _
  $region53: #{up_forward.1} parent=0 // pred_fallthru
    _
  %45 = vst [vmem:[#allocation2] sm:$0xf] 0
  %46 = vst [vmem:[#allocation2 + $0x14] sm:$0xf] 0
  %v47 = vld [vmem:[%s1] sm:$0xf]
  %49 = vst [vmem:[#allocation1] ss:$2 sm:$0xff] %v47
  %v50 = vld.sshfl [vmem:[#allocation1] sm:$0xff pattern:$0x75643120]
  %52 = vst [vmem:[#allocation2 + $0x4] sm:$0x33] %v50
  %v53 = vld [vmem:[%s0] sm:$0x3]
  %v54 = vld [vmem:[%s2] sm:$0xff]
  %v55 = vld [vmem:[%s2 + $0x8] sm:$0xff]
  %v56 = vld [vmem:[%s2 + $0x10] sm:$0xff]
  %v57 = vld [vmem:[%s2 + $0x18] sm:$0xff]
  %v58 = vld [vmem:[%s2 + $0x20] sm:$0xff]
  %v59 = vld [vmem:[%s2 + $0x28] sm:$0xff]
  %v60 = vld [vmem:[%s2 + $0x30] sm:$0xff]
  %v61 = vld [vmem:[%s2 + $0x38] sm:$0xff]
  %v70 = vunpack.c.l.b16 %v54
  %v71 = vunpack.c.h.b16 %v54
  %v72 = vunpack.c.l.b16 %v55
  %v73 = vunpack.c.h.b16 %v55
  %v74 = vunpack.c.l.b16 %v56
  %v75 = vunpack.c.h.b16 %v56
  %v76 = vunpack.c.l.b16 %v57
  %v77 = vunpack.c.h.b16 %v57
  %v78 = vunpack.c.l.b16 %v58
  %v79 = vunpack.c.h.b16 %v58
  %v80 = vunpack.c.l.b16 %v59
  %v81 = vunpack.c.h.b16 %v59
  %v82 = vunpack.c.l.b16 %v60
  %v83 = vunpack.c.h.b16 %v60
  %v84 = vunpack.c.l.b16 %v61
  %v85 = vunpack.c.h.b16 %v61
  %v86 = vpack.c.b16 %v72, %v70
  %v87 = vpack.c.b16 %v73, %v71
  %v88 = vpack.c.b16 %v76, %v74
  %v89 = vpack.c.b16 %v77, %v75
  %v90 = vpack.c.b16 %v80, %v78
  %v91 = vpack.c.b16 %v81, %v79
  %v92 = vpack.c.b16 %v84, %v82
  %v93 = vpack.c.b16 %v85, %v83
  %vm102 = vcmask 523264
  %v104 = vsel %vm102, %v53, 0
  %106 = vmatpush.bf16.msra.mxu0 0
  %107 = vmatpush.bf16.msra.mxu0 0
  %108 = vmatpush.bf16.msra.mxu0 0
  %109 = vmatpush.bf16.msra.mxu0 0
  %110 = vmatpush.bf16.msra.mxu0 %v92
  %111 = vmatpush.bf16.msra.mxu0 %v90
  %112 = vmatpush.bf16.msra.mxu0 %v88
  %113 = vmatpush.bf16.msra.mxu0 %v86
  %114 = vmatmul.bf16.gmra.mxu0 %v104
  %v115 = vpop.f32.mrf.mxu0
  %v116 = vadd.f32 0.0, %v115
  %v117 = vpop.f32.mrf.mxu0
  %118 = vdwg.mxu0
  %119 = vmatpush.bf16.msra.mxu0 0
  %120 = vmatpush.bf16.msra.mxu0 0
  %121 = vmatpush.bf16.msra.mxu0 0
  %122 = vmatpush.bf16.msra.mxu0 0
  %123 = vmatpush.bf16.msra.mxu0 %v93
  %124 = vmatpush.bf16.msra.mxu0 %v91
  %125 = vmatpush.bf16.msra.mxu0 %v89
  %126 = vmatpush.bf16.msra.mxu0 %v87
  %127 = vmatmul.bf16.gmra.mxu0 %v104
  %v128 = vpop.f32.mrf.mxu0
  %v129 = vadd.f32 0.0, %v128
  %v130 = vpop.f32.mrf.mxu0
  %131 = vdwg.mxu0
  %v132 = vpack.c.bf16 %v129, %v116
  %v134 = vrot.slane %v132, 6
  %136 = vst [vmem:[#allocation2 + $0x4] sm:$0xcc] %v134
  %s137 = scalar_lea.vmem %s1, 4
  %v138 = vld [vmem:[%s137] sm:$0xf]
  %140 = vst [vmem:[#allocation1] ss:$2 sm:$0xff] %v138
  %v141 = vld.sshfl [vmem:[#allocation1] sm:$0xff pattern:$0x75643120]
  %143 = vst [vmem:[#allocation2 + $0xc] sm:$0x33] %v141
  %s144 = scalar_lea.vmem %s0, 2
  %v145 = vld [vmem:[%s144] sm:$0x3]
  %v146 = vld [vmem:[%s2] sm:$0xff]
  %v147 = vld [vmem:[%s2 + $0x8] sm:$0xff]
  %v148 = vld [vmem:[%s2 + $0x10] sm:$0xff]
  %v149 = vld [vmem:[%s2 + $0x18] sm:$0xff]
  %v150 = vld [vmem:[%s2 + $0x20] sm:$0xff]
  %v151 = vld [vmem:[%s2 + $0x28] sm:$0xff]
  %v152 = vld [vmem:[%s2 + $0x30] sm:$0xff]
  %v153 = vld [vmem:[%s2 + $0x38] sm:$0xff]
  %v162 = vunpack.c.l.b16 %v146
  %v163 = vunpack.c.h.b16 %v146
  %v164 = vunpack.c.l.b16 %v147
  %v165 = vunpack.c.h.b16 %v147
  %v166 = vunpack.c.l.b16 %v148
  %v167 = vunpack.c.h.b16 %v148
  %v168 = vunpack.c.l.b16 %v149
  %v169 = vunpack.c.h.b16 %v149
  %v170 = vunpack.c.l.b16 %v150
  %v171 = vunpack.c.h.b16 %v150
  %v172 = vunpack.c.l.b16 %v151
  %v173 = vunpack.c.h.b16 %v151
  %v174 = vunpack.c.l.b16 %v152
  %v175 = vunpack.c.h.b16 %v152
  %v176 = vunpack.c.l.b16 %v153
  %v177 = vunpack.c.h.b16 %v153
  %v178 = vpack.c.b16 %v164, %v162
  %v179 = vpack.c.b16 %v165, %v163
  %v180 = vpack.c.b16 %v168, %v166
  %v181 = vpack.c.b16 %v169, %v167
  %v182 = vpack.c.b16 %v172, %v170
  %v183 = vpack.c.b16 %v173, %v171
  %v184 = vpack.c.b16 %v176, %v174
  %v185 = vpack.c.b16 %v177, %v175
  %v195 = vsel %vm102, %v145, 0
  %197 = vmatpush.bf16.msra.mxu0 0
  %198 = vmatpush.bf16.msra.mxu0 0
  %199 = vmatpush.bf16.msra.mxu0 0
  %200 = vmatpush.bf16.msra.mxu0 0
  %201 = vmatpush.bf16.msra.mxu0 %v184
  %202 = vmatpush.bf16.msra.mxu0 %v182
  %203 = vmatpush.bf16.msra.mxu0 %v180
  %204 = vmatpush.bf16.msra.mxu0 %v178
  %205 = vmatmul.bf16.gmra.mxu0 %v195
  %v206 = vpop.f32.mrf.mxu0
  %v207 = vadd.f32 0.0, %v206
  %v208 = vpop.f32.mrf.mxu0
  %209 = vdwg.mxu0
  %210 = vmatpush.bf16.msra.mxu0 0
  %211 = vmatpush.bf16.msra.mxu0 0
  %212 = vmatpush.bf16.msra.mxu0 0
  %213 = vmatpush.bf16.msra.mxu0 0
  %214 = vmatpush.bf16.msra.mxu0 %v185
  %215 = vmatpush.bf16.msra.mxu0 %v183
  %216 = vmatpush.bf16.msra.mxu0 %v181
  %217 = vmatpush.bf16.msra.mxu0 %v179
  %218 = vmatmul.bf16.gmra.mxu0 %v195
  %v219 = vpop.f32.mrf.mxu0
  %v220 = vadd.f32 0.0, %v219
  %v221 = vpop.f32.mrf.mxu0
  %222 = vdwg.mxu0
  %v223 = vpack.c.bf16 %v220, %v207
  %v225 = vrot.slane %v223, 6
  %227 = vst [vmem:[#allocation2 + $0xc] sm:$0xcc] %v225
  %s228 = scalar_lea.vmem %s5, 16
  %v229 = vld [vmem:[%s228] sm:$0xf]
  %v230 = vld [vmem:[#allocation2 + $0x4] sm:$0xff]
  %v231 = vld [vmem:[#allocation2 + $0xc] sm:$0xff]
  %v232 = vld [vmem:[%s6] sm:$0xff]
  %234 = vset.pattern.permute.xlu0 0
  %235 = vperm.xlu0 %234, %v232
  %v236 = vpop.permute.xlu0 %235
  %v240 = vunpack.c.l.b16 %v230
  %v241 = vunpack.c.h.b16 %v230
  %v242 = vunpack.c.l.b16 %v231
  %v243 = vunpack.c.h.b16 %v231
  %v244 = vpack.c.b16 %v240, %v240
  %v245 = vpack.c.b16 %v241, %v241
  %v246 = vpack.c.b16 %v242, %v242
  %v247 = vpack.c.b16 %v243, %v243
  %vm248 = vcmask 64512
  %v250 = vsel %vm248, %v229, 0
  %vm252 = vcmask 1043456
  %v254 = vsel %vm252, %v244, 0
  %v257 = vsel %vm252, %v245, 0
  %v260 = vsel %vm252, %v246, 0
  %v263 = vsel %vm252, %v247, 0
  %265 = vmatpush.bf16.msra.mxu0 0
  %266 = vmatpush.bf16.msra.mxu0 0
  %267 = vmatpush.bf16.msra.mxu0 0
  %268 = vmatpush.bf16.msra.mxu0 0
  %269 = vmatpush.bf16.msra.mxu0 0
  %270 = vmatpush.bf16.msra.mxu0 0
  %271 = vmatpush.bf16.msra.mxu0 0
  %272 = vmatpush.bf16.msra.mxu0 %v254
  %273 = vmatmul.bf16.gmra.mxu0 %v250
  %v274 = vpop.f32.mrf.mxu0
  %v275 = vadd.f32 %v236, %v274
  %v276 = vpop.f32.mrf.mxu0
  %277 = vdwg.mxu0
  %278 = vmatpush.bf16.msra.mxu0 0
  %279 = vmatpush.bf16.msra.mxu0 0
  %280 = vmatpush.bf16.msra.mxu0 0
  %281 = vmatpush.bf16.msra.mxu0 0
  %282 = vmatpush.bf16.msra.mxu0 0
  %283 = vmatpush.bf16.msra.mxu0 0
  %284 = vmatpush.bf16.msra.mxu0 0
  %285 = vmatpush.bf16.msra.mxu0 %v257
  %286 = vmatmul.bf16.gmra.mxu0 %v250
  %v287 = vpop.f32.mrf.mxu0
  %v288 = vadd.f32 %v236, %v287
  %v289 = vpop.f32.mrf.mxu0
  %290 = vdwg.mxu0
  %291 = vmatpush.bf16.msra.mxu0 0
  %292 = vmatpush.bf16.msra.mxu0 0
  %293 = vmatpush.bf16.msra.mxu0 0
  %294 = vmatpush.bf16.msra.mxu0 0
  %295 = vmatpush.bf16.msra.mxu0 0
  %296 = vmatpush.bf16.msra.mxu0 0
  %297 = vmatpush.bf16.msra.mxu0 0
  %298 = vmatpush.bf16.msra.mxu0 %v260
  %299 = vmatmul.bf16.gmra.mxu0 %v250
  %v300 = vpop.f32.mrf.mxu0
  %v301 = vadd.f32 %v236, %v300
  %v302 = vpop.f32.mrf.mxu0
  %303 = vdwg.mxu0
  %304 = vmatpush.bf16.msra.mxu0 0
  %305 = vmatpush.bf16.msra.mxu0 0
  %306 = vmatpush.bf16.msra.mxu0 0
  %307 = vmatpush.bf16.msra.mxu0 0
  %308 = vmatpush.bf16.msra.mxu0 0
  %309 = vmatpush.bf16.msra.mxu0 0
  %310 = vmatpush.bf16.msra.mxu0 0
  %311 = vmatpush.bf16.msra.mxu0 %v263
  %312 = vmatmul.bf16.gmra.mxu0 %v250
  %v313 = vpop.f32.mrf.mxu0
  %v314 = vadd.f32 %v236, %v313
  %v315 = vpop.f32.mrf.mxu0
  %316 = vdwg.mxu0
  %v317 = vld [vmem:[#allocation2] sm:$0xff]
  %v318 = vld [vmem:[#allocation2 + $0x8] sm:$0xff]
  %v319 = vld [vmem:[#allocation2 + $0x10] sm:$0xf]
  %v320 = vld [vmem:[%s3] sm:$0x11]
  %v321 = vld [vmem:[%s3 + $0x8] sm:$0x11]
  %v324 = vunpack.c.l.b16 %v320
  %v325 = vunpack.c.h.b16 %v320
  %v326 = vunpack.c.l.b16 %v321
  %v327 = vunpack.c.h.b16 %v321
  %v328 = vpack.c.b16 %v324, %v324
  %v329 = vpack.c.b16 %v325, %v325
  %v330 = vpack.c.b16 %v326, %v326
  %v331 = vpack.c.b16 %v327, %v327
  %v333 = vpack.i.b16 %v328, %v328
  %v335 = vperm.slane %v333, 0
  %v337 = vpack.i.b16 %v329, %v329
  %v339 = vperm.slane %v337, 0
  %v341 = vpack.i.b16 %v330, %v330
  %v343 = vperm.slane %v341, 0
  %v345 = vpack.i.b16 %v331, %v331
  %v347 = vperm.slane %v345, 0
  %v348 = vunpack.c.l.bf16 %v317
  %v349 = vunpack.c.h.bf16 %v317
  %v350 = vunpack.c.l.bf16 %v318
  %v351 = vunpack.c.h.bf16 %v318
  %v352 = vunpack.c.l.bf16 %v319
  %v353 = vunpack.c.l.bf16 %v335
  %v354 = vunpack.c.l.bf16 %v339
  %v355 = vunpack.c.l.bf16 %v343
  %v356 = vunpack.c.l.bf16 %v347
  %361 = vrot.lane.b32.xlu0 %v353, 111
  %v362 = vpop.permute.xlu0 %361
  %363 = vrot.lane.b32.xlu0 %v354, 111
  %v364 = vpop.permute.xlu0 %363
  %365 = vrot.lane.b32.xlu0 %v355, 111
  %v366 = vpop.permute.xlu0 %365
  %367 = vrot.lane.b32.xlu0 %v356, 111
  %v368 = vpop.permute.xlu0 %367
  %vm369 = vcmask 908288
  %v370 = vsel %vm369, %v362, %v364
  %v371 = vsel %vm369, %v364, %v366
  %v372 = vsel %vm369, %v366, %v368
  %v378 = vmul.f32 %v348, %v362
  %v379 = vmul.f32 %v349, %v370
  %v380 = vmul.f32 %v350, %v371
  %v381 = vmul.f32 %v351, %v372
  %v382 = vmul.f32 %v352, %v368
  %v383 = vpack.c.bf16 %v378, %v378
  %v384 = vpack.c.bf16 %v379, %v379
  %v385 = vpack.c.bf16 %v380, %v380
  %v386 = vpack.c.bf16 %v381, %v381
  %v387 = vpack.c.bf16 %v382, %v382
  %v388 = vld [vmem:[%s5] sm:$0xf]
  %394 = vrot.lane.b32.xlu0 %v383, 17
  %v395 = vpop.permute.xlu0 %394
  %396 = vrot.lane.b32.xlu0 %v384, 17
  %v397 = vpop.permute.xlu0 %396
  %398 = vrot.lane.b32.xlu0 %v385, 17
  %v399 = vpop.permute.xlu0 %398
  %400 = vrot.lane.b32.xlu0 %v386, 17
  %v401 = vpop.permute.xlu0 %400
  %402 = vrot.lane.b32.xlu0 %v387, 17
  %v403 = vpop.permute.xlu0 %402
  %vm404 = vcmask 138240
  %v405 = vsel %vm404, %v395, %v397
  %v406 = vsel %vm404, %v397, %v399
  %v407 = vsel %vm404, %v399, %v401
  %v408 = vsel %vm404, %v401, %v403
  %v410 = vsel %vm248, %v388, 0
  %v413 = vsel %vm252, %v405, 0
  %v416 = vsel %vm252, %v406, 0
  %v419 = vsel %vm252, %v407, 0
  %v422 = vsel %vm252, %v408, 0
  %424 = vmatpush.bf16.msra.mxu0 0
  %425 = vmatpush.bf16.msra.mxu0 0
  %426 = vmatpush.bf16.msra.mxu0 0
  %427 = vmatpush.bf16.msra.mxu0 0
  %428 = vmatpush.bf16.msra.mxu0 0
  %429 = vmatpush.bf16.msra.mxu0 0
  %430 = vmatpush.bf16.msra.mxu0 0
  %431 = vmatpush.bf16.msra.mxu0 %v413
  %432 = vmatmul.bf16.gmra.mxu0 %v410
  %v433 = vpop.f32.mrf.mxu0
  %v434 = vadd.f32 0.0, %v433
  %v435 = vpop.f32.mrf.mxu0
  %436 = vdwg.mxu0
  %437 = vmatpush.bf16.msra.mxu0 0
  %438 = vmatpush.bf16.msra.mxu0 0
  %439 = vmatpush.bf16.msra.mxu0 0
  %440 = vmatpush.bf16.msra.mxu0 0
  %441 = vmatpush.bf16.msra.mxu0 0
  %442 = vmatpush.bf16.msra.mxu0 0
  %443 = vmatpush.bf16.msra.mxu0 0
  %444 = vmatpush.bf16.msra.mxu0 %v416
  %445 = vmatmul.bf16.gmra.mxu0 %v410
  %v446 = vpop.f32.mrf.mxu0
  %v447 = vadd.f32 0.0, %v446
  %v448 = vpop.f32.mrf.mxu0
  %449 = vdwg.mxu0
  %450 = vmatpush.bf16.msra.mxu0 0
  %451 = vmatpush.bf16.msra.mxu0 0
  %452 = vmatpush.bf16.msra.mxu0 0
  %453 = vmatpush.bf16.msra.mxu0 0
  %454 = vmatpush.bf16.msra.mxu0 0
  %455 = vmatpush.bf16.msra.mxu0 0
  %456 = vmatpush.bf16.msra.mxu0 0
  %457 = vmatpush.bf16.msra.mxu0 %v419
  %458 = vmatmul.bf16.gmra.mxu0 %v410
  %v459 = vpop.f32.mrf.mxu0
  %v460 = vadd.f32 0.0, %v459
  %v461 = vpop.f32.mrf.mxu0
  %462 = vdwg.mxu0
  %463 = vmatpush.bf16.msra.mxu0 0
  %464 = vmatpush.bf16.msra.mxu0 0
  %465 = vmatpush.bf16.msra.mxu0 0
  %466 = vmatpush.bf16.msra.mxu0 0
  %467 = vmatpush.bf16.msra.mxu0 0
  %468 = vmatpush.bf16.msra.mxu0 0
  %469 = vmatpush.bf16.msra.mxu0 0
  %470 = vmatpush.bf16.msra.mxu0 %v422
  %471 = vmatmul.bf16.gmra.mxu0 %v410
  %v472 = vpop.f32.mrf.mxu0
  %v473 = vadd.f32 0.0, %v472
  %v474 = vpop.f32.mrf.mxu0
  %475 = vdwg.mxu0
  %v476 = vadd.f32 %v275, %v434
  %v477 = vadd.f32 %v288, %v447
  %v478 = vadd.f32 %v301, %v460
  %v479 = vadd.f32 %v314, %v473
  %v480 = vshrl.u32 %v328, 16
  %v481 = vpack.i.b16 %v480, %v480
  %v483 = vperm.slane %v481, 0
  %v484 = vshrl.u32 %v329, 16
  %v485 = vpack.i.b16 %v484, %v484
  %v487 = vperm.slane %v485, 0
  %v488 = vshrl.u32 %v330, 16
  %v489 = vpack.i.b16 %v488, %v488
  %v491 = vperm.slane %v489, 0
  %v492 = vshrl.u32 %v331, 16
  %v493 = vpack.i.b16 %v492, %v492
  %v495 = vperm.slane %v493, 0
  %v496 = vunpack.c.l.bf16 %v483
  %v497 = vunpack.c.l.bf16 %v487
  %v498 = vunpack.c.l.bf16 %v491
  %v499 = vunpack.c.l.bf16 %v495
  %504 = vrot.lane.b32.xlu0 %v496, 112
  %v505 = vpop.permute.xlu0 %504
  %506 = vrot.lane.b32.xlu0 %v497, 112
  %v507 = vpop.permute.xlu0 %506
  %508 = vrot.lane.b32.xlu0 %v498, 112
  %v509 = vpop.permute.xlu0 %508
  %510 = vrot.lane.b32.xlu0 %v499, 112
  %v511 = vpop.permute.xlu0 %510
  %vm512 = vcmask 916480
  %v513 = vsel %vm512, %v505, %v507
  %v514 = vsel %vm512, %v507, %v509
  %v515 = vsel %vm512, %v509, %v511
  %v521 = vmul.f32 %v348, %v505
  %v522 = vmul.f32 %v349, %v513
  %v523 = vmul.f32 %v350, %v514
  %v524 = vmul.f32 %v351, %v515
  %v525 = vmul.f32 %v352, %v511
  %v526 = vpack.c.bf16 %v521, %v521
  %v527 = vpack.c.bf16 %v522, %v522
  %v528 = vpack.c.bf16 %v523, %v523
  %v529 = vpack.c.bf16 %v524, %v524
  %v530 = vpack.c.bf16 %v525, %v525
  %s531 = scalar_lea.vmem %s5, 4
  %v532 = vld [vmem:[%s531] sm:$0xf]
  %538 = vrot.lane.b32.xlu0 %v526, 16
  %v539 = vpop.permute.xlu0 %538
  %540 = vrot.lane.b32.xlu0 %v527, 16
  %v541 = vpop.permute.xlu0 %540
  %542 = vrot.lane.b32.xlu0 %v528, 16
  %v543 = vpop.permute.xlu0 %542
  %544 = vrot.lane.b32.xlu0 %v529, 16
  %v545 = vpop.permute.xlu0 %544
  %546 = vrot.lane.b32.xlu0 %v530, 16
  %v547 = vpop.permute.xlu0 %546
  %vm548 = vcmask 130048
  %v549 = vsel %vm548, %v539, %v541
  %v550 = vsel %vm548, %v541, %v543
  %v551 = vsel %vm548, %v543, %v545
  %v552 = vsel %vm548, %v545, %v547
  %v554 = vsel %vm248, %v532, 0
  %v557 = vsel %vm252, %v549, 0
  %v560 = vsel %vm252, %v550, 0
  %v563 = vsel %vm252, %v551, 0
  %v566 = vsel %vm252, %v552, 0
  %568 = vmatpush.bf16.msra.mxu0 0
  %569 = vmatpush.bf16.msra.mxu0 0
  %570 = vmatpush.bf16.msra.mxu0 0
  %571 = vmatpush.bf16.msra.mxu0 0
  %572 = vmatpush.bf16.msra.mxu0 0
  %573 = vmatpush.bf16.msra.mxu0 0
  %574 = vmatpush.bf16.msra.mxu0 0
  %575 = vmatpush.bf16.msra.mxu0 %v557
  %576 = vmatmul.bf16.gmra.mxu0 %v554
  %v577 = vpop.f32.mrf.mxu0
  %v578 = vadd.f32 0.0, %v577
  %v579 = vpop.f32.mrf.mxu0
  %580 = vdwg.mxu0
  %581 = vmatpush.bf16.msra.mxu0 0
  %582 = vmatpush.bf16.msra.mxu0 0
  %583 = vmatpush.bf16.msra.mxu0 0
  %584 = vmatpush.bf16.msra.mxu0 0
  %585 = vmatpush.bf16.msra.mxu0 0
  %586 = vmatpush.bf16.msra.mxu0 0
  %587 = vmatpush.bf16.msra.mxu0 0
  %588 = vmatpush.bf16.msra.mxu0 %v560
  %589 = vmatmul.bf16.gmra.mxu0 %v554
  %v590 = vpop.f32.mrf.mxu0
  %v591 = vadd.f32 0.0, %v590
  %v592 = vpop.f32.mrf.mxu0
  %593 = vdwg.mxu0
  %594 = vmatpush.bf16.msra.mxu0 0
  %595 = vmatpush.bf16.msra.mxu0 0
  %596 = vmatpush.bf16.msra.mxu0 0
  %597 = vmatpush.bf16.msra.mxu0 0
  %598 = vmatpush.bf16.msra.mxu0 0
  %599 = vmatpush.bf16.msra.mxu0 0
  %600 = vmatpush.bf16.msra.mxu0 0
  %601 = vmatpush.bf16.msra.mxu0 %v563
  %602 = vmatmul.bf16.gmra.mxu0 %v554
  %v603 = vpop.f32.mrf.mxu0
  %v604 = vadd.f32 0.0, %v603
  %v605 = vpop.f32.mrf.mxu0
  %606 = vdwg.mxu0
  %607 = vmatpush.bf16.msra.mxu0 0
  %608 = vmatpush.bf16.msra.mxu0 0
  %609 = vmatpush.bf16.msra.mxu0 0
  %610 = vmatpush.bf16.msra.mxu0 0
  %611 = vmatpush.bf16.msra.mxu0 0
  %612 = vmatpush.bf16.msra.mxu0 0
  %613 = vmatpush.bf16.msra.mxu0 0
  %614 = vmatpush.bf16.msra.mxu0 %v566
  %615 = vmatmul.bf16.gmra.mxu0 %v554
  %v616 = vpop.f32.mrf.mxu0
  %v617 = vadd.f32 0.0, %v616
  %v618 = vpop.f32.mrf.mxu0
  %619 = vdwg.mxu0
  %v620 = vadd.f32 %v476, %v578
  %v621 = vadd.f32 %v477, %v591
  %v622 = vadd.f32 %v478, %v604
  %v623 = vadd.f32 %v479, %v617
  %v624 = vld [vmem:[%s3] sm:$0x22]
  %v625 = vld [vmem:[%s3 + $0x8] sm:$0x22]
  %v628 = vunpack.c.l.b16 %v624
  %v629 = vunpack.c.h.b16 %v624
  %v630 = vunpack.c.l.b16 %v625
  %v631 = vunpack.c.h.b16 %v625
  %v632 = vpack.c.b16 %v628, %v628
  %v633 = vpack.c.b16 %v629, %v629
  %v634 = vpack.c.b16 %v630, %v630
  %v635 = vpack.c.b16 %v631, %v631
  %v637 = vpack.i.b16 %v632, %v632
  %v639 = vperm.slane %v637, 1
  %v641 = vpack.i.b16 %v633, %v633
  %v643 = vperm.slane %v641, 1
  %v645 = vpack.i.b16 %v634, %v634
  %v647 = vperm.slane %v645, 1
  %v649 = vpack.i.b16 %v635, %v635
  %v651 = vperm.slane %v649, 1
  %v652 = vunpack.c.l.bf16 %v639
  %v653 = vunpack.c.l.bf16 %v643
  %v654 = vunpack.c.l.bf16 %v647
  %v655 = vunpack.c.l.bf16 %v651
  %660 = vrot.lane.b32.xlu0 %v652, 113
  %v661 = vpop.permute.xlu0 %660
  %662 = vrot.lane.b32.xlu0 %v653, 113
  %v663 = vpop.permute.xlu0 %662
  %664 = vrot.lane.b32.xlu0 %v654, 113
  %v665 = vpop.permute.xlu0 %664
  %666 = vrot.lane.b32.xlu0 %v655, 113
  %v667 = vpop.permute.xlu0 %666
  %vm668 = vcmask 924672
  %v669 = vsel %vm668, %v661, %v663
  %v670 = vsel %vm668, %v663, %v665
  %v671 = vsel %vm668, %v665, %v667
  %v677 = vmul.f32 %v348, %v661
  %v678 = vmul.f32 %v349, %v669
  %v679 = vmul.f32 %v350, %v670
  %v680 = vmul.f32 %v351, %v671
  %v681 = vmul.f32 %v352, %v667
  %v682 = vpack.c.bf16 %v677, %v677
  %v683 = vpack.c.bf16 %v678, %v678
  %v684 = vpack.c.bf16 %v679, %v679
  %v685 = vpack.c.bf16 %v680, %v680
  %v686 = vpack.c.bf16 %v681, %v681
  %s687 = scalar_lea.vmem %s5, 8
  %v688 = vld [vmem:[%s687] sm:$0xf]
  %694 = vrot.lane.b32.xlu0 %v682, 15
  %v695 = vpop.permute.xlu0 %694
  %696 = vrot.lane.b32.xlu0 %v683, 15
  %v697 = vpop.permute.xlu0 %696
  %698 = vrot.lane.b32.xlu0 %v684, 15
  %v699 = vpop.permute.xlu0 %698
  %700 = vrot.lane.b32.xlu0 %v685, 15
  %v701 = vpop.permute.xlu0 %700
  %702 = vrot.lane.b32.xlu0 %v686, 15
  %v703 = vpop.permute.xlu0 %702
  %vm704 = vcmask 121856
  %v705 = vsel %vm704, %v695, %v697
  %v706 = vsel %vm704, %v697, %v699
  %v707 = vsel %vm704, %v699, %v701
  %v708 = vsel %vm704, %v701, %v703
  %v710 = vsel %vm248, %v688, 0
  %v713 = vsel %vm252, %v705, 0
  %v716 = vsel %vm252, %v706, 0
  %v719 = vsel %vm252, %v707, 0
  %v722 = vsel %vm252, %v708, 0
  %724 = vmatpush.bf16.msra.mxu0 0
  %725 = vmatpush.bf16.msra.mxu0 0
  %726 = vmatpush.bf16.msra.mxu0 0
  %727 = vmatpush.bf16.msra.mxu0 0
  %728 = vmatpush.bf16.msra.mxu0 0
  %729 = vmatpush.bf16.msra.mxu0 0
  %730 = vmatpush.bf16.msra.mxu0 0
  %731 = vmatpush.bf16.msra.mxu0 %v713
  %732 = vmatmul.bf16.gmra.mxu0 %v710
  %v733 = vpop.f32.mrf.mxu0
  %v734 = vadd.f32 0.0, %v733
  %v735 = vpop.f32.mrf.mxu0
  %736 = vdwg.mxu0
  %737 = vmatpush.bf16.msra.mxu0 0
  %738 = vmatpush.bf16.msra.mxu0 0
  %739 = vmatpush.bf16.msra.mxu0 0
  %740 = vmatpush.bf16.msra.mxu0 0
  %741 = vmatpush.bf16.msra.mxu0 0
  %742 = vmatpush.bf16.msra.mxu0 0
  %743 = vmatpush.bf16.msra.mxu0 0
  %744 = vmatpush.bf16.msra.mxu0 %v716
  %745 = vmatmul.bf16.gmra.mxu0 %v710
  %v746 = vpop.f32.mrf.mxu0
  %v747 = vadd.f32 0.0, %v746
  %v748 = vpop.f32.mrf.mxu0
  %749 = vdwg.mxu0
  %750 = vmatpush.bf16.msra.mxu0 0
  %751 = vmatpush.bf16.msra.mxu0 0
  %752 = vmatpush.bf16.msra.mxu0 0
  %753 = vmatpush.bf16.msra.mxu0 0
  %754 = vmatpush.bf16.msra.mxu0 0
  %755 = vmatpush.bf16.msra.mxu0 0
  %756 = vmatpush.bf16.msra.mxu0 0
  %757 = vmatpush.bf16.msra.mxu0 %v719
  %758 = vmatmul.bf16.gmra.mxu0 %v710
  %v759 = vpop.f32.mrf.mxu0
  %v760 = vadd.f32 0.0, %v759
  %v761 = vpop.f32.mrf.mxu0
  %762 = vdwg.mxu0
  %763 = vmatpush.bf16.msra.mxu0 0
  %764 = vmatpush.bf16.msra.mxu0 0
  %765 = vmatpush.bf16.msra.mxu0 0
  %766 = vmatpush.bf16.msra.mxu0 0
  %767 = vmatpush.bf16.msra.mxu0 0
  %768 = vmatpush.bf16.msra.mxu0 0
  %769 = vmatpush.bf16.msra.mxu0 0
  %770 = vmatpush.bf16.msra.mxu0 %v722
  %771 = vmatmul.bf16.gmra.mxu0 %v710
  %v772 = vpop.f32.mrf.mxu0
  %v773 = vadd.f32 0.0, %v772
  %v774 = vpop.f32.mrf.mxu0
  %775 = vdwg.mxu0
  %v776 = vadd.f32 %v620, %v734
  %v777 = vadd.f32 %v621, %v747
  %v778 = vadd.f32 %v622, %v760
  %v779 = vadd.f32 %v623, %v773
  %v780 = vshrl.u32 %v632, 16
  %v781 = vpack.i.b16 %v780, %v780
  %v783 = vperm.slane %v781, 1
  %v784 = vshrl.u32 %v633, 16
  %v785 = vpack.i.b16 %v784, %v784
  %v787 = vperm.slane %v785, 1
  %v788 = vshrl.u32 %v634, 16
  %v789 = vpack.i.b16 %v788, %v788
  %v791 = vperm.slane %v789, 1
  %v792 = vshrl.u32 %v635, 16
  %v793 = vpack.i.b16 %v792, %v792
  %v795 = vperm.slane %v793, 1
  %v796 = vunpack.c.l.bf16 %v783
  %v797 = vunpack.c.l.bf16 %v787
  %v798 = vunpack.c.l.bf16 %v791
  %v799 = vunpack.c.l.bf16 %v795
  %804 = vrot.lane.b32.xlu0 %v796, 127
  %v805 = vpop.permute.xlu0 %804
  %806 = vrot.lane.b32.xlu0 %v797, 127
  %v807 = vpop.permute.xlu0 %806
  %808 = vrot.lane.b32.xlu0 %v798, 127
  %v809 = vpop.permute.xlu0 %808
  %810 = vrot.lane.b32.xlu0 %v799, 127
  %v811 = vpop.permute.xlu0 %810
  %vm812 = vcmask 1039360
  %v813 = vsel %vm812, %v805, %v807
  %v814 = vsel %vm812, %v807, %v809
  %v815 = vsel %vm812, %v809, %v811
  %v821 = vmul.f32 %v348, %v805
  %v822 = vmul.f32 %v349, %v813
  %v823 = vmul.f32 %v350, %v814
  %v824 = vmul.f32 %v351, %v815
  %v825 = vmul.f32 %v352, %v811
  %v826 = vpack.c.bf16 %v821, %v821
  %v827 = vpack.c.bf16 %v822, %v822
  %v828 = vpack.c.bf16 %v823, %v823
  %v829 = vpack.c.bf16 %v824, %v824
  %v830 = vpack.c.bf16 %v825, %v825
  %s831 = scalar_lea.vmem %s5, 12
  %v832 = vld [vmem:[%s831] sm:$0xf]
  %838 = vrot.lane.b32.xlu0 %v826, 1
  %v839 = vpop.permute.xlu0 %838
  %840 = vrot.lane.b32.xlu0 %v827, 1
  %v841 = vpop.permute.xlu0 %840
  %842 = vrot.lane.b32.xlu0 %v828, 1
  %v843 = vpop.permute.xlu0 %842
  %844 = vrot.lane.b32.xlu0 %v829, 1
  %v845 = vpop.permute.xlu0 %844
  %846 = vrot.lane.b32.xlu0 %v830, 1
  %v847 = vpop.permute.xlu0 %846
  %vm848 = vcmask 7168
  %v849 = vsel %vm848, %v839, %v841
  %v850 = vsel %vm848, %v841, %v843
  %v851 = vsel %vm848, %v843, %v845
  %v852 = vsel %vm848, %v845, %v847
  %v854 = vsel %vm248, %v832, 0
  %v857 = vsel %vm252, %v849, 0
  %v860 = vsel %vm252, %v850, 0
  %v863 = vsel %vm252, %v851, 0
  %v866 = vsel %vm252, %v852, 0
  %868 = vmatpush.bf16.msra.mxu0 0
  %869 = vmatpush.bf16.msra.mxu0 0
  %870 = vmatpush.bf16.msra.mxu0 0
  %871 = vmatpush.bf16.msra.mxu0 0
  %872 = vmatpush.bf16.msra.mxu0 0
  %873 = vmatpush.bf16.msra.mxu0 0
  %874 = vmatpush.bf16.msra.mxu0 0
  %875 = vmatpush.bf16.msra.mxu0 %v857
  %876 = vmatmul.bf16.gmra.mxu0 %v854
  %v877 = vpop.f32.mrf.mxu0
  %v878 = vadd.f32 0.0, %v877
  %v879 = vpop.f32.mrf.mxu0
  %880 = vdwg.mxu0
  %881 = vmatpush.bf16.msra.mxu0 0
  %882 = vmatpush.bf16.msra.mxu0 0
  %883 = vmatpush.bf16.msra.mxu0 0
  %884 = vmatpush.bf16.msra.mxu0 0
  %885 = vmatpush.bf16.msra.mxu0 0
  %886 = vmatpush.bf16.msra.mxu0 0
  %887 = vmatpush.bf16.msra.mxu0 0
  %888 = vmatpush.bf16.msra.mxu0 %v860
  %889 = vmatmul.bf16.gmra.mxu0 %v854
  %v890 = vpop.f32.mrf.mxu0
  %v891 = vadd.f32 0.0, %v890
  %v892 = vpop.f32.mrf.mxu0
  %893 = vdwg.mxu0
  %894 = vmatpush.bf16.msra.mxu0 0
  %895 = vmatpush.bf16.msra.mxu0 0
  %896 = vmatpush.bf16.msra.mxu0 0
  %897 = vmatpush.bf16.msra.mxu0 0
  %898 = vmatpush.bf16.msra.mxu0 0
  %899 = vmatpush.bf16.msra.mxu0 0
  %900 = vmatpush.bf16.msra.mxu0 0
  %901 = vmatpush.bf16.msra.mxu0 %v863
  %902 = vmatmul.bf16.gmra.mxu0 %v854
  %v903 = vpop.f32.mrf.mxu0
  %v904 = vadd.f32 0.0, %v903
  %v905 = vpop.f32.mrf.mxu0
  %906 = vdwg.mxu0
  %907 = vmatpush.bf16.msra.mxu0 0
  %908 = vmatpush.bf16.msra.mxu0 0
  %909 = vmatpush.bf16.msra.mxu0 0
  %910 = vmatpush.bf16.msra.mxu0 0
  %911 = vmatpush.bf16.msra.mxu0 0
  %912 = vmatpush.bf16.msra.mxu0 0
  %913 = vmatpush.bf16.msra.mxu0 0
  %914 = vmatpush.bf16.msra.mxu0 %v866
  %915 = vmatmul.bf16.gmra.mxu0 %v854
  %v916 = vpop.f32.mrf.mxu0
  %v917 = vadd.f32 0.0, %v916
  %v918 = vpop.f32.mrf.mxu0
  %919 = vdwg.mxu0
  %v920 = vadd.f32 %v776, %v878
  %v921 = vadd.f32 %v777, %v891
  %v922 = vadd.f32 %v778, %v904
  %v923 = vadd.f32 %v779, %v917
  %v924 = vld [vmem:[#allocation2 + $0x4] sm:$0xff]
  %v925 = vld [vmem:[#allocation2 + $0xc] sm:$0xff]
  %v926 = vld [vmem:[#allocation2 + $0x14] sm:$0xf]
  %v927 = vld [vmem:[%s3] sm:$0x44]
  %v928 = vld [vmem:[%s3 + $0x8] sm:$0x44]
  %v931 = vunpack.c.l.b16 %v927
  %v932 = vunpack.c.h.b16 %v927
  %v933 = vunpack.c.l.b16 %v928
  %v934 = vunpack.c.h.b16 %v928
  %v935 = vpack.c.b16 %v931, %v931
  %v936 = vpack.c.b16 %v932, %v932
  %v937 = vpack.c.b16 %v933, %v933
  %v938 = vpack.c.b16 %v934, %v934
  %v940 = vshrl.u32 %v935, 16
  %v941 = vpack.i.b16 %v940, %v940
  %v943 = vperm.slane %v941, 2
  %v945 = vshrl.u32 %v936, 16
  %v946 = vpack.i.b16 %v945, %v945
  %v948 = vperm.slane %v946, 2
  %v950 = vshrl.u32 %v937, 16
  %v951 = vpack.i.b16 %v950, %v950
  %v953 = vperm.slane %v951, 2
  %v955 = vshrl.u32 %v938, 16
  %v956 = vpack.i.b16 %v955, %v955
  %v958 = vperm.slane %v956, 2
  %v959 = vunpack.c.l.bf16 %v924
  %v960 = vunpack.c.h.bf16 %v924
  %v961 = vunpack.c.l.bf16 %v925
  %v962 = vunpack.c.h.bf16 %v925
  %v963 = vunpack.c.l.bf16 %v926
  %v964 = vunpack.c.l.bf16 %v943
  %v965 = vunpack.c.l.bf16 %v948
  %v966 = vunpack.c.l.bf16 %v953
  %v967 = vunpack.c.l.bf16 %v958
  %972 = vrot.lane.b32.xlu0 %v964, 1
  %v973 = vpop.permute.xlu0 %972
  %974 = vrot.lane.b32.xlu0 %v965, 1
  %v975 = vpop.permute.xlu0 %974
  %976 = vrot.lane.b32.xlu0 %v966, 1
  %v977 = vpop.permute.xlu0 %976
  %978 = vrot.lane.b32.xlu0 %v967, 1
  %v979 = vpop.permute.xlu0 %978
  %vm980 = vcmask 7168
  %v981 = vsel %vm980, %v973, %v975
  %v982 = vsel %vm980, %v975, %v977
  %v983 = vsel %vm980, %v977, %v979
  %v989 = vmul.f32 %v959, %v973
  %v990 = vmul.f32 %v960, %v981
  %v991 = vmul.f32 %v961, %v982
  %v992 = vmul.f32 %v962, %v983
  %v993 = vmul.f32 %v963, %v979
  %v994 = vpack.c.bf16 %v989, %v989
  %v995 = vpack.c.bf16 %v990, %v990
  %v996 = vpack.c.bf16 %v991, %v991
  %v997 = vpack.c.bf16 %v992, %v992
  %v998 = vpack.c.bf16 %v993, %v993
  %s999 = scalar_lea.vmem %s5, 20
  %v1000 = vld [vmem:[%s999] sm:$0xf]
  %1006 = vrot.lane.b32.xlu0 %v994, 127
  %v1007 = vpop.permute.xlu0 %1006
  %1008 = vrot.lane.b32.xlu0 %v995, 127
  %v1009 = vpop.permute.xlu0 %1008
  %1010 = vrot.lane.b32.xlu0 %v996, 127
  %v1011 = vpop.permute.xlu0 %1010
  %1012 = vrot.lane.b32.xlu0 %v997, 127
  %v1013 = vpop.permute.xlu0 %1012
  %1014 = vrot.lane.b32.xlu0 %v998, 127
  %v1015 = vpop.permute.xlu0 %1014
  %vm1016 = vcmask 1039360
  %v1017 = vsel %vm1016, %v1007, %v1009
  %v1018 = vsel %vm1016, %v1009, %v1011
  %v1019 = vsel %vm1016, %v1011, %v1013
  %v1020 = vsel %vm1016, %v1013, %v1015
  %v1022 = vsel %vm248, %v1000, 0
  %v1025 = vsel %vm252, %v1017, 0
  %v1028 = vsel %vm252, %v1018, 0
  %v1031 = vsel %vm252, %v1019, 0
  %v1034 = vsel %vm252, %v1020, 0
  %1036 = vmatpush.bf16.msra.mxu0 0
  %1037 = vmatpush.bf16.msra.mxu0 0
  %1038 = vmatpush.bf16.msra.mxu0 0
  %1039 = vmatpush.bf16.msra.mxu0 0
  %1040 = vmatpush.bf16.msra.mxu0 0
  %1041 = vmatpush.bf16.msra.mxu0 0
  %1042 = vmatpush.bf16.msra.mxu0 0
  %1043 = vmatpush.bf16.msra.mxu0 %v1025
  %1044 = vmatmul.bf16.gmra.mxu0 %v1022
  %v1045 = vpop.f32.mrf.mxu0
  %v1046 = vadd.f32 0.0, %v1045
  %v1047 = vpop.f32.mrf.mxu0
  %1048 = vdwg.mxu0
  %1049 = vmatpush.bf16.msra.mxu0 0
  %1050 = vmatpush.bf16.msra.mxu0 0
  %1051 = vmatpush.bf16.msra.mxu0 0
  %1052 = vmatpush.bf16.msra.mxu0 0
  %1053 = vmatpush.bf16.msra.mxu0 0
  %1054 = vmatpush.bf16.msra.mxu0 0
  %1055 = vmatpush.bf16.msra.mxu0 0
  %1056 = vmatpush.bf16.msra.mxu0 %v1028
  %1057 = vmatmul.bf16.gmra.mxu0 %v1022
  %v1058 = vpop.f32.mrf.mxu0
  %v1059 = vadd.f32 0.0, %v1058
  %v1060 = vpop.f32.mrf.mxu0
  %1061 = vdwg.mxu0
  %1062 = vmatpush.bf16.msra.mxu0 0
  %1063 = vmatpush.bf16.msra.mxu0 0
  %1064 = vmatpush.bf16.msra.mxu0 0
  %1065 = vmatpush.bf16.msra.mxu0 0
  %1066 = vmatpush.bf16.msra.mxu0 0
  %1067 = vmatpush.bf16.msra.mxu0 0
  %1068 = vmatpush.bf16.msra.mxu0 0
  %1069 = vmatpush.bf16.msra.mxu0 %v1031
  %1070 = vmatmul.bf16.gmra.mxu0 %v1022
  %v1071 = vpop.f32.mrf.mxu0
  %v1072 = vadd.f32 0.0, %v1071
  %v1073 = vpop.f32.mrf.mxu0
  %1074 = vdwg.mxu0
  %1075 = vmatpush.bf16.msra.mxu0 0
  %1076 = vmatpush.bf16.msra.mxu0 0
  %1077 = vmatpush.bf16.msra.mxu0 0
  %1078 = vmatpush.bf16.msra.mxu0 0
  %1079 = vmatpush.bf16.msra.mxu0 0
  %1080 = vmatpush.bf16.msra.mxu0 0
  %1081 = vmatpush.bf16.msra.mxu0 0
  %1082 = vmatpush.bf16.msra.mxu0 %v1034
  %1083 = vmatmul.bf16.gmra.mxu0 %v1022
  %v1084 = vpop.f32.mrf.mxu0
  %v1085 = vadd.f32 0.0, %v1084
  %v1086 = vpop.f32.mrf.mxu0
  %1087 = vdwg.mxu0
  %v1088 = vadd.f32 %v920, %v1046
  %v1089 = vadd.f32 %v921, %v1059
  %v1090 = vadd.f32 %v922, %v1072
  %v1091 = vadd.f32 %v923, %v1085
  %v1092 = vld [vmem:[%s3] sm:$0x88]
  %v1093 = vld [vmem:[%s3 + $0x8] sm:$0x88]
  %v1096 = vunpack.c.l.b16 %v1092
  %v1097 = vunpack.c.h.b16 %v1092
  %v1098 = vunpack.c.l.b16 %v1093
  %v1099 = vunpack.c.h.b16 %v1093
  %v1100 = vpack.c.b16 %v1096, %v1096
  %v1101 = vpack.c.b16 %v1097, %v1097
  %v1102 = vpack.c.b16 %v1098, %v1098
  %v1103 = vpack.c.b16 %v1099, %v1099
  %v1105 = vpack.i.b16 %v1100, %v1100
  %v1107 = vperm.slane %v1105, 3
  %v1109 = vpack.i.b16 %v1101, %v1101
  %v1111 = vperm.slane %v1109, 3
  %v1113 = vpack.i.b16 %v1102, %v1102
  %v1115 = vperm.slane %v1113, 3
  %v1117 = vpack.i.b16 %v1103, %v1103
  %v1119 = vperm.slane %v1117, 3
  %v1120 = vunpack.c.l.bf16 %v1107
  %v1121 = vunpack.c.l.bf16 %v1111
  %v1122 = vunpack.c.l.bf16 %v1115
  %v1123 = vunpack.c.l.bf16 %v1119
  %1128 = vrot.lane.b32.xlu0 %v1120, 15
  %v1129 = vpop.permute.xlu0 %1128
  %1130 = vrot.lane.b32.xlu0 %v1121, 15
  %v1131 = vpop.permute.xlu0 %1130
  %1132 = vrot.lane.b32.xlu0 %v1122, 15
  %v1133 = vpop.permute.xlu0 %1132
  %1134 = vrot.lane.b32.xlu0 %v1123, 15
  %v1135 = vpop.permute.xlu0 %1134
  %vm1136 = vcmask 121856
  %v1137 = vsel %vm1136, %v1129, %v1131
  %v1138 = vsel %vm1136, %v1131, %v1133
  %v1139 = vsel %vm1136, %v1133, %v1135
  %v1145 = vmul.f32 %v959, %v1129
  %v1146 = vmul.f32 %v960, %v1137
  %v1147 = vmul.f32 %v961, %v1138
  %v1148 = vmul.f32 %v962, %v1139
  %v1149 = vmul.f32 %v963, %v1135
  %v1150 = vpack.c.bf16 %v1145, %v1145
  %v1151 = vpack.c.bf16 %v1146, %v1146
  %v1152 = vpack.c.bf16 %v1147, %v1147
  %v1153 = vpack.c.bf16 %v1148, %v1148
  %v1154 = vpack.c.bf16 %v1149, %v1149
  %s1155 = scalar_lea.vmem %s5, 24
  %v1156 = vld [vmem:[%s1155] sm:$0xf]
  %1162 = vrot.lane.b32.xlu0 %v1150, 113
  %v1163 = vpop.permute.xlu0 %1162
  %1164 = vrot.lane.b32.xlu0 %v1151, 113
  %v1165 = vpop.permute.xlu0 %1164
  %1166 = vrot.lane.b32.xlu0 %v1152, 113
  %v1167 = vpop.permute.xlu0 %1166
  %1168 = vrot.lane.b32.xlu0 %v1153, 113
  %v1169 = vpop.permute.xlu0 %1168
  %1170 = vrot.lane.b32.xlu0 %v1154, 113
  %v1171 = vpop.permute.xlu0 %1170
  %vm1172 = vcmask 924672
  %v1173 = vsel %vm1172, %v1163, %v1165
  %v1174 = vsel %vm1172, %v1165, %v1167
  %v1175 = vsel %vm1172, %v1167, %v1169
  %v1176 = vsel %vm1172, %v1169, %v1171
  %v1178 = vsel %vm248, %v1156, 0
  %v1181 = vsel %vm252, %v1173, 0
  %v1184 = vsel %vm252, %v1174, 0
  %v1187 = vsel %vm252, %v1175, 0
  %v1190 = vsel %vm252, %v1176, 0
  %1192 = vmatpush.bf16.msra.mxu0 0
  %1193 = vmatpush.bf16.msra.mxu0 0
  %1194 = vmatpush.bf16.msra.mxu0 0
  %1195 = vmatpush.bf16.msra.mxu0 0
  %1196 = vmatpush.bf16.msra.mxu0 0
  %1197 = vmatpush.bf16.msra.mxu0 0
  %1198 = vmatpush.bf16.msra.mxu0 0
  %1199 = vmatpush.bf16.msra.mxu0 %v1181
  %1200 = vmatmul.bf16.gmra.mxu0 %v1178
  %v1201 = vpop.f32.mrf.mxu0
  %v1202 = vadd.f32 0.0, %v1201
  %v1203 = vpop.f32.mrf.mxu0
  %1204 = vdwg.mxu0
  %1205 = vmatpush.bf16.msra.mxu0 0
  %1206 = vmatpush.bf16.msra.mxu0 0
  %1207 = vmatpush.bf16.msra.mxu0 0
  %1208 = vmatpush.bf16.msra.mxu0 0
  %1209 = vmatpush.bf16.msra.mxu0 0
  %1210 = vmatpush.bf16.msra.mxu0 0
  %1211 = vmatpush.bf16.msra.mxu0 0
  %1212 = vmatpush.bf16.msra.mxu0 %v1184
  %1213 = vmatmul.bf16.gmra.mxu0 %v1178
  %v1214 = vpop.f32.mrf.mxu0
  %v1215 = vadd.f32 0.0, %v1214
  %v1216 = vpop.f32.mrf.mxu0
  %1217 = vdwg.mxu0
  %1218 = vmatpush.bf16.msra.mxu0 0
  %1219 = vmatpush.bf16.msra.mxu0 0
  %1220 = vmatpush.bf16.msra.mxu0 0
  %1221 = vmatpush.bf16.msra.mxu0 0
  %1222 = vmatpush.bf16.msra.mxu0 0
  %1223 = vmatpush.bf16.msra.mxu0 0
  %1224 = vmatpush.bf16.msra.mxu0 0
  %1225 = vmatpush.bf16.msra.mxu0 %v1187
  %1226 = vmatmul.bf16.gmra.mxu0 %v1178
  %v1227 = vpop.f32.mrf.mxu0
  %v1228 = vadd.f32 0.0, %v1227
  %v1229 = vpop.f32.mrf.mxu0
  %1230 = vdwg.mxu0
  %1231 = vmatpush.bf16.msra.mxu0 0
  %1232 = vmatpush.bf16.msra.mxu0 0
  %1233 = vmatpush.bf16.msra.mxu0 0
  %1234 = vmatpush.bf16.msra.mxu0 0
  %1235 = vmatpush.bf16.msra.mxu0 0
  %1236 = vmatpush.bf16.msra.mxu0 0
  %1237 = vmatpush.bf16.msra.mxu0 0
  %1238 = vmatpush.bf16.msra.mxu0 %v1190
  %1239 = vmatmul.bf16.gmra.mxu0 %v1178
  %v1240 = vpop.f32.mrf.mxu0
  %v1241 = vadd.f32 0.0, %v1240
  %v1242 = vpop.f32.mrf.mxu0
  %1243 = vdwg.mxu0
  %v1244 = vadd.f32 %v1088, %v1202
  %v1245 = vadd.f32 %v1089, %v1215
  %v1246 = vadd.f32 %v1090, %v1228
  %v1247 = vadd.f32 %v1091, %v1241
  %v1248 = vshrl.u32 %v1100, 16
  %v1249 = vpack.i.b16 %v1248, %v1248
  %v1251 = vperm.slane %v1249, 3
  %v1252 = vshrl.u32 %v1101, 16
  %v1253 = vpack.i.b16 %v1252, %v1252
  %v1255 = vperm.slane %v1253, 3
  %v1256 = vshrl.u32 %v1102, 16
  %v1257 = vpack.i.b16 %v1256, %v1256
  %v1259 = vperm.slane %v1257, 3
  %v1260 = vshrl.u32 %v1103, 16
  %v1261 = vpack.i.b16 %v1260, %v1260
  %v1263 = vperm.slane %v1261, 3
  %v1264 = vunpack.c.l.bf16 %v1251
  %v1265 = vunpack.c.l.bf16 %v1255
  %v1266 = vunpack.c.l.bf16 %v1259
  %v1267 = vunpack.c.l.bf16 %v1263
  %1272 = vrot.lane.b32.xlu0 %v1264, 16
  %v1273 = vpop.permute.xlu0 %1272
  %1274 = vrot.lane.b32.xlu0 %v1265, 16
  %v1275 = vpop.permute.xlu0 %1274
  %1276 = vrot.lane.b32.xlu0 %v1266, 16
  %v1277 = vpop.permute.xlu0 %1276
  %1278 = vrot.lane.b32.xlu0 %v1267, 16
  %v1279 = vpop.permute.xlu0 %1278
  %vm1280 = vcmask 130048
  %v1281 = vsel %vm1280, %v1273, %v1275
  %v1282 = vsel %vm1280, %v1275, %v1277
  %v1283 = vsel %vm1280, %v1277, %v1279
  %v1289 = vmul.f32 %v959, %v1273
  %v1290 = vmul.f32 %v960, %v1281
  %v1291 = vmul.f32 %v961, %v1282
  %v1292 = vmul.f32 %v962, %v1283
  %v1293 = vmul.f32 %v963, %v1279
  %v1294 = vpack.c.bf16 %v1289, %v1289
  %v1295 = vpack.c.bf16 %v1290, %v1290
  %v1296 = vpack.c.bf16 %v1291, %v1291
  %v1297 = vpack.c.bf16 %v1292, %v1292
  %v1298 = vpack.c.bf16 %v1293, %v1293
  %s1299 = scalar_lea.vmem %s5, 28
  %v1300 = vld [vmem:[%s1299] sm:$0xf]
  %1306 = vrot.lane.b32.xlu0 %v1294, 112
  %v1307 = vpop.permute.xlu0 %1306
  %1308 = vrot.lane.b32.xlu0 %v1295, 112
  %v1309 = vpop.permute.xlu0 %1308
  %1310 = vrot.lane.b32.xlu0 %v1296, 112
  %v1311 = vpop.permute.xlu0 %1310
  %1312 = vrot.lane.b32.xlu0 %v1297, 112
  %v1313 = vpop.permute.xlu0 %1312
  %1314 = vrot.lane.b32.xlu0 %v1298, 112
  %v1315 = vpop.permute.xlu0 %1314
  %vm1316 = vcmask 916480
  %v1317 = vsel %vm1316, %v1307, %v1309
  %v1318 = vsel %vm1316, %v1309, %v1311
  %v1319 = vsel %vm1316, %v1311, %v1313
  %v1320 = vsel %vm1316, %v1313, %v1315
  %v1322 = vsel %vm248, %v1300, 0
  %v1325 = vsel %vm252, %v1317, 0
  %v1328 = vsel %vm252, %v1318, 0
  %v1331 = vsel %vm252, %v1319, 0
  %v1334 = vsel %vm252, %v1320, 0
  %1336 = vmatpush.bf16.msra.mxu0 0
  %1337 = vmatpush.bf16.msra.mxu0 0
  %1338 = vmatpush.bf16.msra.mxu0 0
  %1339 = vmatpush.bf16.msra.mxu0 0
  %1340 = vmatpush.bf16.msra.mxu0 0
  %1341 = vmatpush.bf16.msra.mxu0 0
  %1342 = vmatpush.bf16.msra.mxu0 0
  %1343 = vmatpush.bf16.msra.mxu0 %v1325
  %1344 = vmatmul.bf16.gmra.mxu0 %v1322
  %v1345 = vpop.f32.mrf.mxu0
  %v1346 = vadd.f32 0.0, %v1345
  %v1347 = vpop.f32.mrf.mxu0
  %1348 = vdwg.mxu0
  %1349 = vmatpush.bf16.msra.mxu0 0
  %1350 = vmatpush.bf16.msra.mxu0 0
  %1351 = vmatpush.bf16.msra.mxu0 0
  %1352 = vmatpush.bf16.msra.mxu0 0
  %1353 = vmatpush.bf16.msra.mxu0 0
  %1354 = vmatpush.bf16.msra.mxu0 0
  %1355 = vmatpush.bf16.msra.mxu0 0
  %1356 = vmatpush.bf16.msra.mxu0 %v1328
  %1357 = vmatmul.bf16.gmra.mxu0 %v1322
  %v1358 = vpop.f32.mrf.mxu0
  %v1359 = vadd.f32 0.0, %v1358
  %v1360 = vpop.f32.mrf.mxu0
  %1361 = vdwg.mxu0
  %1362 = vmatpush.bf16.msra.mxu0 0
  %1363 = vmatpush.bf16.msra.mxu0 0
  %1364 = vmatpush.bf16.msra.mxu0 0
  %1365 = vmatpush.bf16.msra.mxu0 0
  %1366 = vmatpush.bf16.msra.mxu0 0
  %1367 = vmatpush.bf16.msra.mxu0 0
  %1368 = vmatpush.bf16.msra.mxu0 0
  %1369 = vmatpush.bf16.msra.mxu0 %v1331
  %1370 = vmatmul.bf16.gmra.mxu0 %v1322
  %v1371 = vpop.f32.mrf.mxu0
  %v1372 = vadd.f32 0.0, %v1371
  %v1373 = vpop.f32.mrf.mxu0
  %1374 = vdwg.mxu0
  %1375 = vmatpush.bf16.msra.mxu0 0
  %1376 = vmatpush.bf16.msra.mxu0 0
  %1377 = vmatpush.bf16.msra.mxu0 0
  %1378 = vmatpush.bf16.msra.mxu0 0
  %1379 = vmatpush.bf16.msra.mxu0 0
  %1380 = vmatpush.bf16.msra.mxu0 0
  %1381 = vmatpush.bf16.msra.mxu0 0
  %1382 = vmatpush.bf16.msra.mxu0 %v1334
  %1383 = vmatmul.bf16.gmra.mxu0 %v1322
  %v1384 = vpop.f32.mrf.mxu0
  %v1385 = vadd.f32 0.0, %v1384
  %v1386 = vpop.f32.mrf.mxu0
  %1387 = vdwg.mxu0
  %v1388 = vadd.f32 %v1244, %v1346
  %v1389 = vadd.f32 %v1245, %v1359
  %v1390 = vadd.f32 %v1246, %v1372
  %v1391 = vadd.f32 %v1247, %v1385
  %v1392 = vld [vmem:[%s3 + $0x10] sm:$0x11]
  %v1393 = vld [vmem:[%s3 + $0x18] sm:$0x11]
  %v1396 = vunpack.c.l.b16 %v1392
  %v1397 = vunpack.c.h.b16 %v1392
  %v1398 = vunpack.c.l.b16 %v1393
  %v1399 = vunpack.c.h.b16 %v1393
  %v1400 = vpack.c.b16 %v1396, %v1396
  %v1401 = vpack.c.b16 %v1397, %v1397
  %v1402 = vpack.c.b16 %v1398, %v1398
  %v1403 = vpack.c.b16 %v1399, %v1399
  %v1405 = vpack.i.b16 %v1400, %v1400
  %v1407 = vperm.slane %v1405, 0
  %v1409 = vpack.i.b16 %v1401, %v1401
  %v1411 = vperm.slane %v1409, 0
  %v1413 = vpack.i.b16 %v1402, %v1402
  %v1415 = vperm.slane %v1413, 0
  %v1417 = vpack.i.b16 %v1403, %v1403
  %v1419 = vperm.slane %v1417, 0
  %v1420 = vunpack.c.l.bf16 %v1407
  %v1421 = vunpack.c.l.bf16 %v1411
  %v1422 = vunpack.c.l.bf16 %v1415
  %v1423 = vunpack.c.l.bf16 %v1419
  %1428 = vrot.lane.b32.xlu0 %v1420, 17
  %v1429 = vpop.permute.xlu0 %1428
  %1430 = vrot.lane.b32.xlu0 %v1421, 17
  %v1431 = vpop.permute.xlu0 %1430
  %1432 = vrot.lane.b32.xlu0 %v1422, 17
  %v1433 = vpop.permute.xlu0 %1432
  %1434 = vrot.lane.b32.xlu0 %v1423, 17
  %v1435 = vpop.permute.xlu0 %1434
  %vm1436 = vcmask 138240
  %v1437 = vsel %vm1436, %v1429, %v1431
  %v1438 = vsel %vm1436, %v1431, %v1433
  %v1439 = vsel %vm1436, %v1433, %v1435
  %v1445 = vmul.f32 %v959, %v1429
  %v1446 = vmul.f32 %v960, %v1437
  %v1447 = vmul.f32 %v961, %v1438
  %v1448 = vmul.f32 %v962, %v1439
  %v1449 = vmul.f32 %v963, %v1435
  %v1450 = vpack.c.bf16 %v1445, %v1445
  %v1451 = vpack.c.bf16 %v1446, %v1446
  %v1452 = vpack.c.bf16 %v1447, %v1447
  %v1453 = vpack.c.bf16 %v1448, %v1448
  %v1454 = vpack.c.bf16 %v1449, %v1449
  %s1455 = scalar_lea.vmem %s5, 32
  %v1456 = vld [vmem:[%s1455] sm:$0xf]
  %1462 = vrot.lane.b32.xlu0 %v1450, 111
  %v1463 = vpop.permute.xlu0 %1462
  %1464 = vrot.lane.b32.xlu0 %v1451, 111
  %v1465 = vpop.permute.xlu0 %1464
  %1466 = vrot.lane.b32.xlu0 %v1452, 111
  %v1467 = vpop.permute.xlu0 %1466
  %1468 = vrot.lane.b32.xlu0 %v1453, 111
  %v1469 = vpop.permute.xlu0 %1468
  %1470 = vrot.lane.b32.xlu0 %v1454, 111
  %v1471 = vpop.permute.xlu0 %1470
  %vm1472 = vcmask 908288
  %v1473 = vsel %vm1472, %v1463, %v1465
  %v1474 = vsel %vm1472, %v1465, %v1467
  %v1475 = vsel %vm1472, %v1467, %v1469
  %v1476 = vsel %vm1472, %v1469, %v1471
  %v1478 = vsel %vm248, %v1456, 0
  %v1481 = vsel %vm252, %v1473, 0
  %v1484 = vsel %vm252, %v1474, 0
  %v1487 = vsel %vm252, %v1475, 0
  %v1490 = vsel %vm252, %v1476, 0
  %1492 = vmatpush.bf16.msra.mxu0 0
  %1493 = vmatpush.bf16.msra.mxu0 0
  %1494 = vmatpush.bf16.msra.mxu0 0
  %1495 = vmatpush.bf16.msra.mxu0 0
  %1496 = vmatpush.bf16.msra.mxu0 0
  %1497 = vmatpush.bf16.msra.mxu0 0
  %1498 = vmatpush.bf16.msra.mxu0 0
  %1499 = vmatpush.bf16.msra.mxu0 %v1481
  %1500 = vmatmul.bf16.gmra.mxu0 %v1478
  %v1501 = vpop.f32.mrf.mxu0
  %v1502 = vadd.f32 0.0, %v1501
  %v1503 = vpop.f32.mrf.mxu0
  %1504 = vdwg.mxu0
  %1505 = vmatpush.bf16.msra.mxu0 0
  %1506 = vmatpush.bf16.msra.mxu0 0
  %1507 = vmatpush.bf16.msra.mxu0 0
  %1508 = vmatpush.bf16.msra.mxu0 0
  %1509 = vmatpush.bf16.msra.mxu0 0
  %1510 = vmatpush.bf16.msra.mxu0 0
  %1511 = vmatpush.bf16.msra.mxu0 0
  %1512 = vmatpush.bf16.msra.mxu0 %v1484
  %1513 = vmatmul.bf16.gmra.mxu0 %v1478
  %v1514 = vpop.f32.mrf.mxu0
  %v1515 = vadd.f32 0.0, %v1514
  %v1516 = vpop.f32.mrf.mxu0
  %1517 = vdwg.mxu0
  %1518 = vmatpush.bf16.msra.mxu0 0
  %1519 = vmatpush.bf16.msra.mxu0 0
  %1520 = vmatpush.bf16.msra.mxu0 0
  %1521 = vmatpush.bf16.msra.mxu0 0
  %1522 = vmatpush.bf16.msra.mxu0 0
  %1523 = vmatpush.bf16.msra.mxu0 0
  %1524 = vmatpush.bf16.msra.mxu0 0
  %1525 = vmatpush.bf16.msra.mxu0 %v1487
  %1526 = vmatmul.bf16.gmra.mxu0 %v1478
  %v1527 = vpop.f32.mrf.mxu0
  %v1528 = vadd.f32 0.0, %v1527
  %v1529 = vpop.f32.mrf.mxu0
  %1530 = vdwg.mxu0
  %1531 = vmatpush.bf16.msra.mxu0 0
  %1532 = vmatpush.bf16.msra.mxu0 0
  %1533 = vmatpush.bf16.msra.mxu0 0
  %1534 = vmatpush.bf16.msra.mxu0 0
  %1535 = vmatpush.bf16.msra.mxu0 0
  %1536 = vmatpush.bf16.msra.mxu0 0
  %1537 = vmatpush.bf16.msra.mxu0 0
  %1538 = vmatpush.bf16.msra.mxu0 %v1490
  %1539 = vmatmul.bf16.gmra.mxu0 %v1478
  %v1540 = vpop.f32.mrf.mxu0
  %v1541 = vadd.f32 0.0, %v1540
  %v1542 = vpop.f32.mrf.mxu0
  %1543 = vdwg.mxu0
  %v1544 = vadd.f32 %v1388, %v1502
  %v1545 = vadd.f32 %v1389, %v1515
  %v1546 = vadd.f32 %v1390, %v1528
  %v1547 = vadd.f32 %v1391, %v1541
  %v1548 = vrot.slane %v1544, 4
  %vm1549 = vcmask 1047556
  %v1550 = vsel %vm1549, 0.0, %v1548
  %v1552 = vunpack.c.l.s4 1983009808
  %v1553 = vunpack.c.0.s8 %v1552
  %v1554 = vperm.slane %v1544, %v1553
  %v1556 = vunpack.c.l.s4 1983009808
  %v1557 = vunpack.c.0.s8 %v1556
  %v1558 = vperm.slane %v1550, %v1557
  %v1559 = vrot.slane %v1545, 4
  %v1560 = vsel %vm1549, 0.0, %v1559
  %v1562 = vunpack.c.l.s4 1983009808
  %v1563 = vunpack.c.0.s8 %v1562
  %v1564 = vperm.slane %v1545, %v1563
  %v1566 = vunpack.c.l.s4 1983009808
  %v1567 = vunpack.c.0.s8 %v1566
  %v1568 = vperm.slane %v1560, %v1567
  %v1569 = vrot.slane %v1564, 4
  %v1570 = vsel %vm1549, %v1569, %v1554
  %v1571 = vrot.slane %v1554, 4
  %v1572 = vsel %vm1549, %v1564, %v1571
  %v1574 = vunpack.c.l.s4 1934713408
  %v1575 = vunpack.c.0.s8 %v1574
  %v1576 = vperm.slane %v1570, %v1575
  %v1578 = vunpack.c.l.s4 1934713408
  %v1579 = vunpack.c.0.s8 %v1578
  %v1580 = vperm.slane %v1572, %v1579
  %v1581 = vrot.slane %v1568, 4
  %v1582 = vsel %vm1549, %v1581, %v1558
  %v1583 = vrot.slane %v1558, 4
  %v1584 = vsel %vm1549, %v1568, %v1583
  %v1586 = vunpack.c.l.s4 1934713408
  %v1587 = vunpack.c.0.s8 %v1586
  %v1588 = vperm.slane %v1582, %v1587
  %v1590 = vunpack.c.l.s4 1934713408
  %v1591 = vunpack.c.0.s8 %v1590
  %v1592 = vperm.slane %v1584, %v1591
  %v1593 = vrot.slane %v1576, 4
  %v1594 = vsel %vm1549, 0.0, %v1593
  %v1595 = vrot.slane %v1580, 4
  %v1596 = vsel %vm1549, 0.0, %v1595
  %v1597 = vrot.slane %v1588, 4
  %v1598 = vsel %vm1549, 0.0, %v1597
  %v1599 = vrot.slane %v1592, 4
  %v1600 = vsel %vm1549, 0.0, %v1599
  %vm1601 = vcmask 1041408
  %v1602 = vsel %vm1601, %v1576, 0.0
  %v1603 = vrot.slane %v1602, 4
  %v1604 = vadd.f32 %v1602, %v1603
  %v1605 = vrot.slane %v1604, 2
  %v1606 = vadd.f32 %v1604, %v1605
  %v1607 = vrot.slane %v1606, 1
  %v1608 = vadd.f32 %v1606, %v1607
  %v1609 = vsel %vm1601, %v1594, 0.0
  %v1610 = vrot.slane %v1609, 4
  %v1611 = vadd.f32 %v1609, %v1610
  %v1612 = vrot.slane %v1611, 2
  %v1613 = vadd.f32 %v1611, %v1612
  %v1614 = vrot.slane %v1613, 1
  %v1615 = vadd.f32 %v1613, %v1614
  %v1616 = vsel %vm1601, %v1580, 0.0
  %v1617 = vrot.slane %v1616, 4
  %v1618 = vadd.f32 %v1616, %v1617
  %v1619 = vrot.slane %v1618, 2
  %v1620 = vadd.f32 %v1618, %v1619
  %v1621 = vrot.slane %v1620, 1
  %v1622 = vadd.f32 %v1620, %v1621
  %v1623 = vsel %vm1601, %v1596, 0.0
  %v1624 = vrot.slane %v1623, 4
  %v1625 = vadd.f32 %v1623, %v1624
  %v1626 = vrot.slane %v1625, 2
  %v1627 = vadd.f32 %v1625, %v1626
  %v1628 = vrot.slane %v1627, 1
  %v1629 = vadd.f32 %v1627, %v1628
  %v1630 = vsel %vm1601, %v1588, 0.0
  %v1631 = vrot.slane %v1630, 4
  %v1632 = vadd.f32 %v1630, %v1631
  %v1633 = vrot.slane %v1632, 2
  %v1634 = vadd.f32 %v1632, %v1633
  %v1635 = vrot.slane %v1634, 1
  %v1636 = vadd.f32 %v1634, %v1635
  %v1637 = vsel %vm1601, %v1598, 0.0
  %v1638 = vrot.slane %v1637, 4
  %v1639 = vadd.f32 %v1637, %v1638
  %v1640 = vrot.slane %v1639, 2
  %v1641 = vadd.f32 %v1639, %v1640
  %v1642 = vrot.slane %v1641, 1
  %v1643 = vadd.f32 %v1641, %v1642
  %v1644 = vsel %vm1601, %v1592, 0.0
  %v1645 = vrot.slane %v1644, 4
  %v1646 = vadd.f32 %v1644, %v1645
  %v1647 = vrot.slane %v1646, 2
  %v1648 = vadd.f32 %v1646, %v1647
  %v1649 = vrot.slane %v1648, 1
  %v1650 = vadd.f32 %v1648, %v1649
  %v1651 = vsel %vm1601, %v1600, 0.0
  %v1652 = vrot.slane %v1651, 4
  %v1653 = vadd.f32 %v1651, %v1652
  %v1654 = vrot.slane %v1653, 2
  %v1655 = vadd.f32 %v1653, %v1654
  %v1656 = vrot.slane %v1655, 1
  %v1657 = vadd.f32 %v1655, %v1656
  %v1658 = vld [vmem:[%s4] sm:$0xff]
  %vm1667 = vcmask 1041409
  %v1668 = vsel %vm1667, %v1615, %v1608
  %vm1669 = vcmask 1042434
  %v1670 = vsel %vm1669, %v1622, %v1668
  %vm1671 = vcmask 1043459
  %v1672 = vsel %vm1671, %v1629, %v1670
  %vm1673 = vcmask 1044484
  %v1674 = vsel %vm1673, %v1636, %v1672
  %vm1675 = vcmask 1045509
  %v1676 = vsel %vm1675, %v1643, %v1674
  %vm1677 = vcmask 1046534
  %v1678 = vsel %vm1677, %v1650, %v1676
  %vm1679 = vcmask 1047559
  %v1680 = vsel %vm1679, %v1657, %v1678
  %v1683 = vsel %vm248, %v1658, 0
  %1685 = vmatpush.msra.mxu0 0.0
  %1686 = vmatpush.msra.mxu0 0.0
  %1687 = vmatpush.msra.mxu0 0.0
  %1688 = vmatpush.msra.mxu0 0.0
  %1689 = vmatpush.msra.mxu0 0.0
  %1690 = vmatpush.msra.mxu0 0.0
  %1691 = vmatpush.msra.mxu0 0.0
  %1692 = vmatpush.msra.mxu0 0.0
  %1693 = vmatpush.msra.mxu0 0.0
  %1694 = vmatpush.msra.mxu0 0.0
  %1695 = vmatpush.msra.mxu0 0.0
  %1696 = vmatpush.msra.mxu0 0.0
  %1697 = vmatpush.msra.mxu0 0.0
  %1698 = vmatpush.msra.mxu0 0.0
  %1699 = vmatpush.msra.mxu0 0.0
  %1700 = vmatpush.msra.mxu0 %v1680
  %1701 = vmatmul.f32.gmra.mxu0 %v1683
  %v1702 = vpop.f32.mrf.mxu0
  %v1703 = vadd.f32 0.0, %v1702
  %1704 = vdwg.mxu0
  %1705 = vadd.xlane.f32.xlu0 %v1703
  %v1706 = vpop.xlane.xlu0 %1705
  %v1707 = vsub.f32 %v1544, %v1706
  %v1708 = vsub.f32 %v1545, %v1706
  %v1709 = vmul.f32 %v1707, %v1707
  %v1710 = vmul.f32 %v1708, %v1708
  %v1711 = vrot.slane %v1709, 4
  %v1712 = vsel %vm1549, 0.0, %v1711
  %v1714 = vunpack.c.l.s4 1983009808
  %v1715 = vunpack.c.0.s8 %v1714
  %v1716 = vperm.slane %v1709, %v1715
  %v1718 = vunpack.c.l.s4 1983009808
  %v1719 = vunpack.c.0.s8 %v1718
  %v1720 = vperm.slane %v1712, %v1719
  %v1721 = vrot.slane %v1710, 4
  %v1722 = vsel %vm1549, 0.0, %v1721
  %v1724 = vunpack.c.l.s4 1983009808
  %v1725 = vunpack.c.0.s8 %v1724
  %v1726 = vperm.slane %v1710, %v1725
  %v1728 = vunpack.c.l.s4 1983009808
  %v1729 = vunpack.c.0.s8 %v1728
  %v1730 = vperm.slane %v1722, %v1729
  %v1731 = vrot.slane %v1726, 4
  %v1732 = vsel %vm1549, %v1731, %v1716
  %v1733 = vrot.slane %v1716, 4
  %v1734 = vsel %vm1549, %v1726, %v1733
  %v1736 = vunpack.c.l.s4 1934713408
  %v1737 = vunpack.c.0.s8 %v1736
  %v1738 = vperm.slane %v1732, %v1737
  %v1740 = vunpack.c.l.s4 1934713408
  %v1741 = vunpack.c.0.s8 %v1740
  %v1742 = vperm.slane %v1734, %v1741
  %v1743 = vrot.slane %v1730, 4
  %v1744 = vsel %vm1549, %v1743, %v1720
  %v1745 = vrot.slane %v1720, 4
  %v1746 = vsel %vm1549, %v1730, %v1745
  %v1748 = vunpack.c.l.s4 1934713408
  %v1749 = vunpack.c.0.s8 %v1748
  %v1750 = vperm.slane %v1744, %v1749
  %v1752 = vunpack.c.l.s4 1934713408
  %v1753 = vunpack.c.0.s8 %v1752
  %v1754 = vperm.slane %v1746, %v1753
  %v1755 = vrot.slane %v1738, 4
  %v1756 = vsel %vm1549, 0.0, %v1755
  %v1757 = vrot.slane %v1742, 4
  %v1758 = vsel %vm1549, 0.0, %v1757
  %v1759 = vrot.slane %v1750, 4
  %v1760 = vsel %vm1549, 0.0, %v1759
  %v1761 = vrot.slane %v1754, 4
  %v1762 = vsel %vm1549, 0.0, %v1761
  %v1763 = vsel %vm1601, %v1738, 0.0
  %v1764 = vrot.slane %v1763, 4
  %v1765 = vadd.f32 %v1763, %v1764
  %v1766 = vrot.slane %v1765, 2
  %v1767 = vadd.f32 %v1765, %v1766
  %v1768 = vrot.slane %v1767, 1
  %v1769 = vadd.f32 %v1767, %v1768
  %v1770 = vsel %vm1601, %v1756, 0.0
  %v1771 = vrot.slane %v1770, 4
  %v1772 = vadd.f32 %v1770, %v1771
  %v1773 = vrot.slane %v1772, 2
  %v1774 = vadd.f32 %v1772, %v1773
  %v1775 = vrot.slane %v1774, 1
  %v1776 = vadd.f32 %v1774, %v1775
  %v1777 = vsel %vm1601, %v1742, 0.0
  %v1778 = vrot.slane %v1777, 4
  %v1779 = vadd.f32 %v1777, %v1778
  %v1780 = vrot.slane %v1779, 2
  %v1781 = vadd.f32 %v1779, %v1780
  %v1782 = vrot.slane %v1781, 1
  %v1783 = vadd.f32 %v1781, %v1782
  %v1784 = vsel %vm1601, %v1758, 0.0
  %v1785 = vrot.slane %v1784, 4
  %v1786 = vadd.f32 %v1784, %v1785
  %v1787 = vrot.slane %v1786, 2
  %v1788 = vadd.f32 %v1786, %v1787
  %v1789 = vrot.slane %v1788, 1
  %v1790 = vadd.f32 %v1788, %v1789
  %v1791 = vsel %vm1601, %v1750, 0.0
  %v1792 = vrot.slane %v1791, 4
  %v1793 = vadd.f32 %v1791, %v1792
  %v1794 = vrot.slane %v1793, 2
  %v1795 = vadd.f32 %v1793, %v1794
  %v1796 = vrot.slane %v1795, 1
  %v1797 = vadd.f32 %v1795, %v1796
  %v1798 = vsel %vm1601, %v1760, 0.0
  %v1799 = vrot.slane %v1798, 4
  %v1800 = vadd.f32 %v1798, %v1799
  %v1801 = vrot.slane %v1800, 2
  %v1802 = vadd.f32 %v1800, %v1801
  %v1803 = vrot.slane %v1802, 1
  %v1804 = vadd.f32 %v1802, %v1803
  %v1805 = vsel %vm1601, %v1754, 0.0
  %v1806 = vrot.slane %v1805, 4
  %v1807 = vadd.f32 %v1805, %v1806
  %v1808 = vrot.slane %v1807, 2
  %v1809 = vadd.f32 %v1807, %v1808
  %v1810 = vrot.slane %v1809, 1
  %v1811 = vadd.f32 %v1809, %v1810
  %v1812 = vsel %vm1601, %v1762, 0.0
  %v1813 = vrot.slane %v1812, 4
  %v1814 = vadd.f32 %v1812, %v1813
  %v1815 = vrot.slane %v1814, 2
  %v1816 = vadd.f32 %v1814, %v1815
  %v1817 = vrot.slane %v1816, 1
  %v1818 = vadd.f32 %v1816, %v1817
  %v1827 = vsel %vm1667, %v1776, %v1769
  %v1828 = vsel %vm1669, %v1783, %v1827
  %v1829 = vsel %vm1671, %v1790, %v1828
  %v1830 = vsel %vm1673, %v1797, %v1829
  %v1831 = vsel %vm1675, %v1804, %v1830
  %v1832 = vsel %vm1677, %v1811, %v1831
  %v1833 = vsel %vm1679, %v1818, %v1832
  %1835 = vmatpush.msra.mxu0 0.0
  %1836 = vmatpush.msra.mxu0 0.0
  %1837 = vmatpush.msra.mxu0 0.0
  %1838 = vmatpush.msra.mxu0 0.0
  %1839 = vmatpush.msra.mxu0 0.0
  %1840 = vmatpush.msra.mxu0 0.0
  %1841 = vmatpush.msra.mxu0 0.0
  %1842 = vmatpush.msra.mxu0 0.0
  %1843 = vmatpush.msra.mxu0 0.0
  %1844 = vmatpush.msra.mxu0 0.0
  %1845 = vmatpush.msra.mxu0 0.0
  %1846 = vmatpush.msra.mxu0 0.0
  %1847 = vmatpush.msra.mxu0 0.0
  %1848 = vmatpush.msra.mxu0 0.0
  %1849 = vmatpush.msra.mxu0 0.0
  %1850 = vmatpush.msra.mxu0 %v1833
  %1851 = vmatmul.f32.gmra.mxu0 %v1683
  %v1852 = vpop.f32.mrf.mxu0
  %v1853 = vadd.f32 0.0, %v1852
  %1854 = vdwg.mxu0
  %1855 = vadd.xlane.f32.xlu0 %v1853
  %v1856 = vpop.xlane.xlu0 %1855
  %v1857 = vadd.f32 %v1856, 1e-05
  %v1858 = vrsqrt.pop %v1857
  %v1859 = vmul.f32 %v1858, %v1857
  %v1860 = vmul.f32 %v1859, %v1858
  %v1861 = vmul.f32 0.5, %v1860
  %v1862 = vsub.f32 1.5, %v1861
  %v1863 = vmul.f32 %v1858, %v1862
  %vm1864 = vweird.f32 %v1857
  %vm1865 = vweird.f32 %v1858
  %vm1866 = vmor %vm1864, %vm1865
  %v1867 = vsel %vm1866, %v1858, %v1863
  %v1868 = vld [vmem:[%s7] sm:$0xff]
  %v1869 = vmul.f32 %v1867, %v1868
  %1871 = vset.pattern.permute.xlu0 0
  %1872 = vperm.xlu0 %1871, %v1869
  %v1873 = vpop.permute.xlu0 %1872
  %v1875 = vmul.f32 %v1707, %v1873
  %v1876 = vmul.f32 %v1708, %v1873
  %v1877 = vld [vmem:[%s8] sm:$0xff]
  %1879 = vset.pattern.permute.xlu0 0
  %1880 = vperm.xlu0 %1879, %v1877
  %v1881 = vpop.permute.xlu0 %1880
  %v1883 = vadd.f32 %v1875, %v1881
  %v1884 = vadd.f32 %v1876, %v1881
  %vm1885 = vcmp.gt.f32.partialorder %v1883, 0.0
  %vm1886 = vcmp.gt.f32.partialorder %v1884, 0.0
  %v1887 = vmul.f32 %v1883, 0.2
  %v1888 = vmul.f32 %v1884, 0.2
  %v1889 = vsel %vm1885, %v1883, %v1887
  %v1890 = vsel %vm1886, %v1884, %v1888
  %v1891 = vpack.c.bf16 %v1890, %v1889
  %1892 = vst [vmem:[#allocation2 + $0x4] sm:$0xff] %v1891
  %v1893 = vrot.slane %v1546, 4
  %v1894 = vsel %vm1549, 0.0, %v1893
  %v1896 = vunpack.c.l.s4 1983009808
  %v1897 = vunpack.c.0.s8 %v1896
  %v1898 = vperm.slane %v1546, %v1897
  %v1900 = vunpack.c.l.s4 1983009808
  %v1901 = vunpack.c.0.s8 %v1900
  %v1902 = vperm.slane %v1894, %v1901
  %v1903 = vrot.slane %v1547, 4
  %v1904 = vsel %vm1549, 0.0, %v1903
  %v1906 = vunpack.c.l.s4 1983009808
  %v1907 = vunpack.c.0.s8 %v1906
  %v1908 = vperm.slane %v1547, %v1907
  %v1910 = vunpack.c.l.s4 1983009808
  %v1911 = vunpack.c.0.s8 %v1910
  %v1912 = vperm.slane %v1904, %v1911
  %v1913 = vrot.slane %v1908, 4
  %v1914 = vsel %vm1549, %v1913, %v1898
  %v1915 = vrot.slane %v1898, 4
  %v1916 = vsel %vm1549, %v1908, %v1915
  %v1918 = vunpack.c.l.s4 1934713408
  %v1919 = vunpack.c.0.s8 %v1918
  %v1920 = vperm.slane %v1914, %v1919
  %v1922 = vunpack.c.l.s4 1934713408
  %v1923 = vunpack.c.0.s8 %v1922
  %v1924 = vperm.slane %v1916, %v1923
  %v1925 = vrot.slane %v1912, 4
  %v1926 = vsel %vm1549, %v1925, %v1902
  %v1927 = vrot.slane %v1902, 4
  %v1928 = vsel %vm1549, %v1912, %v1927
  %v1930 = vunpack.c.l.s4 1934713408
  %v1931 = vunpack.c.0.s8 %v1930
  %v1932 = vperm.slane %v1926, %v1931
  %v1934 = vunpack.c.l.s4 1934713408
  %v1935 = vunpack.c.0.s8 %v1934
  %v1936 = vperm.slane %v1928, %v1935
  %v1937 = vrot.slane %v1920, 4
  %v1938 = vsel %vm1549, 0.0, %v1937
  %v1939 = vrot.slane %v1924, 4
  %v1940 = vsel %vm1549, 0.0, %v1939
  %v1941 = vrot.slane %v1932, 4
  %v1942 = vsel %vm1549, 0.0, %v1941
  %v1943 = vrot.slane %v1936, 4
  %v1944 = vsel %vm1549, 0.0, %v1943
  %v1945 = vsel %vm1601, %v1920, 0.0
  %v1946 = vrot.slane %v1945, 4
  %v1947 = vadd.f32 %v1945, %v1946
  %v1948 = vrot.slane %v1947, 2
  %v1949 = vadd.f32 %v1947, %v1948
  %v1950 = vrot.slane %v1949, 1
  %v1951 = vadd.f32 %v1949, %v1950
  %v1952 = vsel %vm1601, %v1938, 0.0
  %v1953 = vrot.slane %v1952, 4
  %v1954 = vadd.f32 %v1952, %v1953
  %v1955 = vrot.slane %v1954, 2
  %v1956 = vadd.f32 %v1954, %v1955
  %v1957 = vrot.slane %v1956, 1
  %v1958 = vadd.f32 %v1956, %v1957
  %v1959 = vsel %vm1601, %v1924, 0.0
  %v1960 = vrot.slane %v1959, 4
  %v1961 = vadd.f32 %v1959, %v1960
  %v1962 = vrot.slane %v1961, 2
  %v1963 = vadd.f32 %v1961, %v1962
  %v1964 = vrot.slane %v1963, 1
  %v1965 = vadd.f32 %v1963, %v1964
  %v1966 = vsel %vm1601, %v1940, 0.0
  %v1967 = vrot.slane %v1966, 4
  %v1968 = vadd.f32 %v1966, %v1967
  %v1969 = vrot.slane %v1968, 2
  %v1970 = vadd.f32 %v1968, %v1969
  %v1971 = vrot.slane %v1970, 1
  %v1972 = vadd.f32 %v1970, %v1971
  %v1973 = vsel %vm1601, %v1932, 0.0
  %v1974 = vrot.slane %v1973, 4
  %v1975 = vadd.f32 %v1973, %v1974
  %v1976 = vrot.slane %v1975, 2
  %v1977 = vadd.f32 %v1975, %v1976
  %v1978 = vrot.slane %v1977, 1
  %v1979 = vadd.f32 %v1977, %v1978
  %v1980 = vsel %vm1601, %v1942, 0.0
  %v1981 = vrot.slane %v1980, 4
  %v1982 = vadd.f32 %v1980, %v1981
  %v1983 = vrot.slane %v1982, 2
  %v1984 = vadd.f32 %v1982, %v1983
  %v1985 = vrot.slane %v1984, 1
  %v1986 = vadd.f32 %v1984, %v1985
  %v1987 = vsel %vm1601, %v1936, 0.0
  %v1988 = vrot.slane %v1987, 4
  %v1989 = vadd.f32 %v1987, %v1988
  %v1990 = vrot.slane %v1989, 2
  %v1991 = vadd.f32 %v1989, %v1990
  %v1992 = vrot.slane %v1991, 1
  %v1993 = vadd.f32 %v1991, %v1992
  %v1994 = vsel %vm1601, %v1944, 0.0
  %v1995 = vrot.slane %v1994, 4
  %v1996 = vadd.f32 %v1994, %v1995
  %v1997 = vrot.slane %v1996, 2
  %v1998 = vadd.f32 %v1996, %v1997
  %v1999 = vrot.slane %v1998, 1
  %v2000 = vadd.f32 %v1998, %v1999
  %v2001 = vld [vmem:[%s4] sm:$0xff]
  %v2010 = vsel %vm1667, %v1958, %v1951
  %v2011 = vsel %vm1669, %v1965, %v2010
  %v2012 = vsel %vm1671, %v1972, %v2011
  %v2013 = vsel %vm1673, %v1979, %v2012
  %v2014 = vsel %vm1675, %v1986, %v2013
  %v2015 = vsel %vm1677, %v1993, %v2014
  %v2016 = vsel %vm1679, %v2000, %v2015
  %v2019 = vsel %vm248, %v2001, 0
  %2021 = vmatpush.msra.mxu0 0.0
  %2022 = vmatpush.msra.mxu0 0.0
  %2023 = vmatpush.msra.mxu0 0.0
  %2024 = vmatpush.msra.mxu0 0.0
  %2025 = vmatpush.msra.mxu0 0.0
  %2026 = vmatpush.msra.mxu0 0.0
  %2027 = vmatpush.msra.mxu0 0.0
  %2028 = vmatpush.msra.mxu0 0.0
  %2029 = vmatpush.msra.mxu0 0.0
  %2030 = vmatpush.msra.mxu0 0.0
  %2031 = vmatpush.msra.mxu0 0.0
  %2032 = vmatpush.msra.mxu0 0.0
  %2033 = vmatpush.msra.mxu0 0.0
  %2034 = vmatpush.msra.mxu0 0.0
  %2035 = vmatpush.msra.mxu0 0.0
  %2036 = vmatpush.msra.mxu0 %v2016
  %2037 = vmatmul.f32.gmra.mxu0 %v2019
  %v2038 = vpop.f32.mrf.mxu0
  %v2039 = vadd.f32 0.0, %v2038
  %2040 = vdwg.mxu0
  %2041 = vadd.xlane.f32.xlu0 %v2039
  %v2042 = vpop.xlane.xlu0 %2041
  %v2043 = vsub.f32 %v1546, %v2042
  %v2044 = vsub.f32 %v1547, %v2042
  %v2045 = vmul.f32 %v2043, %v2043
  %v2046 = vmul.f32 %v2044, %v2044
  %v2047 = vrot.slane %v2045, 4
  %v2048 = vsel %vm1549, 0.0, %v2047
  %v2050 = vunpack.c.l.s4 1983009808
  %v2051 = vunpack.c.0.s8 %v2050
  %v2052 = vperm.slane %v2045, %v2051
  %v2054 = vunpack.c.l.s4 1983009808
  %v2055 = vunpack.c.0.s8 %v2054
  %v2056 = vperm.slane %v2048, %v2055
  %v2057 = vrot.slane %v2046, 4
  %v2058 = vsel %vm1549, 0.0, %v2057
  %v2060 = vunpack.c.l.s4 1983009808
  %v2061 = vunpack.c.0.s8 %v2060
  %v2062 = vperm.slane %v2046, %v2061
  %v2064 = vunpack.c.l.s4 1983009808
  %v2065 = vunpack.c.0.s8 %v2064
  %v2066 = vperm.slane %v2058, %v2065
  %v2067 = vrot.slane %v2062, 4
  %v2068 = vsel %vm1549, %v2067, %v2052
  %v2069 = vrot.slane %v2052, 4
  %v2070 = vsel %vm1549, %v2062, %v2069
  %v2072 = vunpack.c.l.s4 1934713408
  %v2073 = vunpack.c.0.s8 %v2072
  %v2074 = vperm.slane %v2068, %v2073
  %v2076 = vunpack.c.l.s4 1934713408
  %v2077 = vunpack.c.0.s8 %v2076
  %v2078 = vperm.slane %v2070, %v2077
  %v2079 = vrot.slane %v2066, 4
  %v2080 = vsel %vm1549, %v2079, %v2056
  %v2081 = vrot.slane %v2056, 4
  %v2082 = vsel %vm1549, %v2066, %v2081
  %v2084 = vunpack.c.l.s4 1934713408
  %v2085 = vunpack.c.0.s8 %v2084
  %v2086 = vperm.slane %v2080, %v2085
  %v2088 = vunpack.c.l.s4 1934713408
  %v2089 = vunpack.c.0.s8 %v2088
  %v2090 = vperm.slane %v2082, %v2089
  %v2091 = vrot.slane %v2074, 4
  %v2092 = vsel %vm1549, 0.0, %v2091
  %v2093 = vrot.slane %v2078, 4
  %v2094 = vsel %vm1549, 0.0, %v2093
  %v2095 = vrot.slane %v2086, 4
  %v2096 = vsel %vm1549, 0.0, %v2095
  %v2097 = vrot.slane %v2090, 4
  %v2098 = vsel %vm1549, 0.0, %v2097
  %v2099 = vsel %vm1601, %v2074, 0.0
  %v2100 = vrot.slane %v2099, 4
  %v2101 = vadd.f32 %v2099, %v2100
  %v2102 = vrot.slane %v2101, 2
  %v2103 = vadd.f32 %v2101, %v2102
  %v2104 = vrot.slane %v2103, 1
  %v2105 = vadd.f32 %v2103, %v2104
  %v2106 = vsel %vm1601, %v2092, 0.0
  %v2107 = vrot.slane %v2106, 4
  %v2108 = vadd.f32 %v2106, %v2107
  %v2109 = vrot.slane %v2108, 2
  %v2110 = vadd.f32 %v2108, %v2109
  %v2111 = vrot.slane %v2110, 1
  %v2112 = vadd.f32 %v2110, %v2111
  %v2113 = vsel %vm1601, %v2078, 0.0
  %v2114 = vrot.slane %v2113, 4
  %v2115 = vadd.f32 %v2113, %v2114
  %v2116 = vrot.slane %v2115, 2
  %v2117 = vadd.f32 %v2115, %v2116
  %v2118 = vrot.slane %v2117, 1
  %v2119 = vadd.f32 %v2117, %v2118
  %v2120 = vsel %vm1601, %v2094, 0.0
  %v2121 = vrot.slane %v2120, 4
  %v2122 = vadd.f32 %v2120, %v2121
  %v2123 = vrot.slane %v2122, 2
  %v2124 = vadd.f32 %v2122, %v2123
  %v2125 = vrot.slane %v2124, 1
  %v2126 = vadd.f32 %v2124, %v2125
  %v2127 = vsel %vm1601, %v2086, 0.0
  %v2128 = vrot.slane %v2127, 4
  %v2129 = vadd.f32 %v2127, %v2128
  %v2130 = vrot.slane %v2129, 2
  %v2131 = vadd.f32 %v2129, %v2130
  %v2132 = vrot.slane %v2131, 1
  %v2133 = vadd.f32 %v2131, %v2132
  %v2134 = vsel %vm1601, %v2096, 0.0
  %v2135 = vrot.slane %v2134, 4
  %v2136 = vadd.f32 %v2134, %v2135
  %v2137 = vrot.slane %v2136, 2
  %v2138 = vadd.f32 %v2136, %v2137
  %v2139 = vrot.slane %v2138, 1
  %v2140 = vadd.f32 %v2138, %v2139
  %v2141 = vsel %vm1601, %v2090, 0.0
  %v2142 = vrot.slane %v2141, 4
  %v2143 = vadd.f32 %v2141, %v2142
  %v2144 = vrot.slane %v2143, 2
  %v2145 = vadd.f32 %v2143, %v2144
  %v2146 = vrot.slane %v2145, 1
  %v2147 = vadd.f32 %v2145, %v2146
  %v2148 = vsel %vm1601, %v2098, 0.0
  %v2149 = vrot.slane %v2148, 4
  %v2150 = vadd.f32 %v2148, %v2149
  %v2151 = vrot.slane %v2150, 2
  %v2152 = vadd.f32 %v2150, %v2151
  %v2153 = vrot.slane %v2152, 1
  %v2154 = vadd.f32 %v2152, %v2153
  %v2163 = vsel %vm1667, %v2112, %v2105
  %v2164 = vsel %vm1669, %v2119, %v2163
  %v2165 = vsel %vm1671, %v2126, %v2164
  %v2166 = vsel %vm1673, %v2133, %v2165
  %v2167 = vsel %vm1675, %v2140, %v2166
  %v2168 = vsel %vm1677, %v2147, %v2167
  %v2169 = vsel %vm1679, %v2154, %v2168
  %2171 = vmatpush.msra.mxu0 0.0
  %2172 = vmatpush.msra.mxu0 0.0
  %2173 = vmatpush.msra.mxu0 0.0
  %2174 = vmatpush.msra.mxu0 0.0
  %2175 = vmatpush.msra.mxu0 0.0
  %2176 = vmatpush.msra.mxu0 0.0
  %2177 = vmatpush.msra.mxu0 0.0
  %2178 = vmatpush.msra.mxu0 0.0
  %2179 = vmatpush.msra.mxu0 0.0
  %2180 = vmatpush.msra.mxu0 0.0
  %2181 = vmatpush.msra.mxu0 0.0
  %2182 = vmatpush.msra.mxu0 0.0
  %2183 = vmatpush.msra.mxu0 0.0
  %2184 = vmatpush.msra.mxu0 0.0
  %2185 = vmatpush.msra.mxu0 0.0
  %2186 = vmatpush.msra.mxu0 %v2169
  %2187 = vmatmul.f32.gmra.mxu0 %v2019
  %v2188 = vpop.f32.mrf.mxu0
  %v2189 = vadd.f32 0.0, %v2188
  %2190 = vdwg.mxu0
  %2191 = vadd.xlane.f32.xlu0 %v2189
  %v2192 = vpop.xlane.xlu0 %2191
  %v2193 = vadd.f32 %v2192, 1e-05
  %v2194 = vrsqrt.pop %v2193
  %v2195 = vmul.f32 %v2194, %v2193
  %v2196 = vmul.f32 %v2195, %v2194
  %v2197 = vmul.f32 0.5, %v2196
  %v2198 = vsub.f32 1.5, %v2197
  %v2199 = vmul.f32 %v2194, %v2198
  %vm2200 = vweird.f32 %v2193
  %vm2201 = vweird.f32 %v2194
  %vm2202 = vmor %vm2200, %vm2201
  %v2203 = vsel %vm2202, %v2194, %v2199
  %v2204 = vld [vmem:[%s7] sm:$0xff]
  %v2205 = vmul.f32 %v2203, %v2204
  %2207 = vset.pattern.permute.xlu0 0
  %2208 = vperm.xlu0 %2207, %v2205
  %v2209 = vpop.permute.xlu0 %2208
  %v2211 = vmul.f32 %v2043, %v2209
  %v2212 = vmul.f32 %v2044, %v2209
  %v2213 = vld [vmem:[%s8] sm:$0xff]
  %2215 = vset.pattern.permute.xlu0 0
  %2216 = vperm.xlu0 %2215, %v2213
  %v2217 = vpop.permute.xlu0 %2216
  %v2219 = vadd.f32 %v2211, %v2217
  %v2220 = vadd.f32 %v2212, %v2217
  %vm2221 = vcmp.gt.f32.partialorder %v2219, 0.0
  %vm2222 = vcmp.gt.f32.partialorder %v2220, 0.0
  %v2223 = vmul.f32 %v2219, 0.2
  %v2224 = vmul.f32 %v2220, 0.2
  %v2225 = vsel %vm2221, %v2219, %v2223
  %v2226 = vsel %vm2222, %v2220, %v2224
  %v2227 = vpack.c.bf16 %v2226, %v2225
  %2228 = vst [vmem:[#allocation2 + $0xc] sm:$0xff] %v2227
  %s2229 = scalar_lea.vmem %s9, 16
  %v2230 = vld [vmem:[%s2229] sm:$0xf]
  %v2231 = vld [vmem:[#allocation2 + $0x4] sm:$0xff]
  %v2232 = vld [vmem:[#allocation2 + $0xc] sm:$0xff]
  %v2233 = vld [vmem:[%s10] sm:$0xff]
  %2235 = vset.pattern.permute.xlu0 0
  %2236 = vperm.xlu0 %2235, %v2233
  %v2237 = vpop.permute.xlu0 %2236
  %v2241 = vunpack.c.l.b16 %v2231
  %v2242 = vunpack.c.h.b16 %v2231
  %v2243 = vunpack.c.l.b16 %v2232
  %v2244 = vunpack.c.h.b16 %v2232
  %v2245 = vpack.c.b16 %v2241, %v2241
  %v2246 = vpack.c.b16 %v2242, %v2242
  %v2247 = vpack.c.b16 %v2243, %v2243
  %v2248 = vpack.c.b16 %v2244, %v2244
  %v2250 = vsel %vm248, %v2230, 0
  %v2253 = vsel %vm252, %v2245, 0
  %v2256 = vsel %vm252, %v2246, 0
  %v2259 = vsel %vm252, %v2247, 0
  %v2262 = vsel %vm252, %v2248, 0
  %2264 = vmatpush.bf16.msra.mxu0 0
  %2265 = vmatpush.bf16.msra.mxu0 0
  %2266 = vmatpush.bf16.msra.mxu0 0
  %2267 = vmatpush.bf16.msra.mxu0 0
  %2268 = vmatpush.bf16.msra.mxu0 0
  %2269 = vmatpush.bf16.msra.mxu0 0
  %2270 = vmatpush.bf16.msra.mxu0 0
  %2271 = vmatpush.bf16.msra.mxu0 %v2253
  %2272 = vmatmul.bf16.gmra.mxu0 %v2250
  %v2273 = vpop.f32.mrf.mxu0
  %v2274 = vadd.f32 %v2237, %v2273
  %v2275 = vpop.f32.mrf.mxu0
  %2276 = vdwg.mxu0
  %2277 = vmatpush.bf16.msra.mxu0 0
  %2278 = vmatpush.bf16.msra.mxu0 0
  %2279 = vmatpush.bf16.msra.mxu0 0
  %2280 = vmatpush.bf16.msra.mxu0 0
  %2281 = vmatpush.bf16.msra.mxu0 0
  %2282 = vmatpush.bf16.msra.mxu0 0
  %2283 = vmatpush.bf16.msra.mxu0 0
  %2284 = vmatpush.bf16.msra.mxu0 %v2256
  %2285 = vmatmul.bf16.gmra.mxu0 %v2250
  %v2286 = vpop.f32.mrf.mxu0
  %v2287 = vadd.f32 %v2237, %v2286
  %v2288 = vpop.f32.mrf.mxu0
  %2289 = vdwg.mxu0
  %2290 = vmatpush.bf16.msra.mxu0 0
  %2291 = vmatpush.bf16.msra.mxu0 0
  %2292 = vmatpush.bf16.msra.mxu0 0
  %2293 = vmatpush.bf16.msra.mxu0 0
  %2294 = vmatpush.bf16.msra.mxu0 0
  %2295 = vmatpush.bf16.msra.mxu0 0
  %2296 = vmatpush.bf16.msra.mxu0 0
  %2297 = vmatpush.bf16.msra.mxu0 %v2259
  %2298 = vmatmul.bf16.gmra.mxu0 %v2250
  %v2299 = vpop.f32.mrf.mxu0
  %v2300 = vadd.f32 %v2237, %v2299
  %v2301 = vpop.f32.mrf.mxu0
  %2302 = vdwg.mxu0
  %2303 = vmatpush.bf16.msra.mxu0 0
  %2304 = vmatpush.bf16.msra.mxu0 0
  %2305 = vmatpush.bf16.msra.mxu0 0
  %2306 = vmatpush.bf16.msra.mxu0 0
  %2307 = vmatpush.bf16.msra.mxu0 0
  %2308 = vmatpush.bf16.msra.mxu0 0
  %2309 = vmatpush.bf16.msra.mxu0 0
  %2310 = vmatpush.bf16.msra.mxu0 %v2262
  %2311 = vmatmul.bf16.gmra.mxu0 %v2250
  %v2312 = vpop.f32.mrf.mxu0
  %v2313 = vadd.f32 %v2237, %v2312
  %v2314 = vpop.f32.mrf.mxu0
  %2315 = vdwg.mxu0
  %v2316 = vld [vmem:[#allocation2] sm:$0xff]
  %v2317 = vld [vmem:[#allocation2 + $0x8] sm:$0xff]
  %v2318 = vld [vmem:[#allocation2 + $0x10] sm:$0xf]
  %v2319 = vld [vmem:[%s3] sm:$0x11]
  %v2320 = vld [vmem:[%s3 + $0x8] sm:$0x11]
  %v2323 = vunpack.c.l.b16 %v2319
  %v2324 = vunpack.c.h.b16 %v2319
  %v2325 = vunpack.c.l.b16 %v2320
  %v2326 = vunpack.c.h.b16 %v2320
  %v2327 = vpack.c.b16 %v2323, %v2323
  %v2328 = vpack.c.b16 %v2324, %v2324
  %v2329 = vpack.c.b16 %v2325, %v2325
  %v2330 = vpack.c.b16 %v2326, %v2326
  %v2332 = vpack.i.b16 %v2327, %v2327
  %v2334 = vperm.slane %v2332, 0
  %v2336 = vpack.i.b16 %v2328, %v2328
  %v2338 = vperm.slane %v2336, 0
  %v2340 = vpack.i.b16 %v2329, %v2329
  %v2342 = vperm.slane %v2340, 0
  %v2344 = vpack.i.b16 %v2330, %v2330
  %v2346 = vperm.slane %v2344, 0
  %v2347 = vunpack.c.l.bf16 %v2316
  %v2348 = vunpack.c.h.bf16 %v2316
  %v2349 = vunpack.c.l.bf16 %v2317
  %v2350 = vunpack.c.h.bf16 %v2317
  %v2351 = vunpack.c.l.bf16 %v2318
  %v2352 = vunpack.c.l.bf16 %v2334
  %v2353 = vunpack.c.l.bf16 %v2338
  %v2354 = vunpack.c.l.bf16 %v2342
  %v2355 = vunpack.c.l.bf16 %v2346
  %2360 = vrot.lane.b32.xlu0 %v2352, 111
  %v2361 = vpop.permute.xlu0 %2360
  %2362 = vrot.lane.b32.xlu0 %v2353, 111
  %v2363 = vpop.permute.xlu0 %2362
  %2364 = vrot.lane.b32.xlu0 %v2354, 111
  %v2365 = vpop.permute.xlu0 %2364
  %2366 = vrot.lane.b32.xlu0 %v2355, 111
  %v2367 = vpop.permute.xlu0 %2366
  %v2368 = vsel %vm369, %v2361, %v2363
  %v2369 = vsel %vm369, %v2363, %v2365
  %v2370 = vsel %vm369, %v2365, %v2367
  %v2376 = vmul.f32 %v2347, %v2361
  %v2377 = vmul.f32 %v2348, %v2368
  %v2378 = vmul.f32 %v2349, %v2369
  %v2379 = vmul.f32 %v2350, %v2370
  %v2380 = vmul.f32 %v2351, %v2367
  %v2381 = vpack.c.bf16 %v2376, %v2376
  %v2382 = vpack.c.bf16 %v2377, %v2377
  %v2383 = vpack.c.bf16 %v2378, %v2378
  %v2384 = vpack.c.bf16 %v2379, %v2379
  %v2385 = vpack.c.bf16 %v2380, %v2380
  %v2386 = vld [vmem:[%s9] sm:$0xf]
  %2392 = vrot.lane.b32.xlu0 %v2381, 17
  %v2393 = vpop.permute.xlu0 %2392
  %2394 = vrot.lane.b32.xlu0 %v2382, 17
  %v2395 = vpop.permute.xlu0 %2394
  %2396 = vrot.lane.b32.xlu0 %v2383, 17
  %v2397 = vpop.permute.xlu0 %2396
  %2398 = vrot.lane.b32.xlu0 %v2384, 17
  %v2399 = vpop.permute.xlu0 %2398
  %2400 = vrot.lane.b32.xlu0 %v2385, 17
  %v2401 = vpop.permute.xlu0 %2400
  %v2402 = vsel %vm404, %v2393, %v2395
  %v2403 = vsel %vm404, %v2395, %v2397
  %v2404 = vsel %vm404, %v2397, %v2399
  %v2405 = vsel %vm404, %v2399, %v2401
  %v2407 = vsel %vm248, %v2386, 0
  %v2410 = vsel %vm252, %v2402, 0
  %v2413 = vsel %vm252, %v2403, 0
  %v2416 = vsel %vm252, %v2404, 0
  %v2419 = vsel %vm252, %v2405, 0
  %2421 = vmatpush.bf16.msra.mxu0 0
  %2422 = vmatpush.bf16.msra.mxu0 0
  %2423 = vmatpush.bf16.msra.mxu0 0
  %2424 = vmatpush.bf16.msra.mxu0 0
  %2425 = vmatpush.bf16.msra.mxu0 0
  %2426 = vmatpush.bf16.msra.mxu0 0
  %2427 = vmatpush.bf16.msra.mxu0 0
  %2428 = vmatpush.bf16.msra.mxu0 %v2410
  %2429 = vmatmul.bf16.gmra.mxu0 %v2407
  %v2430 = vpop.f32.mrf.mxu0
  %v2431 = vadd.f32 0.0, %v2430
  %v2432 = vpop.f32.mrf.mxu0
  %2433 = vdwg.mxu0
  %2434 = vmatpush.bf16.msra.mxu0 0
  %2435 = vmatpush.bf16.msra.mxu0 0
  %2436 = vmatpush.bf16.msra.mxu0 0
  %2437 = vmatpush.bf16.msra.mxu0 0
  %2438 = vmatpush.bf16.msra.mxu0 0
  %2439 = vmatpush.bf16.msra.mxu0 0
  %2440 = vmatpush.bf16.msra.mxu0 0
  %2441 = vmatpush.bf16.msra.mxu0 %v2413
  %2442 = vmatmul.bf16.gmra.mxu0 %v2407
  %v2443 = vpop.f32.mrf.mxu0
  %v2444 = vadd.f32 0.0, %v2443
  %v2445 = vpop.f32.mrf.mxu0
  %2446 = vdwg.mxu0
  %2447 = vmatpush.bf16.msra.mxu0 0
  %2448 = vmatpush.bf16.msra.mxu0 0
  %2449 = vmatpush.bf16.msra.mxu0 0
  %2450 = vmatpush.bf16.msra.mxu0 0
  %2451 = vmatpush.bf16.msra.mxu0 0
  %2452 = vmatpush.bf16.msra.mxu0 0
  %2453 = vmatpush.bf16.msra.mxu0 0
  %2454 = vmatpush.bf16.msra.mxu0 %v2416
  %2455 = vmatmul.bf16.gmra.mxu0 %v2407
  %v2456 = vpop.f32.mrf.mxu0
  %v2457 = vadd.f32 0.0, %v2456
  %v2458 = vpop.f32.mrf.mxu0
  %2459 = vdwg.mxu0
  %2460 = vmatpush.bf16.msra.mxu0 0
  %2461 = vmatpush.bf16.msra.mxu0 0
  %2462 = vmatpush.bf16.msra.mxu0 0
  %2463 = vmatpush.bf16.msra.mxu0 0
  %2464 = vmatpush.bf16.msra.mxu0 0
  %2465 = vmatpush.bf16.msra.mxu0 0
  %2466 = vmatpush.bf16.msra.mxu0 0
  %2467 = vmatpush.bf16.msra.mxu0 %v2419
  %2468 = vmatmul.bf16.gmra.mxu0 %v2407
  %v2469 = vpop.f32.mrf.mxu0
  %v2470 = vadd.f32 0.0, %v2469
  %v2471 = vpop.f32.mrf.mxu0
  %2472 = vdwg.mxu0
  %v2473 = vadd.f32 %v2274, %v2431
  %v2474 = vadd.f32 %v2287, %v2444
  %v2475 = vadd.f32 %v2300, %v2457
  %v2476 = vadd.f32 %v2313, %v2470
  %v2477 = vshrl.u32 %v2327, 16
  %v2478 = vpack.i.b16 %v2477, %v2477
  %v2480 = vperm.slane %v2478, 0
  %v2481 = vshrl.u32 %v2328, 16
  %v2482 = vpack.i.b16 %v2481, %v2481
  %v2484 = vperm.slane %v2482, 0
  %v2485 = vshrl.u32 %v2329, 16
  %v2486 = vpack.i.b16 %v2485, %v2485
  %v2488 = vperm.slane %v2486, 0
  %v2489 = vshrl.u32 %v2330, 16
  %v2490 = vpack.i.b16 %v2489, %v2489
  %v2492 = vperm.slane %v2490, 0
  %v2493 = vunpack.c.l.bf16 %v2480
  %v2494 = vunpack.c.l.bf16 %v2484
  %v2495 = vunpack.c.l.bf16 %v2488
  %v2496 = vunpack.c.l.bf16 %v2492
  %2501 = vrot.lane.b32.xlu0 %v2493, 112
  %v2502 = vpop.permute.xlu0 %2501
  %2503 = vrot.lane.b32.xlu0 %v2494, 112
  %v2504 = vpop.permute.xlu0 %2503
  %2505 = vrot.lane.b32.xlu0 %v2495, 112
  %v2506 = vpop.permute.xlu0 %2505
  %2507 = vrot.lane.b32.xlu0 %v2496, 112
  %v2508 = vpop.permute.xlu0 %2507
  %v2509 = vsel %vm512, %v2502, %v2504
  %v2510 = vsel %vm512, %v2504, %v2506
  %v2511 = vsel %vm512, %v2506, %v2508
  %v2517 = vmul.f32 %v2347, %v2502
  %v2518 = vmul.f32 %v2348, %v2509
  %v2519 = vmul.f32 %v2349, %v2510
  %v2520 = vmul.f32 %v2350, %v2511
  %v2521 = vmul.f32 %v2351, %v2508
  %v2522 = vpack.c.bf16 %v2517, %v2517
  %v2523 = vpack.c.bf16 %v2518, %v2518
  %v2524 = vpack.c.bf16 %v2519, %v2519
  %v2525 = vpack.c.bf16 %v2520, %v2520
  %v2526 = vpack.c.bf16 %v2521, %v2521
  %s2527 = scalar_lea.vmem %s9, 4
  %v2528 = vld [vmem:[%s2527] sm:$0xf]
  %2534 = vrot.lane.b32.xlu0 %v2522, 16
  %v2535 = vpop.permute.xlu0 %2534
  %2536 = vrot.lane.b32.xlu0 %v2523, 16
  %v2537 = vpop.permute.xlu0 %2536
  %2538 = vrot.lane.b32.xlu0 %v2524, 16
  %v2539 = vpop.permute.xlu0 %2538
  %2540 = vrot.lane.b32.xlu0 %v2525, 16
  %v2541 = vpop.permute.xlu0 %2540
  %2542 = vrot.lane.b32.xlu0 %v2526, 16
  %v2543 = vpop.permute.xlu0 %2542
  %v2544 = vsel %vm548, %v2535, %v2537
  %v2545 = vsel %vm548, %v2537, %v2539
  %v2546 = vsel %vm548, %v2539, %v2541
  %v2547 = vsel %vm548, %v2541, %v2543
  %v2549 = vsel %vm248, %v2528, 0
  %v2552 = vsel %vm252, %v2544, 0
  %v2555 = vsel %vm252, %v2545, 0
  %v2558 = vsel %vm252, %v2546, 0
  %v2561 = vsel %vm252, %v2547, 0
  %2563 = vmatpush.bf16.msra.mxu0 0
  %2564 = vmatpush.bf16.msra.mxu0 0
  %2565 = vmatpush.bf16.msra.mxu0 0
  %2566 = vmatpush.bf16.msra.mxu0 0
  %2567 = vmatpush.bf16.msra.mxu0 0
  %2568 = vmatpush.bf16.msra.mxu0 0
  %2569 = vmatpush.bf16.msra.mxu0 0
  %2570 = vmatpush.bf16.msra.mxu0 %v2552
  %2571 = vmatmul.bf16.gmra.mxu0 %v2549
  %v2572 = vpop.f32.mrf.mxu0
  %v2573 = vadd.f32 0.0, %v2572
  %v2574 = vpop.f32.mrf.mxu0
  %2575 = vdwg.mxu0
  %2576 = vmatpush.bf16.msra.mxu0 0
  %2577 = vmatpush.bf16.msra.mxu0 0
  %2578 = vmatpush.bf16.msra.mxu0 0
  %2579 = vmatpush.bf16.msra.mxu0 0
  %2580 = vmatpush.bf16.msra.mxu0 0
  %2581 = vmatpush.bf16.msra.mxu0 0
  %2582 = vmatpush.bf16.msra.mxu0 0
  %2583 = vmatpush.bf16.msra.mxu0 %v2555
  %2584 = vmatmul.bf16.gmra.mxu0 %v2549
  %v2585 = vpop.f32.mrf.mxu0
  %v2586 = vadd.f32 0.0, %v2585
  %v2587 = vpop.f32.mrf.mxu0
  %2588 = vdwg.mxu0
  %2589 = vmatpush.bf16.msra.mxu0 0
  %2590 = vmatpush.bf16.msra.mxu0 0
  %2591 = vmatpush.bf16.msra.mxu0 0
  %2592 = vmatpush.bf16.msra.mxu0 0
  %2593 = vmatpush.bf16.msra.mxu0 0
  %2594 = vmatpush.bf16.msra.mxu0 0
  %2595 = vmatpush.bf16.msra.mxu0 0
  %2596 = vmatpush.bf16.msra.mxu0 %v2558
  %2597 = vmatmul.bf16.gmra.mxu0 %v2549
  %v2598 = vpop.f32.mrf.mxu0
  %v2599 = vadd.f32 0.0, %v2598
  %v2600 = vpop.f32.mrf.mxu0
  %2601 = vdwg.mxu0
  %2602 = vmatpush.bf16.msra.mxu0 0
  %2603 = vmatpush.bf16.msra.mxu0 0
  %2604 = vmatpush.bf16.msra.mxu0 0
  %2605 = vmatpush.bf16.msra.mxu0 0
  %2606 = vmatpush.bf16.msra.mxu0 0
  %2607 = vmatpush.bf16.msra.mxu0 0
  %2608 = vmatpush.bf16.msra.mxu0 0
  %2609 = vmatpush.bf16.msra.mxu0 %v2561
  %2610 = vmatmul.bf16.gmra.mxu0 %v2549
  %v2611 = vpop.f32.mrf.mxu0
  %v2612 = vadd.f32 0.0, %v2611
  %v2613 = vpop.f32.mrf.mxu0
  %2614 = vdwg.mxu0
  %v2615 = vadd.f32 %v2473, %v2573
  %v2616 = vadd.f32 %v2474, %v2586
  %v2617 = vadd.f32 %v2475, %v2599
  %v2618 = vadd.f32 %v2476, %v2612
  %v2619 = vld [vmem:[%s3] sm:$0x22]
  %v2620 = vld [vmem:[%s3 + $0x8] sm:$0x22]
  %v2623 = vunpack.c.l.b16 %v2619
  %v2624 = vunpack.c.h.b16 %v2619
  %v2625 = vunpack.c.l.b16 %v2620
  %v2626 = vunpack.c.h.b16 %v2620
  %v2627 = vpack.c.b16 %v2623, %v2623
  %v2628 = vpack.c.b16 %v2624, %v2624
  %v2629 = vpack.c.b16 %v2625, %v2625
  %v2630 = vpack.c.b16 %v2626, %v2626
  %v2632 = vpack.i.b16 %v2627, %v2627
  %v2634 = vperm.slane %v2632, 1
  %v2636 = vpack.i.b16 %v2628, %v2628
  %v2638 = vperm.slane %v2636, 1
  %v2640 = vpack.i.b16 %v2629, %v2629
  %v2642 = vperm.slane %v2640, 1
  %v2644 = vpack.i.b16 %v2630, %v2630
  %v2646 = vperm.slane %v2644, 1
  %v2647 = vunpack.c.l.bf16 %v2634
  %v2648 = vunpack.c.l.bf16 %v2638
  %v2649 = vunpack.c.l.bf16 %v2642
  %v2650 = vunpack.c.l.bf16 %v2646
  %2655 = vrot.lane.b32.xlu0 %v2647, 113
  %v2656 = vpop.permute.xlu0 %2655
  %2657 = vrot.lane.b32.xlu0 %v2648, 113
  %v2658 = vpop.permute.xlu0 %2657
  %2659 = vrot.lane.b32.xlu0 %v2649, 113
  %v2660 = vpop.permute.xlu0 %2659
  %2661 = vrot.lane.b32.xlu0 %v2650, 113
  %v2662 = vpop.permute.xlu0 %2661
  %v2663 = vsel %vm668, %v2656, %v2658
  %v2664 = vsel %vm668, %v2658, %v2660
  %v2665 = vsel %vm668, %v2660, %v2662
  %v2671 = vmul.f32 %v2347, %v2656
  %v2672 = vmul.f32 %v2348, %v2663
  %v2673 = vmul.f32 %v2349, %v2664
  %v2674 = vmul.f32 %v2350, %v2665
  %v2675 = vmul.f32 %v2351, %v2662
  %v2676 = vpack.c.bf16 %v2671, %v2671
  %v2677 = vpack.c.bf16 %v2672, %v2672
  %v2678 = vpack.c.bf16 %v2673, %v2673
  %v2679 = vpack.c.bf16 %v2674, %v2674
  %v2680 = vpack.c.bf16 %v2675, %v2675
  %s2681 = scalar_lea.vmem %s9, 8
  %v2682 = vld [vmem:[%s2681] sm:$0xf]
  %2688 = vrot.lane.b32.xlu0 %v2676, 15
  %v2689 = vpop.permute.xlu0 %2688
  %2690 = vrot.lane.b32.xlu0 %v2677, 15
  %v2691 = vpop.permute.xlu0 %2690
  %2692 = vrot.lane.b32.xlu0 %v2678, 15
  %v2693 = vpop.permute.xlu0 %2692
  %2694 = vrot.lane.b32.xlu0 %v2679, 15
  %v2695 = vpop.permute.xlu0 %2694
  %2696 = vrot.lane.b32.xlu0 %v2680, 15
  %v2697 = vpop.permute.xlu0 %2696
  %v2698 = vsel %vm704, %v2689, %v2691
  %v2699 = vsel %vm704, %v2691, %v2693
  %v2700 = vsel %vm704, %v2693, %v2695
  %v2701 = vsel %vm704, %v2695, %v2697
  %v2703 = vsel %vm248, %v2682, 0
  %v2706 = vsel %vm252, %v2698, 0
  %v2709 = vsel %vm252, %v2699, 0
  %v2712 = vsel %vm252, %v2700, 0
  %v2715 = vsel %vm252, %v2701, 0
  %2717 = vmatpush.bf16.msra.mxu0 0
  %2718 = vmatpush.bf16.msra.mxu0 0
  %2719 = vmatpush.bf16.msra.mxu0 0
  %2720 = vmatpush.bf16.msra.mxu0 0
  %2721 = vmatpush.bf16.msra.mxu0 0
  %2722 = vmatpush.bf16.msra.mxu0 0
  %2723 = vmatpush.bf16.msra.mxu0 0
  %2724 = vmatpush.bf16.msra.mxu0 %v2706
  %2725 = vmatmul.bf16.gmra.mxu0 %v2703
  %v2726 = vpop.f32.mrf.mxu0
  %v2727 = vadd.f32 0.0, %v2726
  %v2728 = vpop.f32.mrf.mxu0
  %2729 = vdwg.mxu0
  %2730 = vmatpush.bf16.msra.mxu0 0
  %2731 = vmatpush.bf16.msra.mxu0 0
  %2732 = vmatpush.bf16.msra.mxu0 0
  %2733 = vmatpush.bf16.msra.mxu0 0
  %2734 = vmatpush.bf16.msra.mxu0 0
  %2735 = vmatpush.bf16.msra.mxu0 0
  %2736 = vmatpush.bf16.msra.mxu0 0
  %2737 = vmatpush.bf16.msra.mxu0 %v2709
  %2738 = vmatmul.bf16.gmra.mxu0 %v2703
  %v2739 = vpop.f32.mrf.mxu0
  %v2740 = vadd.f32 0.0, %v2739
  %v2741 = vpop.f32.mrf.mxu0
  %2742 = vdwg.mxu0
  %2743 = vmatpush.bf16.msra.mxu0 0
  %2744 = vmatpush.bf16.msra.mxu0 0
  %2745 = vmatpush.bf16.msra.mxu0 0
  %2746 = vmatpush.bf16.msra.mxu0 0
  %2747 = vmatpush.bf16.msra.mxu0 0
  %2748 = vmatpush.bf16.msra.mxu0 0
  %2749 = vmatpush.bf16.msra.mxu0 0
  %2750 = vmatpush.bf16.msra.mxu0 %v2712
  %2751 = vmatmul.bf16.gmra.mxu0 %v2703
  %v2752 = vpop.f32.mrf.mxu0
  %v2753 = vadd.f32 0.0, %v2752
  %v2754 = vpop.f32.mrf.mxu0
  %2755 = vdwg.mxu0
  %2756 = vmatpush.bf16.msra.mxu0 0
  %2757 = vmatpush.bf16.msra.mxu0 0
  %2758 = vmatpush.bf16.msra.mxu0 0
  %2759 = vmatpush.bf16.msra.mxu0 0
  %2760 = vmatpush.bf16.msra.mxu0 0
  %2761 = vmatpush.bf16.msra.mxu0 0
  %2762 = vmatpush.bf16.msra.mxu0 0
  %2763 = vmatpush.bf16.msra.mxu0 %v2715
  %2764 = vmatmul.bf16.gmra.mxu0 %v2703
  %v2765 = vpop.f32.mrf.mxu0
  %v2766 = vadd.f32 0.0, %v2765
  %v2767 = vpop.f32.mrf.mxu0
  %2768 = vdwg.mxu0
  %v2769 = vadd.f32 %v2615, %v2727
  %v2770 = vadd.f32 %v2616, %v2740
  %v2771 = vadd.f32 %v2617, %v2753
  %v2772 = vadd.f32 %v2618, %v2766
  %v2773 = vshrl.u32 %v2627, 16
  %v2774 = vpack.i.b16 %v2773, %v2773
  %v2776 = vperm.slane %v2774, 1
  %v2777 = vshrl.u32 %v2628, 16
  %v2778 = vpack.i.b16 %v2777, %v2777
  %v2780 = vperm.slane %v2778, 1
  %v2781 = vshrl.u32 %v2629, 16
  %v2782 = vpack.i.b16 %v2781, %v2781
  %v2784 = vperm.slane %v2782, 1
  %v2785 = vshrl.u32 %v2630, 16
  %v2786 = vpack.i.b16 %v2785, %v2785
  %v2788 = vperm.slane %v2786, 1
  %v2789 = vunpack.c.l.bf16 %v2776
  %v2790 = vunpack.c.l.bf16 %v2780
  %v2791 = vunpack.c.l.bf16 %v2784
  %v2792 = vunpack.c.l.bf16 %v2788
  %2797 = vrot.lane.b32.xlu0 %v2789, 127
  %v2798 = vpop.permute.xlu0 %2797
  %2799 = vrot.lane.b32.xlu0 %v2790, 127
  %v2800 = vpop.permute.xlu0 %2799
  %2801 = vrot.lane.b32.xlu0 %v2791, 127
  %v2802 = vpop.permute.xlu0 %2801
  %2803 = vrot.lane.b32.xlu0 %v2792, 127
  %v2804 = vpop.permute.xlu0 %2803
  %v2805 = vsel %vm812, %v2798, %v2800
  %v2806 = vsel %vm812, %v2800, %v2802
  %v2807 = vsel %vm812, %v2802, %v2804
  %v2813 = vmul.f32 %v2347, %v2798
  %v2814 = vmul.f32 %v2348, %v2805
  %v2815 = vmul.f32 %v2349, %v2806
  %v2816 = vmul.f32 %v2350, %v2807
  %v2817 = vmul.f32 %v2351, %v2804
  %v2818 = vpack.c.bf16 %v2813, %v2813
  %v2819 = vpack.c.bf16 %v2814, %v2814
  %v2820 = vpack.c.bf16 %v2815, %v2815
  %v2821 = vpack.c.bf16 %v2816, %v2816
  %v2822 = vpack.c.bf16 %v2817, %v2817
  %s2823 = scalar_lea.vmem %s9, 12
  %v2824 = vld [vmem:[%s2823] sm:$0xf]
  %2830 = vrot.lane.b32.xlu0 %v2818, 1
  %v2831 = vpop.permute.xlu0 %2830
  %2832 = vrot.lane.b32.xlu0 %v2819, 1
  %v2833 = vpop.permute.xlu0 %2832
  %2834 = vrot.lane.b32.xlu0 %v2820, 1
  %v2835 = vpop.permute.xlu0 %2834
  %2836 = vrot.lane.b32.xlu0 %v2821, 1
  %v2837 = vpop.permute.xlu0 %2836
  %2838 = vrot.lane.b32.xlu0 %v2822, 1
  %v2839 = vpop.permute.xlu0 %2838
  %v2840 = vsel %vm848, %v2831, %v2833
  %v2841 = vsel %vm848, %v2833, %v2835
  %v2842 = vsel %vm848, %v2835, %v2837
  %v2843 = vsel %vm848, %v2837, %v2839
  %v2845 = vsel %vm248, %v2824, 0
  %v2848 = vsel %vm252, %v2840, 0
  %v2851 = vsel %vm252, %v2841, 0
  %v2854 = vsel %vm252, %v2842, 0
  %v2857 = vsel %vm252, %v2843, 0
  %2859 = vmatpush.bf16.msra.mxu0 0
  %2860 = vmatpush.bf16.msra.mxu0 0
  %2861 = vmatpush.bf16.msra.mxu0 0
  %2862 = vmatpush.bf16.msra.mxu0 0
  %2863 = vmatpush.bf16.msra.mxu0 0
  %2864 = vmatpush.bf16.msra.mxu0 0
  %2865 = vmatpush.bf16.msra.mxu0 0
  %2866 = vmatpush.bf16.msra.mxu0 %v2848
  %2867 = vmatmul.bf16.gmra.mxu0 %v2845
  %v2868 = vpop.f32.mrf.mxu0
  %v2869 = vadd.f32 0.0, %v2868
  %v2870 = vpop.f32.mrf.mxu0
  %2871 = vdwg.mxu0
  %2872 = vmatpush.bf16.msra.mxu0 0
  %2873 = vmatpush.bf16.msra.mxu0 0
  %2874 = vmatpush.bf16.msra.mxu0 0
  %2875 = vmatpush.bf16.msra.mxu0 0
  %2876 = vmatpush.bf16.msra.mxu0 0
  %2877 = vmatpush.bf16.msra.mxu0 0
  %2878 = vmatpush.bf16.msra.mxu0 0
  %2879 = vmatpush.bf16.msra.mxu0 %v2851
  %2880 = vmatmul.bf16.gmra.mxu0 %v2845
  %v2881 = vpop.f32.mrf.mxu0
  %v2882 = vadd.f32 0.0, %v2881
  %v2883 = vpop.f32.mrf.mxu0
  %2884 = vdwg.mxu0
  %2885 = vmatpush.bf16.msra.mxu0 0
  %2886 = vmatpush.bf16.msra.mxu0 0
  %2887 = vmatpush.bf16.msra.mxu0 0
  %2888 = vmatpush.bf16.msra.mxu0 0
  %2889 = vmatpush.bf16.msra.mxu0 0
  %2890 = vmatpush.bf16.msra.mxu0 0
  %2891 = vmatpush.bf16.msra.mxu0 0
  %2892 = vmatpush.bf16.msra.mxu0 %v2854
  %2893 = vmatmul.bf16.gmra.mxu0 %v2845
  %v2894 = vpop.f32.mrf.mxu0
  %v2895 = vadd.f32 0.0, %v2894
  %v2896 = vpop.f32.mrf.mxu0
  %2897 = vdwg.mxu0
  %2898 = vmatpush.bf16.msra.mxu0 0
  %2899 = vmatpush.bf16.msra.mxu0 0
  %2900 = vmatpush.bf16.msra.mxu0 0
  %2901 = vmatpush.bf16.msra.mxu0 0
  %2902 = vmatpush.bf16.msra.mxu0 0
  %2903 = vmatpush.bf16.msra.mxu0 0
  %2904 = vmatpush.bf16.msra.mxu0 0
  %2905 = vmatpush.bf16.msra.mxu0 %v2857
  %2906 = vmatmul.bf16.gmra.mxu0 %v2845
  %v2907 = vpop.f32.mrf.mxu0
  %v2908 = vadd.f32 0.0, %v2907
  %v2909 = vpop.f32.mrf.mxu0
  %2910 = vdwg.mxu0
  %v2911 = vadd.f32 %v2769, %v2869
  %v2912 = vadd.f32 %v2770, %v2882
  %v2913 = vadd.f32 %v2771, %v2895
  %v2914 = vadd.f32 %v2772, %v2908
  %v2915 = vld [vmem:[#allocation2 + $0x4] sm:$0xff]
  %v2916 = vld [vmem:[#allocation2 + $0xc] sm:$0xff]
  %v2917 = vld [vmem:[#allocation2 + $0x14] sm:$0xf]
  %v2918 = vld [vmem:[%s3] sm:$0x44]
  %v2919 = vld [vmem:[%s3 + $0x8] sm:$0x44]
  %v2922 = vunpack.c.l.b16 %v2918
  %v2923 = vunpack.c.h.b16 %v2918
  %v2924 = vunpack.c.l.b16 %v2919
  %v2925 = vunpack.c.h.b16 %v2919
  %v2926 = vpack.c.b16 %v2922, %v2922
  %v2927 = vpack.c.b16 %v2923, %v2923
  %v2928 = vpack.c.b16 %v2924, %v2924
  %v2929 = vpack.c.b16 %v2925, %v2925
  %v2931 = vshrl.u32 %v2926, 16
  %v2932 = vpack.i.b16 %v2931, %v2931
  %v2934 = vperm.slane %v2932, 2
  %v2936 = vshrl.u32 %v2927, 16
  %v2937 = vpack.i.b16 %v2936, %v2936
  %v2939 = vperm.slane %v2937, 2
  %v2941 = vshrl.u32 %v2928, 16
  %v2942 = vpack.i.b16 %v2941, %v2941
  %v2944 = vperm.slane %v2942, 2
  %v2946 = vshrl.u32 %v2929, 16
  %v2947 = vpack.i.b16 %v2946, %v2946
  %v2949 = vperm.slane %v2947, 2
  %v2950 = vunpack.c.l.bf16 %v2915
  %v2951 = vunpack.c.h.bf16 %v2915
  %v2952 = vunpack.c.l.bf16 %v2916
  %v2953 = vunpack.c.h.bf16 %v2916
  %v2954 = vunpack.c.l.bf16 %v2917
  %v2955 = vunpack.c.l.bf16 %v2934
  %v2956 = vunpack.c.l.bf16 %v2939
  %v2957 = vunpack.c.l.bf16 %v2944
  %v2958 = vunpack.c.l.bf16 %v2949
  %2963 = vrot.lane.b32.xlu0 %v2955, 1
  %v2964 = vpop.permute.xlu0 %2963
  %2965 = vrot.lane.b32.xlu0 %v2956, 1
  %v2966 = vpop.permute.xlu0 %2965
  %2967 = vrot.lane.b32.xlu0 %v2957, 1
  %v2968 = vpop.permute.xlu0 %2967
  %2969 = vrot.lane.b32.xlu0 %v2958, 1
  %v2970 = vpop.permute.xlu0 %2969
  %v2971 = vsel %vm980, %v2964, %v2966
  %v2972 = vsel %vm980, %v2966, %v2968
  %v2973 = vsel %vm980, %v2968, %v2970
  %v2979 = vmul.f32 %v2950, %v2964
  %v2980 = vmul.f32 %v2951, %v2971
  %v2981 = vmul.f32 %v2952, %v2972
  %v2982 = vmul.f32 %v2953, %v2973
  %v2983 = vmul.f32 %v2954, %v2970
  %v2984 = vpack.c.bf16 %v2979, %v2979
  %v2985 = vpack.c.bf16 %v2980, %v2980
  %v2986 = vpack.c.bf16 %v2981, %v2981
  %v2987 = vpack.c.bf16 %v2982, %v2982
  %v2988 = vpack.c.bf16 %v2983, %v2983
  %s2989 = scalar_lea.vmem %s9, 20
  %v2990 = vld [vmem:[%s2989] sm:$0xf]
  %2996 = vrot.lane.b32.xlu0 %v2984, 127
  %v2997 = vpop.permute.xlu0 %2996
  %2998 = vrot.lane.b32.xlu0 %v2985, 127
  %v2999 = vpop.permute.xlu0 %2998
  %3000 = vrot.lane.b32.xlu0 %v2986, 127
  %v3001 = vpop.permute.xlu0 %3000
  %3002 = vrot.lane.b32.xlu0 %v2987, 127
  %v3003 = vpop.permute.xlu0 %3002
  %3004 = vrot.lane.b32.xlu0 %v2988, 127
  %v3005 = vpop.permute.xlu0 %3004
  %v3006 = vsel %vm1016, %v2997, %v2999
  %v3007 = vsel %vm1016, %v2999, %v3001
  %v3008 = vsel %vm1016, %v3001, %v3003
  %v3009 = vsel %vm1016, %v3003, %v3005
  %v3011 = vsel %vm248, %v2990, 0
  %v3014 = vsel %vm252, %v3006, 0
  %v3017 = vsel %vm252, %v3007, 0
  %v3020 = vsel %vm252, %v3008, 0
  %v3023 = vsel %vm252, %v3009, 0
  %3025 = vmatpush.bf16.msra.mxu0 0
  %3026 = vmatpush.bf16.msra.mxu0 0
  %3027 = vmatpush.bf16.msra.mxu0 0
  %3028 = vmatpush.bf16.msra.mxu0 0
  %3029 = vmatpush.bf16.msra.mxu0 0
  %3030 = vmatpush.bf16.msra.mxu0 0
  %3031 = vmatpush.bf16.msra.mxu0 0
  %3032 = vmatpush.bf16.msra.mxu0 %v3014
  %3033 = vmatmul.bf16.gmra.mxu0 %v3011
  %v3034 = vpop.f32.mrf.mxu0
  %v3035 = vadd.f32 0.0, %v3034
  %v3036 = vpop.f32.mrf.mxu0
  %3037 = vdwg.mxu0
  %3038 = vmatpush.bf16.msra.mxu0 0
  %3039 = vmatpush.bf16.msra.mxu0 0
  %3040 = vmatpush.bf16.msra.mxu0 0
  %3041 = vmatpush.bf16.msra.mxu0 0
  %3042 = vmatpush.bf16.msra.mxu0 0
  %3043 = vmatpush.bf16.msra.mxu0 0
  %3044 = vmatpush.bf16.msra.mxu0 0
  %3045 = vmatpush.bf16.msra.mxu0 %v3017
  %3046 = vmatmul.bf16.gmra.mxu0 %v3011
  %v3047 = vpop.f32.mrf.mxu0
  %v3048 = vadd.f32 0.0, %v3047
  %v3049 = vpop.f32.mrf.mxu0
  %3050 = vdwg.mxu0
  %3051 = vmatpush.bf16.msra.mxu0 0
  %3052 = vmatpush.bf16.msra.mxu0 0
  %3053 = vmatpush.bf16.msra.mxu0 0
  %3054 = vmatpush.bf16.msra.mxu0 0
  %3055 = vmatpush.bf16.msra.mxu0 0
  %3056 = vmatpush.bf16.msra.mxu0 0
  %3057 = vmatpush.bf16.msra.mxu0 0
  %3058 = vmatpush.bf16.msra.mxu0 %v3020
  %3059 = vmatmul.bf16.gmra.mxu0 %v3011
  %v3060 = vpop.f32.mrf.mxu0
  %v3061 = vadd.f32 0.0, %v3060
  %v3062 = vpop.f32.mrf.mxu0
  %3063 = vdwg.mxu0
  %3064 = vmatpush.bf16.msra.mxu0 0
  %3065 = vmatpush.bf16.msra.mxu0 0
  %3066 = vmatpush.bf16.msra.mxu0 0
  %3067 = vmatpush.bf16.msra.mxu0 0
  %3068 = vmatpush.bf16.msra.mxu0 0
  %3069 = vmatpush.bf16.msra.mxu0 0
  %3070 = vmatpush.bf16.msra.mxu0 0
  %3071 = vmatpush.bf16.msra.mxu0 %v3023
  %3072 = vmatmul.bf16.gmra.mxu0 %v3011
  %v3073 = vpop.f32.mrf.mxu0
  %v3074 = vadd.f32 0.0, %v3073
  %v3075 = vpop.f32.mrf.mxu0
  %3076 = vdwg.mxu0
  %v3077 = vadd.f32 %v2911, %v3035
  %v3078 = vadd.f32 %v2912, %v3048
  %v3079 = vadd.f32 %v2913, %v3061
  %v3080 = vadd.f32 %v2914, %v3074
  %v3081 = vld [vmem:[%s3] sm:$0x88]
  %v3082 = vld [vmem:[%s3 + $0x8] sm:$0x88]
  %v3085 = vunpack.c.l.b16 %v3081
  %v3086 = vunpack.c.h.b16 %v3081
  %v3087 = vunpack.c.l.b16 %v3082
  %v3088 = vunpack.c.h.b16 %v3082
  %v3089 = vpack.c.b16 %v3085, %v3085
  %v3090 = vpack.c.b16 %v3086, %v3086
  %v3091 = vpack.c.b16 %v3087, %v3087
  %v3092 = vpack.c.b16 %v3088, %v3088
  %v3094 = vpack.i.b16 %v3089, %v3089
  %v3096 = vperm.slane %v3094, 3
  %v3098 = vpack.i.b16 %v3090, %v3090
  %v3100 = vperm.slane %v3098, 3
  %v3102 = vpack.i.b16 %v3091, %v3091
  %v3104 = vperm.slane %v3102, 3
  %v3106 = vpack.i.b16 %v3092, %v3092
  %v3108 = vperm.slane %v3106, 3
  %v3109 = vunpack.c.l.bf16 %v3096
  %v3110 = vunpack.c.l.bf16 %v3100
  %v3111 = vunpack.c.l.bf16 %v3104
  %v3112 = vunpack.c.l.bf16 %v3108
  %3117 = vrot.lane.b32.xlu0 %v3109, 15
  %v3118 = vpop.permute.xlu0 %3117
  %3119 = vrot.lane.b32.xlu0 %v3110, 15
  %v3120 = vpop.permute.xlu0 %3119
  %3121 = vrot.lane.b32.xlu0 %v3111, 15
  %v3122 = vpop.permute.xlu0 %3121
  %3123 = vrot.lane.b32.xlu0 %v3112, 15
  %v3124 = vpop.permute.xlu0 %3123
  %v3125 = vsel %vm1136, %v3118, %v3120
  %v3126 = vsel %vm1136, %v3120, %v3122
  %v3127 = vsel %vm1136, %v3122, %v3124
  %v3133 = vmul.f32 %v2950, %v3118
  %v3134 = vmul.f32 %v2951, %v3125
  %v3135 = vmul.f32 %v2952, %v3126
  %v3136 = vmul.f32 %v2953, %v3127
  %v3137 = vmul.f32 %v2954, %v3124
  %v3138 = vpack.c.bf16 %v3133, %v3133
  %v3139 = vpack.c.bf16 %v3134, %v3134
  %v3140 = vpack.c.bf16 %v3135, %v3135
  %v3141 = vpack.c.bf16 %v3136, %v3136
  %v3142 = vpack.c.bf16 %v3137, %v3137
  %s3143 = scalar_lea.vmem %s9, 24
  %v3144 = vld [vmem:[%s3143] sm:$0xf]
  %3150 = vrot.lane.b32.xlu0 %v3138, 113
  %v3151 = vpop.permute.xlu0 %3150
  %3152 = vrot.lane.b32.xlu0 %v3139, 113
  %v3153 = vpop.permute.xlu0 %3152
  %3154 = vrot.lane.b32.xlu0 %v3140, 113
  %v3155 = vpop.permute.xlu0 %3154
  %3156 = vrot.lane.b32.xlu0 %v3141, 113
  %v3157 = vpop.permute.xlu0 %3156
  %3158 = vrot.lane.b32.xlu0 %v3142, 113
  %v3159 = vpop.permute.xlu0 %3158
  %v3160 = vsel %vm1172, %v3151, %v3153
  %v3161 = vsel %vm1172, %v3153, %v3155
  %v3162 = vsel %vm1172, %v3155, %v3157
  %v3163 = vsel %vm1172, %v3157, %v3159
  %v3165 = vsel %vm248, %v3144, 0
  %v3168 = vsel %vm252, %v3160, 0
  %v3171 = vsel %vm252, %v3161, 0
  %v3174 = vsel %vm252, %v3162, 0
  %v3177 = vsel %vm252, %v3163, 0
  %3179 = vmatpush.bf16.msra.mxu0 0
  %3180 = vmatpush.bf16.msra.mxu0 0
  %3181 = vmatpush.bf16.msra.mxu0 0
  %3182 = vmatpush.bf16.msra.mxu0 0
  %3183 = vmatpush.bf16.msra.mxu0 0
  %3184 = vmatpush.bf16.msra.mxu0 0
  %3185 = vmatpush.bf16.msra.mxu0 0
  %3186 = vmatpush.bf16.msra.mxu0 %v3168
  %3187 = vmatmul.bf16.gmra.mxu0 %v3165
  %v3188 = vpop.f32.mrf.mxu0
  %v3189 = vadd.f32 0.0, %v3188
  %v3190 = vpop.f32.mrf.mxu0
  %3191 = vdwg.mxu0
  %3192 = vmatpush.bf16.msra.mxu0 0
  %3193 = vmatpush.bf16.msra.mxu0 0
  %3194 = vmatpush.bf16.msra.mxu0 0
  %3195 = vmatpush.bf16.msra.mxu0 0
  %3196 = vmatpush.bf16.msra.mxu0 0
  %3197 = vmatpush.bf16.msra.mxu0 0
  %3198 = vmatpush.bf16.msra.mxu0 0
  %3199 = vmatpush.bf16.msra.mxu0 %v3171
  %3200 = vmatmul.bf16.gmra.mxu0 %v3165
  %v3201 = vpop.f32.mrf.mxu0
  %v3202 = vadd.f32 0.0, %v3201
  %v3203 = vpop.f32.mrf.mxu0
  %3204 = vdwg.mxu0
  %3205 = vmatpush.bf16.msra.mxu0 0
  %3206 = vmatpush.bf16.msra.mxu0 0
  %3207 = vmatpush.bf16.msra.mxu0 0
  %3208 = vmatpush.bf16.msra.mxu0 0
  %3209 = vmatpush.bf16.msra.mxu0 0
  %3210 = vmatpush.bf16.msra.mxu0 0
  %3211 = vmatpush.bf16.msra.mxu0 0
  %3212 = vmatpush.bf16.msra.mxu0 %v3174
  %3213 = vmatmul.bf16.gmra.mxu0 %v3165
  %v3214 = vpop.f32.mrf.mxu0
  %v3215 = vadd.f32 0.0, %v3214
  %v3216 = vpop.f32.mrf.mxu0
  %3217 = vdwg.mxu0
  %3218 = vmatpush.bf16.msra.mxu0 0
  %3219 = vmatpush.bf16.msra.mxu0 0
  %3220 = vmatpush.bf16.msra.mxu0 0
  %3221 = vmatpush.bf16.msra.mxu0 0
  %3222 = vmatpush.bf16.msra.mxu0 0
  %3223 = vmatpush.bf16.msra.mxu0 0
  %3224 = vmatpush.bf16.msra.mxu0 0
  %3225 = vmatpush.bf16.msra.mxu0 %v3177
  %3226 = vmatmul.bf16.gmra.mxu0 %v3165
  %v3227 = vpop.f32.mrf.mxu0
  %v3228 = vadd.f32 0.0, %v3227
  %v3229 = vpop.f32.mrf.mxu0
  %3230 = vdwg.mxu0
  %v3231 = vadd.f32 %v3077, %v3189
  %v3232 = vadd.f32 %v3078, %v3202
  %v3233 = vadd.f32 %v3079, %v3215
  %v3234 = vadd.f32 %v3080, %v3228
  %v3235 = vshrl.u32 %v3089, 16
  %v3236 = vpack.i.b16 %v3235, %v3235
  %v3238 = vperm.slane %v3236, 3
  %v3239 = vshrl.u32 %v3090, 16
  %v3240 = vpack.i.b16 %v3239, %v3239
  %v3242 = vperm.slane %v3240, 3
  %v3243 = vshrl.u32 %v3091, 16
  %v3244 = vpack.i.b16 %v3243, %v3243
  %v3246 = vperm.slane %v3244, 3
  %v3247 = vshrl.u32 %v3092, 16
  %v3248 = vpack.i.b16 %v3247, %v3247
  %v3250 = vperm.slane %v3248, 3
  %v3251 = vunpack.c.l.bf16 %v3238
  %v3252 = vunpack.c.l.bf16 %v3242
  %v3253 = vunpack.c.l.bf16 %v3246
  %v3254 = vunpack.c.l.bf16 %v3250
  %3259 = vrot.lane.b32.xlu0 %v3251, 16
  %v3260 = vpop.permute.xlu0 %3259
  %3261 = vrot.lane.b32.xlu0 %v3252, 16
  %v3262 = vpop.permute.xlu0 %3261
  %3263 = vrot.lane.b32.xlu0 %v3253, 16
  %v3264 = vpop.permute.xlu0 %3263
  %3265 = vrot.lane.b32.xlu0 %v3254, 16
  %v3266 = vpop.permute.xlu0 %3265
  %v3267 = vsel %vm1280, %v3260, %v3262
  %v3268 = vsel %vm1280, %v3262, %v3264
  %v3269 = vsel %vm1280, %v3264, %v3266
  %v3275 = vmul.f32 %v2950, %v3260
  %v3276 = vmul.f32 %v2951, %v3267
  %v3277 = vmul.f32 %v2952, %v3268
  %v3278 = vmul.f32 %v2953, %v3269
  %v3279 = vmul.f32 %v2954, %v3266
  %v3280 = vpack.c.bf16 %v3275, %v3275
  %v3281 = vpack.c.bf16 %v3276, %v3276
  %v3282 = vpack.c.bf16 %v3277, %v3277
  %v3283 = vpack.c.bf16 %v3278, %v3278
  %v3284 = vpack.c.bf16 %v3279, %v3279
  %s3285 = scalar_lea.vmem %s9, 28
  %v3286 = vld [vmem:[%s3285] sm:$0xf]
  %3292 = vrot.lane.b32.xlu0 %v3280, 112
  %v3293 = vpop.permute.xlu0 %3292
  %3294 = vrot.lane.b32.xlu0 %v3281, 112
  %v3295 = vpop.permute.xlu0 %3294
  %3296 = vrot.lane.b32.xlu0 %v3282, 112
  %v3297 = vpop.permute.xlu0 %3296
  %3298 = vrot.lane.b32.xlu0 %v3283, 112
  %v3299 = vpop.permute.xlu0 %3298
  %3300 = vrot.lane.b32.xlu0 %v3284, 112
  %v3301 = vpop.permute.xlu0 %3300
  %v3302 = vsel %vm1316, %v3293, %v3295
  %v3303 = vsel %vm1316, %v3295, %v3297
  %v3304 = vsel %vm1316, %v3297, %v3299
  %v3305 = vsel %vm1316, %v3299, %v3301
  %v3307 = vsel %vm248, %v3286, 0
  %v3310 = vsel %vm252, %v3302, 0
  %v3313 = vsel %vm252, %v3303, 0
  %v3316 = vsel %vm252, %v3304, 0
  %v3319 = vsel %vm252, %v3305, 0
  %3321 = vmatpush.bf16.msra.mxu0 0
  %3322 = vmatpush.bf16.msra.mxu0 0
  %3323 = vmatpush.bf16.msra.mxu0 0
  %3324 = vmatpush.bf16.msra.mxu0 0
  %3325 = vmatpush.bf16.msra.mxu0 0
  %3326 = vmatpush.bf16.msra.mxu0 0
  %3327 = vmatpush.bf16.msra.mxu0 0
  %3328 = vmatpush.bf16.msra.mxu0 %v3310
  %3329 = vmatmul.bf16.gmra.mxu0 %v3307
  %v3330 = vpop.f32.mrf.mxu0
  %v3331 = vadd.f32 0.0, %v3330
  %v3332 = vpop.f32.mrf.mxu0
  %3333 = vdwg.mxu0
  %3334 = vmatpush.bf16.msra.mxu0 0
  %3335 = vmatpush.bf16.msra.mxu0 0
  %3336 = vmatpush.bf16.msra.mxu0 0
  %3337 = vmatpush.bf16.msra.mxu0 0
  %3338 = vmatpush.bf16.msra.mxu0 0
  %3339 = vmatpush.bf16.msra.mxu0 0
  %3340 = vmatpush.bf16.msra.mxu0 0
  %3341 = vmatpush.bf16.msra.mxu0 %v3313
  %3342 = vmatmul.bf16.gmra.mxu0 %v3307
  %v3343 = vpop.f32.mrf.mxu0
  %v3344 = vadd.f32 0.0, %v3343
  %v3345 = vpop.f32.mrf.mxu0
  %3346 = vdwg.mxu0
  %3347 = vmatpush.bf16.msra.mxu0 0
  %3348 = vmatpush.bf16.msra.mxu0 0
  %3349 = vmatpush.bf16.msra.mxu0 0
  %3350 = vmatpush.bf16.msra.mxu0 0
  %3351 = vmatpush.bf16.msra.mxu0 0
  %3352 = vmatpush.bf16.msra.mxu0 0
  %3353 = vmatpush.bf16.msra.mxu0 0
  %3354 = vmatpush.bf16.msra.mxu0 %v3316
  %3355 = vmatmul.bf16.gmra.mxu0 %v3307
  %v3356 = vpop.f32.mrf.mxu0
  %v3357 = vadd.f32 0.0, %v3356
  %v3358 = vpop.f32.mrf.mxu0
  %3359 = vdwg.mxu0
  %3360 = vmatpush.bf16.msra.mxu0 0
  %3361 = vmatpush.bf16.msra.mxu0 0
  %3362 = vmatpush.bf16.msra.mxu0 0
  %3363 = vmatpush.bf16.msra.mxu0 0
  %3364 = vmatpush.bf16.msra.mxu0 0
  %3365 = vmatpush.bf16.msra.mxu0 0
  %3366 = vmatpush.bf16.msra.mxu0 0
  %3367 = vmatpush.bf16.msra.mxu0 %v3319
  %3368 = vmatmul.bf16.gmra.mxu0 %v3307
  %v3369 = vpop.f32.mrf.mxu0
  %v3370 = vadd.f32 0.0, %v3369
  %v3371 = vpop.f32.mrf.mxu0
  %3372 = vdwg.mxu0
  %v3373 = vadd.f32 %v3231, %v3331
  %v3374 = vadd.f32 %v3232, %v3344
  %v3375 = vadd.f32 %v3233, %v3357
  %v3376 = vadd.f32 %v3234, %v3370
  %v3377 = vld [vmem:[%s3 + $0x10] sm:$0x11]
  %v3378 = vld [vmem:[%s3 + $0x18] sm:$0x11]
  %v3381 = vunpack.c.l.b16 %v3377
  %v3382 = vunpack.c.h.b16 %v3377
  %v3383 = vunpack.c.l.b16 %v3378
  %v3384 = vunpack.c.h.b16 %v3378
  %v3385 = vpack.c.b16 %v3381, %v3381
  %v3386 = vpack.c.b16 %v3382, %v3382
  %v3387 = vpack.c.b16 %v3383, %v3383
  %v3388 = vpack.c.b16 %v3384, %v3384
  %v3390 = vpack.i.b16 %v3385, %v3385
  %v3392 = vperm.slane %v3390, 0
  %v3394 = vpack.i.b16 %v3386, %v3386
  %v3396 = vperm.slane %v3394, 0
  %v3398 = vpack.i.b16 %v3387, %v3387
  %v3400 = vperm.slane %v3398, 0
  %v3402 = vpack.i.b16 %v3388, %v3388
  %v3404 = vperm.slane %v3402, 0
  %v3405 = vunpack.c.l.bf16 %v3392
  %v3406 = vunpack.c.l.bf16 %v3396
  %v3407 = vunpack.c.l.bf16 %v3400
  %v3408 = vunpack.c.l.bf16 %v3404
  %3413 = vrot.lane.b32.xlu0 %v3405, 17
  %v3414 = vpop.permute.xlu0 %3413
  %3415 = vrot.lane.b32.xlu0 %v3406, 17
  %v3416 = vpop.permute.xlu0 %3415
  %3417 = vrot.lane.b32.xlu0 %v3407, 17
  %v3418 = vpop.permute.xlu0 %3417
  %3419 = vrot.lane.b32.xlu0 %v3408, 17
  %v3420 = vpop.permute.xlu0 %3419
  %v3421 = vsel %vm1436, %v3414, %v3416
  %v3422 = vsel %vm1436, %v3416, %v3418
  %v3423 = vsel %vm1436, %v3418, %v3420
  %v3429 = vmul.f32 %v2950, %v3414
  %v3430 = vmul.f32 %v2951, %v3421
  %v3431 = vmul.f32 %v2952, %v3422
  %v3432 = vmul.f32 %v2953, %v3423
  %v3433 = vmul.f32 %v2954, %v3420
  %v3434 = vpack.c.bf16 %v3429, %v3429
  %v3435 = vpack.c.bf16 %v3430, %v3430
  %v3436 = vpack.c.bf16 %v3431, %v3431
  %v3437 = vpack.c.bf16 %v3432, %v3432
  %v3438 = vpack.c.bf16 %v3433, %v3433
  %s3439 = scalar_lea.vmem %s9, 32
  %v3440 = vld [vmem:[%s3439] sm:$0xf]
  %3446 = vrot.lane.b32.xlu0 %v3434, 111
  %v3447 = vpop.permute.xlu0 %3446
  %3448 = vrot.lane.b32.xlu0 %v3435, 111
  %v3449 = vpop.permute.xlu0 %3448
  %3450 = vrot.lane.b32.xlu0 %v3436, 111
  %v3451 = vpop.permute.xlu0 %3450
  %3452 = vrot.lane.b32.xlu0 %v3437, 111
  %v3453 = vpop.permute.xlu0 %3452
  %3454 = vrot.lane.b32.xlu0 %v3438, 111
  %v3455 = vpop.permute.xlu0 %3454
  %v3456 = vsel %vm1472, %v3447, %v3449
  %v3457 = vsel %vm1472, %v3449, %v3451
  %v3458 = vsel %vm1472, %v3451, %v3453
  %v3459 = vsel %vm1472, %v3453, %v3455
  %v3461 = vsel %vm248, %v3440, 0
  %v3464 = vsel %vm252, %v3456, 0
  %v3467 = vsel %vm252, %v3457, 0
  %v3470 = vsel %vm252, %v3458, 0
  %v3473 = vsel %vm252, %v3459, 0
  %3475 = vmatpush.bf16.msra.mxu0 0
  %3476 = vmatpush.bf16.msra.mxu0 0
  %3477 = vmatpush.bf16.msra.mxu0 0
  %3478 = vmatpush.bf16.msra.mxu0 0
  %3479 = vmatpush.bf16.msra.mxu0 0
  %3480 = vmatpush.bf16.msra.mxu0 0
  %3481 = vmatpush.bf16.msra.mxu0 0
  %3482 = vmatpush.bf16.msra.mxu0 %v3464
  %3483 = vmatmul.bf16.gmra.mxu0 %v3461
  %v3484 = vpop.f32.mrf.mxu0
  %v3485 = vadd.f32 0.0, %v3484
  %v3486 = vpop.f32.mrf.mxu0
  %3487 = vdwg.mxu0
  %3488 = vmatpush.bf16.msra.mxu0 0
  %3489 = vmatpush.bf16.msra.mxu0 0
  %3490 = vmatpush.bf16.msra.mxu0 0
  %3491 = vmatpush.bf16.msra.mxu0 0
  %3492 = vmatpush.bf16.msra.mxu0 0
  %3493 = vmatpush.bf16.msra.mxu0 0
  %3494 = vmatpush.bf16.msra.mxu0 0
  %3495 = vmatpush.bf16.msra.mxu0 %v3467
  %3496 = vmatmul.bf16.gmra.mxu0 %v3461
  %v3497 = vpop.f32.mrf.mxu0
  %v3498 = vadd.f32 0.0, %v3497
  %v3499 = vpop.f32.mrf.mxu0
  %3500 = vdwg.mxu0
  %3501 = vmatpush.bf16.msra.mxu0 0
  %3502 = vmatpush.bf16.msra.mxu0 0
  %3503 = vmatpush.bf16.msra.mxu0 0
  %3504 = vmatpush.bf16.msra.mxu0 0
  %3505 = vmatpush.bf16.msra.mxu0 0
  %3506 = vmatpush.bf16.msra.mxu0 0
  %3507 = vmatpush.bf16.msra.mxu0 0
  %3508 = vmatpush.bf16.msra.mxu0 %v3470
  %3509 = vmatmul.bf16.gmra.mxu0 %v3461
  %v3510 = vpop.f32.mrf.mxu0
  %v3511 = vadd.f32 0.0, %v3510
  %v3512 = vpop.f32.mrf.mxu0
  %3513 = vdwg.mxu0
  %3514 = vmatpush.bf16.msra.mxu0 0
  %3515 = vmatpush.bf16.msra.mxu0 0
  %3516 = vmatpush.bf16.msra.mxu0 0
  %3517 = vmatpush.bf16.msra.mxu0 0
  %3518 = vmatpush.bf16.msra.mxu0 0
  %3519 = vmatpush.bf16.msra.mxu0 0
  %3520 = vmatpush.bf16.msra.mxu0 0
  %3521 = vmatpush.bf16.msra.mxu0 %v3473
  %3522 = vmatmul.bf16.gmra.mxu0 %v3461
  %v3523 = vpop.f32.mrf.mxu0
  %v3524 = vadd.f32 0.0, %v3523
  %v3525 = vpop.f32.mrf.mxu0
  %3526 = vdwg.mxu0
  %v3527 = vadd.f32 %v3373, %v3485
  %v3528 = vadd.f32 %v3374, %v3498
  %v3529 = vadd.f32 %v3375, %v3511
  %v3530 = vadd.f32 %v3376, %v3524
  %v3531 = vrot.slane %v3527, 4
  %v3532 = vsel %vm1549, 0.0, %v3531
  %v3534 = vunpack.c.l.s4 1983009808
  %v3535 = vunpack.c.0.s8 %v3534
  %v3536 = vperm.slane %v3527, %v3535
  %v3538 = vunpack.c.l.s4 1983009808
  %v3539 = vunpack.c.0.s8 %v3538
  %v3540 = vperm.slane %v3532, %v3539
  %v3541 = vrot.slane %v3528, 4
  %v3542 = vsel %vm1549, 0.0, %v3541
  %v3544 = vunpack.c.l.s4 1983009808
  %v3545 = vunpack.c.0.s8 %v3544
  %v3546 = vperm.slane %v3528, %v3545
  %v3548 = vunpack.c.l.s4 1983009808
  %v3549 = vunpack.c.0.s8 %v3548
  %v3550 = vperm.slane %v3542, %v3549
  %v3551 = vrot.slane %v3546, 4
  %v3552 = vsel %vm1549, %v3551, %v3536
  %v3553 = vrot.slane %v3536, 4
  %v3554 = vsel %vm1549, %v3546, %v3553
  %v3556 = vunpack.c.l.s4 1934713408
  %v3557 = vunpack.c.0.s8 %v3556
  %v3558 = vperm.slane %v3552, %v3557
  %v3560 = vunpack.c.l.s4 1934713408
  %v3561 = vunpack.c.0.s8 %v3560
  %v3562 = vperm.slane %v3554, %v3561
  %v3563 = vrot.slane %v3550, 4
  %v3564 = vsel %vm1549, %v3563, %v3540
  %v3565 = vrot.slane %v3540, 4
  %v3566 = vsel %vm1549, %v3550, %v3565
  %v3568 = vunpack.c.l.s4 1934713408
  %v3569 = vunpack.c.0.s8 %v3568
  %v3570 = vperm.slane %v3564, %v3569
  %v3572 = vunpack.c.l.s4 1934713408
  %v3573 = vunpack.c.0.s8 %v3572
  %v3574 = vperm.slane %v3566, %v3573
  %v3575 = vrot.slane %v3558, 4
  %v3576 = vsel %vm1549, 0.0, %v3575
  %v3577 = vrot.slane %v3562, 4
  %v3578 = vsel %vm1549, 0.0, %v3577
  %v3579 = vrot.slane %v3570, 4
  %v3580 = vsel %vm1549, 0.0, %v3579
  %v3581 = vrot.slane %v3574, 4
  %v3582 = vsel %vm1549, 0.0, %v3581
  %v3583 = vsel %vm1601, %v3558, 0.0
  %v3584 = vrot.slane %v3583, 4
  %v3585 = vadd.f32 %v3583, %v3584
  %v3586 = vrot.slane %v3585, 2
  %v3587 = vadd.f32 %v3585, %v3586
  %v3588 = vrot.slane %v3587, 1
  %v3589 = vadd.f32 %v3587, %v3588
  %v3590 = vsel %vm1601, %v3576, 0.0
  %v3591 = vrot.slane %v3590, 4
  %v3592 = vadd.f32 %v3590, %v3591
  %v3593 = vrot.slane %v3592, 2
  %v3594 = vadd.f32 %v3592, %v3593
  %v3595 = vrot.slane %v3594, 1
  %v3596 = vadd.f32 %v3594, %v3595
  %v3597 = vsel %vm1601, %v3562, 0.0
  %v3598 = vrot.slane %v3597, 4
  %v3599 = vadd.f32 %v3597, %v3598
  %v3600 = vrot.slane %v3599, 2
  %v3601 = vadd.f32 %v3599, %v3600
  %v3602 = vrot.slane %v3601, 1
  %v3603 = vadd.f32 %v3601, %v3602
  %v3604 = vsel %vm1601, %v3578, 0.0
  %v3605 = vrot.slane %v3604, 4
  %v3606 = vadd.f32 %v3604, %v3605
  %v3607 = vrot.slane %v3606, 2
  %v3608 = vadd.f32 %v3606, %v3607
  %v3609 = vrot.slane %v3608, 1
  %v3610 = vadd.f32 %v3608, %v3609
  %v3611 = vsel %vm1601, %v3570, 0.0
  %v3612 = vrot.slane %v3611, 4
  %v3613 = vadd.f32 %v3611, %v3612
  %v3614 = vrot.slane %v3613, 2
  %v3615 = vadd.f32 %v3613, %v3614
  %v3616 = vrot.slane %v3615, 1
  %v3617 = vadd.f32 %v3615, %v3616
  %v3618 = vsel %vm1601, %v3580, 0.0
  %v3619 = vrot.slane %v3618, 4
  %v3620 = vadd.f32 %v3618, %v3619
  %v3621 = vrot.slane %v3620, 2
  %v3622 = vadd.f32 %v3620, %v3621
  %v3623 = vrot.slane %v3622, 1
  %v3624 = vadd.f32 %v3622, %v3623
  %v3625 = vsel %vm1601, %v3574, 0.0
  %v3626 = vrot.slane %v3625, 4
  %v3627 = vadd.f32 %v3625, %v3626
  %v3628 = vrot.slane %v3627, 2
  %v3629 = vadd.f32 %v3627, %v3628
  %v3630 = vrot.slane %v3629, 1
  %v3631 = vadd.f32 %v3629, %v3630
  %v3632 = vsel %vm1601, %v3582, 0.0
  %v3633 = vrot.slane %v3632, 4
  %v3634 = vadd.f32 %v3632, %v3633
  %v3635 = vrot.slane %v3634, 2
  %v3636 = vadd.f32 %v3634, %v3635
  %v3637 = vrot.slane %v3636, 1
  %v3638 = vadd.f32 %v3636, %v3637
  %v3639 = vld [vmem:[%s4] sm:$0xff]
  %v3648 = vsel %vm1667, %v3596, %v3589
  %v3649 = vsel %vm1669, %v3603, %v3648
  %v3650 = vsel %vm1671, %v3610, %v3649
  %v3651 = vsel %vm1673, %v3617, %v3650
  %v3652 = vsel %vm1675, %v3624, %v3651
  %v3653 = vsel %vm1677, %v3631, %v3652
  %v3654 = vsel %vm1679, %v3638, %v3653
  %v3657 = vsel %vm248, %v3639, 0
  %3659 = vmatpush.msra.mxu0 0.0
  %3660 = vmatpush.msra.mxu0 0.0
  %3661 = vmatpush.msra.mxu0 0.0
  %3662 = vmatpush.msra.mxu0 0.0
  %3663 = vmatpush.msra.mxu0 0.0
  %3664 = vmatpush.msra.mxu0 0.0
  %3665 = vmatpush.msra.mxu0 0.0
  %3666 = vmatpush.msra.mxu0 0.0
  %3667 = vmatpush.msra.mxu0 0.0
  %3668 = vmatpush.msra.mxu0 0.0
  %3669 = vmatpush.msra.mxu0 0.0
  %3670 = vmatpush.msra.mxu0 0.0
  %3671 = vmatpush.msra.mxu0 0.0
  %3672 = vmatpush.msra.mxu0 0.0
  %3673 = vmatpush.msra.mxu0 0.0
  %3674 = vmatpush.msra.mxu0 %v3654
  %3675 = vmatmul.f32.gmra.mxu0 %v3657
  %v3676 = vpop.f32.mrf.mxu0
  %v3677 = vadd.f32 0.0, %v3676
  %3678 = vdwg.mxu0
  %3679 = vadd.xlane.f32.xlu0 %v3677
  %v3680 = vpop.xlane.xlu0 %3679
  %v3681 = vsub.f32 %v3527, %v3680
  %v3682 = vsub.f32 %v3528, %v3680
  %v3683 = vmul.f32 %v3681, %v3681
  %v3684 = vmul.f32 %v3682, %v3682
  %v3685 = vrot.slane %v3683, 4
  %v3686 = vsel %vm1549, 0.0, %v3685
  %v3688 = vunpack.c.l.s4 1983009808
  %v3689 = vunpack.c.0.s8 %v3688
  %v3690 = vperm.slane %v3683, %v3689
  %v3692 = vunpack.c.l.s4 1983009808
  %v3693 = vunpack.c.0.s8 %v3692
  %v3694 = vperm.slane %v3686, %v3693
  %v3695 = vrot.slane %v3684, 4
  %v3696 = vsel %vm1549, 0.0, %v3695
  %v3698 = vunpack.c.l.s4 1983009808
  %v3699 = vunpack.c.0.s8 %v3698
  %v3700 = vperm.slane %v3684, %v3699
  %v3702 = vunpack.c.l.s4 1983009808
  %v3703 = vunpack.c.0.s8 %v3702
  %v3704 = vperm.slane %v3696, %v3703
  %v3705 = vrot.slane %v3700, 4
  %v3706 = vsel %vm1549, %v3705, %v3690
  %v3707 = vrot.slane %v3690, 4
  %v3708 = vsel %vm1549, %v3700, %v3707
  %v3710 = vunpack.c.l.s4 1934713408
  %v3711 = vunpack.c.0.s8 %v3710
  %v3712 = vperm.slane %v3706, %v3711
  %v3714 = vunpack.c.l.s4 1934713408
  %v3715 = vunpack.c.0.s8 %v3714
  %v3716 = vperm.slane %v3708, %v3715
  %v3717 = vrot.slane %v3704, 4
  %v3718 = vsel %vm1549, %v3717, %v3694
  %v3719 = vrot.slane %v3694, 4
  %v3720 = vsel %vm1549, %v3704, %v3719
  %v3722 = vunpack.c.l.s4 1934713408
  %v3723 = vunpack.c.0.s8 %v3722
  %v3724 = vperm.slane %v3718, %v3723
  %v3726 = vunpack.c.l.s4 1934713408
  %v3727 = vunpack.c.0.s8 %v3726
  %v3728 = vperm.slane %v3720, %v3727
  %v3729 = vrot.slane %v3712, 4
  %v3730 = vsel %vm1549, 0.0, %v3729
  %v3731 = vrot.slane %v3716, 4
  %v3732 = vsel %vm1549, 0.0, %v3731
  %v3733 = vrot.slane %v3724, 4
  %v3734 = vsel %vm1549, 0.0, %v3733
  %v3735 = vrot.slane %v3728, 4
  %v3736 = vsel %vm1549, 0.0, %v3735
  %v3737 = vsel %vm1601, %v3712, 0.0
  %v3738 = vrot.slane %v3737, 4
  %v3739 = vadd.f32 %v3737, %v3738
  %v3740 = vrot.slane %v3739, 2
  %v3741 = vadd.f32 %v3739, %v3740
  %v3742 = vrot.slane %v3741, 1
  %v3743 = vadd.f32 %v3741, %v3742
  %v3744 = vsel %vm1601, %v3730, 0.0
  %v3745 = vrot.slane %v3744, 4
  %v3746 = vadd.f32 %v3744, %v3745
  %v3747 = vrot.slane %v3746, 2
  %v3748 = vadd.f32 %v3746, %v3747
  %v3749 = vrot.slane %v3748, 1
  %v3750 = vadd.f32 %v3748, %v3749
  %v3751 = vsel %vm1601, %v3716, 0.0
  %v3752 = vrot.slane %v3751, 4
  %v3753 = vadd.f32 %v3751, %v3752
  %v3754 = vrot.slane %v3753, 2
  %v3755 = vadd.f32 %v3753, %v3754
  %v3756 = vrot.slane %v3755, 1
  %v3757 = vadd.f32 %v3755, %v3756
  %v3758 = vsel %vm1601, %v3732, 0.0
  %v3759 = vrot.slane %v3758, 4
  %v3760 = vadd.f32 %v3758, %v3759
  %v3761 = vrot.slane %v3760, 2
  %v3762 = vadd.f32 %v3760, %v3761
  %v3763 = vrot.slane %v3762, 1
  %v3764 = vadd.f32 %v3762, %v3763
  %v3765 = vsel %vm1601, %v3724, 0.0
  %v3766 = vrot.slane %v3765, 4
  %v3767 = vadd.f32 %v3765, %v3766
  %v3768 = vrot.slane %v3767, 2
  %v3769 = vadd.f32 %v3767, %v3768
  %v3770 = vrot.slane %v3769, 1
  %v3771 = vadd.f32 %v3769, %v3770
  %v3772 = vsel %vm1601, %v3734, 0.0
  %v3773 = vrot.slane %v3772, 4
  %v3774 = vadd.f32 %v3772, %v3773
  %v3775 = vrot.slane %v3774, 2
  %v3776 = vadd.f32 %v3774, %v3775
  %v3777 = vrot.slane %v3776, 1
  %v3778 = vadd.f32 %v3776, %v3777
  %v3779 = vsel %vm1601, %v3728, 0.0
  %v3780 = vrot.slane %v3779, 4
  %v3781 = vadd.f32 %v3779, %v3780
  %v3782 = vrot.slane %v3781, 2
  %v3783 = vadd.f32 %v3781, %v3782
  %v3784 = vrot.slane %v3783, 1
  %v3785 = vadd.f32 %v3783, %v3784
  %v3786 = vsel %vm1601, %v3736, 0.0
  %v3787 = vrot.slane %v3786, 4
  %v3788 = vadd.f32 %v3786, %v3787
  %v3789 = vrot.slane %v3788, 2
  %v3790 = vadd.f32 %v3788, %v3789
  %v3791 = vrot.slane %v3790, 1
  %v3792 = vadd.f32 %v3790, %v3791
  %v3801 = vsel %vm1667, %v3750, %v3743
  %v3802 = vsel %vm1669, %v3757, %v3801
  %v3803 = vsel %vm1671, %v3764, %v3802
  %v3804 = vsel %vm1673, %v3771, %v3803
  %v3805 = vsel %vm1675, %v3778, %v3804
  %v3806 = vsel %vm1677, %v3785, %v3805
  %v3807 = vsel %vm1679, %v3792, %v3806
  %3809 = vmatpush.msra.mxu0 0.0
  %3810 = vmatpush.msra.mxu0 0.0
  %3811 = vmatpush.msra.mxu0 0.0
  %3812 = vmatpush.msra.mxu0 0.0
  %3813 = vmatpush.msra.mxu0 0.0
  %3814 = vmatpush.msra.mxu0 0.0
  %3815 = vmatpush.msra.mxu0 0.0
  %3816 = vmatpush.msra.mxu0 0.0
  %3817 = vmatpush.msra.mxu0 0.0
  %3818 = vmatpush.msra.mxu0 0.0
  %3819 = vmatpush.msra.mxu0 0.0
  %3820 = vmatpush.msra.mxu0 0.0
  %3821 = vmatpush.msra.mxu0 0.0
  %3822 = vmatpush.msra.mxu0 0.0
  %3823 = vmatpush.msra.mxu0 0.0
  %3824 = vmatpush.msra.mxu0 %v3807
  %3825 = vmatmul.f32.gmra.mxu0 %v3657
  %v3826 = vpop.f32.mrf.mxu0
  %v3827 = vadd.f32 0.0, %v3826
  %3828 = vdwg.mxu0
  %3829 = vadd.xlane.f32.xlu0 %v3827
  %v3830 = vpop.xlane.xlu0 %3829
  %v3831 = vadd.f32 %v3830, 1e-05
  %v3832 = vrsqrt.pop %v3831
  %v3833 = vmul.f32 %v3832, %v3831
  %v3834 = vmul.f32 %v3833, %v3832
  %v3835 = vmul.f32 0.5, %v3834
  %v3836 = vsub.f32 1.5, %v3835
  %v3837 = vmul.f32 %v3832, %v3836
  %vm3838 = vweird.f32 %v3831
  %vm3839 = vweird.f32 %v3832
  %vm3840 = vmor %vm3838, %vm3839
  %v3841 = vsel %vm3840, %v3832, %v3837
  %v3842 = vld [vmem:[%s11] sm:$0xff]
  %v3843 = vmul.f32 %v3841, %v3842
  %3845 = vset.pattern.permute.xlu0 0
  %3846 = vperm.xlu0 %3845, %v3843
  %v3847 = vpop.permute.xlu0 %3846
  %v3849 = vmul.f32 %v3681, %v3847
  %v3850 = vmul.f32 %v3682, %v3847
  %v3851 = vld [vmem:[%s12] sm:$0xff]
  %3853 = vset.pattern.permute.xlu0 0
  %3854 = vperm.xlu0 %3853, %v3851
  %v3855 = vpop.permute.xlu0 %3854
  %v3857 = vadd.f32 %v3849, %v3855
  %v3858 = vadd.f32 %v3850, %v3855
  %vm3859 = vcmp.gt.f32.partialorder %v3857, 0.0
  %vm3860 = vcmp.gt.f32.partialorder %v3858, 0.0
  %v3861 = vmul.f32 %v3857, 0.2
  %v3862 = vmul.f32 %v3858, 0.2
  %v3863 = vsel %vm3859, %v3857, %v3861
  %v3864 = vsel %vm3860, %v3858, %v3862
  %3865 = vst [vmem:[%s13] sm:$0xff] %v3863
  %3866 = vst [vmem:[%s13 + $0x8] sm:$0xff] %v3864
  %v3867 = vrot.slane %v3529, 4
  %v3868 = vsel %vm1549, 0.0, %v3867
  %v3870 = vunpack.c.l.s4 1983009808
  %v3871 = vunpack.c.0.s8 %v3870
  %v3872 = vperm.slane %v3529, %v3871
  %v3874 = vunpack.c.l.s4 1983009808
  %v3875 = vunpack.c.0.s8 %v3874
  %v3876 = vperm.slane %v3868, %v3875
  %v3877 = vrot.slane %v3530, 4
  %v3878 = vsel %vm1549, 0.0, %v3877
  %v3880 = vunpack.c.l.s4 1983009808
  %v3881 = vunpack.c.0.s8 %v3880
  %v3882 = vperm.slane %v3530, %v3881
  %v3884 = vunpack.c.l.s4 1983009808
  %v3885 = vunpack.c.0.s8 %v3884
  %v3886 = vperm.slane %v3878, %v3885
  %v3887 = vrot.slane %v3882, 4
  %v3888 = vsel %vm1549, %v3887, %v3872
  %v3889 = vrot.slane %v3872, 4
  %v3890 = vsel %vm1549, %v3882, %v3889
  %v3892 = vunpack.c.l.s4 1934713408
  %v3893 = vunpack.c.0.s8 %v3892
  %v3894 = vperm.slane %v3888, %v3893
  %v3896 = vunpack.c.l.s4 1934713408
  %v3897 = vunpack.c.0.s8 %v3896
  %v3898 = vperm.slane %v3890, %v3897
  %v3899 = vrot.slane %v3886, 4
  %v3900 = vsel %vm1549, %v3899, %v3876
  %v3901 = vrot.slane %v3876, 4
  %v3902 = vsel %vm1549, %v3886, %v3901
  %v3904 = vunpack.c.l.s4 1934713408
  %v3905 = vunpack.c.0.s8 %v3904
  %v3906 = vperm.slane %v3900, %v3905
  %v3908 = vunpack.c.l.s4 1934713408
  %v3909 = vunpack.c.0.s8 %v3908
  %v3910 = vperm.slane %v3902, %v3909
  %v3911 = vrot.slane %v3894, 4
  %v3912 = vsel %vm1549, 0.0, %v3911
  %v3913 = vrot.slane %v3898, 4
  %v3914 = vsel %vm1549, 0.0, %v3913
  %v3915 = vrot.slane %v3906, 4
  %v3916 = vsel %vm1549, 0.0, %v3915
  %v3917 = vrot.slane %v3910, 4
  %v3918 = vsel %vm1549, 0.0, %v3917
  %v3919 = vsel %vm1601, %v3894, 0.0
  %v3920 = vrot.slane %v3919, 4
  %v3921 = vadd.f32 %v3919, %v3920
  %v3922 = vrot.slane %v3921, 2
  %v3923 = vadd.f32 %v3921, %v3922
  %v3924 = vrot.slane %v3923, 1
  %v3925 = vadd.f32 %v3923, %v3924
  %v3926 = vsel %vm1601, %v3912, 0.0
  %v3927 = vrot.slane %v3926, 4
  %v3928 = vadd.f32 %v3926, %v3927
  %v3929 = vrot.slane %v3928, 2
  %v3930 = vadd.f32 %v3928, %v3929
  %v3931 = vrot.slane %v3930, 1
  %v3932 = vadd.f32 %v3930, %v3931
  %v3933 = vsel %vm1601, %v3898, 0.0
  %v3934 = vrot.slane %v3933, 4
  %v3935 = vadd.f32 %v3933, %v3934
  %v3936 = vrot.slane %v3935, 2
  %v3937 = vadd.f32 %v3935, %v3936
  %v3938 = vrot.slane %v3937, 1
  %v3939 = vadd.f32 %v3937, %v3938
  %v3940 = vsel %vm1601, %v3914, 0.0
  %v3941 = vrot.slane %v3940, 4
  %v3942 = vadd.f32 %v3940, %v3941
  %v3943 = vrot.slane %v3942, 2
  %v3944 = vadd.f32 %v3942, %v3943
  %v3945 = vrot.slane %v3944, 1
  %v3946 = vadd.f32 %v3944, %v3945
  %v3947 = vsel %vm1601, %v3906, 0.0
  %v3948 = vrot.slane %v3947, 4
  %v3949 = vadd.f32 %v3947, %v3948
  %v3950 = vrot.slane %v3949, 2
  %v3951 = vadd.f32 %v3949, %v3950
  %v3952 = vrot.slane %v3951, 1
  %v3953 = vadd.f32 %v3951, %v3952
  %v3954 = vsel %vm1601, %v3916, 0.0
  %v3955 = vrot.slane %v3954, 4
  %v3956 = vadd.f32 %v3954, %v3955
  %v3957 = vrot.slane %v3956, 2
  %v3958 = vadd.f32 %v3956, %v3957
  %v3959 = vrot.slane %v3958, 1
  %v3960 = vadd.f32 %v3958, %v3959
  %v3961 = vsel %vm1601, %v3910, 0.0
  %v3962 = vrot.slane %v3961, 4
  %v3963 = vadd.f32 %v3961, %v3962
  %v3964 = vrot.slane %v3963, 2
  %v3965 = vadd.f32 %v3963, %v3964
  %v3966 = vrot.slane %v3965, 1
  %v3967 = vadd.f32 %v3965, %v3966
  %v3968 = vsel %vm1601, %v3918, 0.0
  %v3969 = vrot.slane %v3968, 4
  %v3970 = vadd.f32 %v3968, %v3969
  %v3971 = vrot.slane %v3970, 2
  %v3972 = vadd.f32 %v3970, %v3971
  %v3973 = vrot.slane %v3972, 1
  %v3974 = vadd.f32 %v3972, %v3973
  %v3975 = vld [vmem:[%s4] sm:$0xff]
  %v3984 = vsel %vm1667, %v3932, %v3925
  %v3985 = vsel %vm1669, %v3939, %v3984
  %v3986 = vsel %vm1671, %v3946, %v3985
  %v3987 = vsel %vm1673, %v3953, %v3986
  %v3988 = vsel %vm1675, %v3960, %v3987
  %v3989 = vsel %vm1677, %v3967, %v3988
  %v3990 = vsel %vm1679, %v3974, %v3989
  %v3993 = vsel %vm248, %v3975, 0
  %3995 = vmatpush.msra.mxu0 0.0
  %3996 = vmatpush.msra.mxu0 0.0
  %3997 = vmatpush.msra.mxu0 0.0
  %3998 = vmatpush.msra.mxu0 0.0
  %3999 = vmatpush.msra.mxu0 0.0
  %4000 = vmatpush.msra.mxu0 0.0
  %4001 = vmatpush.msra.mxu0 0.0
  %4002 = vmatpush.msra.mxu0 0.0
  %4003 = vmatpush.msra.mxu0 0.0
  %4004 = vmatpush.msra.mxu0 0.0
  %4005 = vmatpush.msra.mxu0 0.0
  %4006 = vmatpush.msra.mxu0 0.0
  %4007 = vmatpush.msra.mxu0 0.0
  %4008 = vmatpush.msra.mxu0 0.0
  %4009 = vmatpush.msra.mxu0 0.0
  %4010 = vmatpush.msra.mxu0 %v3990
  %4011 = vmatmul.f32.gmra.mxu0 %v3993
  %v4012 = vpop.f32.mrf.mxu0
  %v4013 = vadd.f32 0.0, %v4012
  %4014 = vdwg.mxu0
  %4015 = vadd.xlane.f32.xlu0 %v4013
  %v4016 = vpop.xlane.xlu0 %4015
  %v4017 = vsub.f32 %v3529, %v4016
  %v4018 = vsub.f32 %v3530, %v4016
  %v4019 = vmul.f32 %v4017, %v4017
  %v4020 = vmul.f32 %v4018, %v4018
  %v4021 = vrot.slane %v4019, 4
  %v4022 = vsel %vm1549, 0.0, %v4021
  %v4024 = vunpack.c.l.s4 1983009808
  %v4025 = vunpack.c.0.s8 %v4024
  %v4026 = vperm.slane %v4019, %v4025
  %v4028 = vunpack.c.l.s4 1983009808
  %v4029 = vunpack.c.0.s8 %v4028
  %v4030 = vperm.slane %v4022, %v4029
  %v4031 = vrot.slane %v4020, 4
  %v4032 = vsel %vm1549, 0.0, %v4031
  %v4034 = vunpack.c.l.s4 1983009808
  %v4035 = vunpack.c.0.s8 %v4034
  %v4036 = vperm.slane %v4020, %v4035
  %v4038 = vunpack.c.l.s4 1983009808
  %v4039 = vunpack.c.0.s8 %v4038
  %v4040 = vperm.slane %v4032, %v4039
  %v4041 = vrot.slane %v4036, 4
  %v4042 = vsel %vm1549, %v4041, %v4026
  %v4043 = vrot.slane %v4026, 4
  %v4044 = vsel %vm1549, %v4036, %v4043
  %v4046 = vunpack.c.l.s4 1934713408
  %v4047 = vunpack.c.0.s8 %v4046
  %v4048 = vperm.slane %v4042, %v4047
  %v4050 = vunpack.c.l.s4 1934713408
  %v4051 = vunpack.c.0.s8 %v4050
  %v4052 = vperm.slane %v4044, %v4051
  %v4053 = vrot.slane %v4040, 4
  %v4054 = vsel %vm1549, %v4053, %v4030
  %v4055 = vrot.slane %v4030, 4
  %v4056 = vsel %vm1549, %v4040, %v4055
  %v4058 = vunpack.c.l.s4 1934713408
  %v4059 = vunpack.c.0.s8 %v4058
  %v4060 = vperm.slane %v4054, %v4059
  %v4062 = vunpack.c.l.s4 1934713408
  %v4063 = vunpack.c.0.s8 %v4062
  %v4064 = vperm.slane %v4056, %v4063
  %v4065 = vrot.slane %v4048, 4
  %v4066 = vsel %vm1549, 0.0, %v4065
  %v4067 = vrot.slane %v4052, 4
  %v4068 = vsel %vm1549, 0.0, %v4067
  %v4069 = vrot.slane %v4060, 4
  %v4070 = vsel %vm1549, 0.0, %v4069
  %v4071 = vrot.slane %v4064, 4
  %v4072 = vsel %vm1549, 0.0, %v4071
  %v4073 = vsel %vm1601, %v4048, 0.0
  %v4074 = vrot.slane %v4073, 4
  %v4075 = vadd.f32 %v4073, %v4074
  %v4076 = vrot.slane %v4075, 2
  %v4077 = vadd.f32 %v4075, %v4076
  %v4078 = vrot.slane %v4077, 1
  %v4079 = vadd.f32 %v4077, %v4078
  %v4080 = vsel %vm1601, %v4066, 0.0
  %v4081 = vrot.slane %v4080, 4
  %v4082 = vadd.f32 %v4080, %v4081
  %v4083 = vrot.slane %v4082, 2
  %v4084 = vadd.f32 %v4082, %v4083
  %v4085 = vrot.slane %v4084, 1
  %v4086 = vadd.f32 %v4084, %v4085
  %v4087 = vsel %vm1601, %v4052, 0.0
  %v4088 = vrot.slane %v4087, 4
  %v4089 = vadd.f32 %v4087, %v4088
  %v4090 = vrot.slane %v4089, 2
  %v4091 = vadd.f32 %v4089, %v4090
  %v4092 = vrot.slane %v4091, 1
  %v4093 = vadd.f32 %v4091, %v4092
  %v4094 = vsel %vm1601, %v4068, 0.0
  %v4095 = vrot.slane %v4094, 4
  %v4096 = vadd.f32 %v4094, %v4095
  %v4097 = vrot.slane %v4096, 2
  %v4098 = vadd.f32 %v4096, %v4097
  %v4099 = vrot.slane %v4098, 1
  %v4100 = vadd.f32 %v4098, %v4099
  %v4101 = vsel %vm1601, %v4060, 0.0
  %v4102 = vrot.slane %v4101, 4
  %v4103 = vadd.f32 %v4101, %v4102
  %v4104 = vrot.slane %v4103, 2
  %v4105 = vadd.f32 %v4103, %v4104
  %v4106 = vrot.slane %v4105, 1
  %v4107 = vadd.f32 %v4105, %v4106
  %v4108 = vsel %vm1601, %v4070, 0.0
  %v4109 = vrot.slane %v4108, 4
  %v4110 = vadd.f32 %v4108, %v4109
  %v4111 = vrot.slane %v4110, 2
  %v4112 = vadd.f32 %v4110, %v4111
  %v4113 = vrot.slane %v4112, 1
  %v4114 = vadd.f32 %v4112, %v4113
  %v4115 = vsel %vm1601, %v4064, 0.0
  %v4116 = vrot.slane %v4115, 4
  %v4117 = vadd.f32 %v4115, %v4116
  %v4118 = vrot.slane %v4117, 2
  %v4119 = vadd.f32 %v4117, %v4118
  %v4120 = vrot.slane %v4119, 1
  %v4121 = vadd.f32 %v4119, %v4120
  %v4122 = vsel %vm1601, %v4072, 0.0
  %v4123 = vrot.slane %v4122, 4
  %v4124 = vadd.f32 %v4122, %v4123
  %v4125 = vrot.slane %v4124, 2
  %v4126 = vadd.f32 %v4124, %v4125
  %v4127 = vrot.slane %v4126, 1
  %v4128 = vadd.f32 %v4126, %v4127
  %v4137 = vsel %vm1667, %v4086, %v4079
  %v4138 = vsel %vm1669, %v4093, %v4137
  %v4139 = vsel %vm1671, %v4100, %v4138
  %v4140 = vsel %vm1673, %v4107, %v4139
  %v4141 = vsel %vm1675, %v4114, %v4140
  %v4142 = vsel %vm1677, %v4121, %v4141
  %v4143 = vsel %vm1679, %v4128, %v4142
  %4145 = vmatpush.msra.mxu0 0.0
  %4146 = vmatpush.msra.mxu0 0.0
  %4147 = vmatpush.msra.mxu0 0.0
  %4148 = vmatpush.msra.mxu0 0.0
  %4149 = vmatpush.msra.mxu0 0.0
  %4150 = vmatpush.msra.mxu0 0.0
  %4151 = vmatpush.msra.mxu0 0.0
  %4152 = vmatpush.msra.mxu0 0.0
  %4153 = vmatpush.msra.mxu0 0.0
  %4154 = vmatpush.msra.mxu0 0.0
  %4155 = vmatpush.msra.mxu0 0.0
  %4156 = vmatpush.msra.mxu0 0.0
  %4157 = vmatpush.msra.mxu0 0.0
  %4158 = vmatpush.msra.mxu0 0.0
  %4159 = vmatpush.msra.mxu0 0.0
  %4160 = vmatpush.msra.mxu0 %v4143
  %4161 = vmatmul.f32.gmra.mxu0 %v3993
  %v4162 = vpop.f32.mrf.mxu0
  %v4163 = vadd.f32 0.0, %v4162
  %4164 = vdwg.mxu0
  %4165 = vadd.xlane.f32.xlu0 %v4163
  %v4166 = vpop.xlane.xlu0 %4165
  %v4167 = vadd.f32 %v4166, 1e-05
  %v4168 = vrsqrt.pop %v4167
  %v4169 = vmul.f32 %v4168, %v4167
  %v4170 = vmul.f32 %v4169, %v4168
  %v4171 = vmul.f32 0.5, %v4170
  %v4172 = vsub.f32 1.5, %v4171
  %v4173 = vmul.f32 %v4168, %v4172
  %vm4174 = vweird.f32 %v4167
  %vm4175 = vweird.f32 %v4168
  %vm4176 = vmor %vm4174, %vm4175
  %v4177 = vsel %vm4176, %v4168, %v4173
  %v4178 = vld [vmem:[%s11] sm:$0xff]
  %v4179 = vmul.f32 %v4177, %v4178
  %4181 = vset.pattern.permute.xlu0 0
  %4182 = vperm.xlu0 %4181, %v4179
  %v4183 = vpop.permute.xlu0 %4182
  %v4185 = vmul.f32 %v4017, %v4183
  %v4186 = vmul.f32 %v4018, %v4183
  %v4187 = vld [vmem:[%s12] sm:$0xff]
  %4189 = vset.pattern.permute.xlu0 0
  %4190 = vperm.xlu0 %4189, %v4187
  %v4191 = vpop.permute.xlu0 %4190
  %v4193 = vadd.f32 %v4185, %v4191
  %v4194 = vadd.f32 %v4186, %v4191
  %vm4195 = vcmp.gt.f32.partialorder %v4193, 0.0
  %vm4196 = vcmp.gt.f32.partialorder %v4194, 0.0
  %v4197 = vmul.f32 %v4193, 0.2
  %v4198 = vmul.f32 %v4194, 0.2
  %v4199 = vsel %vm4195, %v4193, %v4197
  %v4200 = vsel %vm4196, %v4194, %v4198
  %s4201 = scalar_lea.vmem %s13, 16
  %4202 = vst [vmem:[%s4201] sm:$0xff] %v4199
  %4203 = vst [vmem:[%s4201 + $0x8] sm:$0xff] %v4200
  // Predicated region
  $region54: #{up_forward.1} parent=0 // pred_check
    _
  $region55: #{up_forward.1} parent=0 // pred_check_branch
    %4205 = sbr.rel (0) target = $region57
  $region56: #{up_forward.1} parent=0 // pred_region
    _
  $region57: #{up_forward.1} parent=0 // pred_fallthru
    _
  // Predicated region
  $region58: #{up_forward.1} parent=0 // pred_check
    _
  $region59: #{up_forward.1} parent=0 // pred_check_branch
    %4207 = sbr.rel (0) target = $region61
  $region60: #{up_forward.1} parent=0 // pred_region
    _
  $region61: #{up_forward.1} parent=0 // pred_fallthru
    _

</llo_original>
